<compile_context>
chip_gen: v6e
topology: v6e:2x2x1
jax: 0.10.0
libtpu: 0.0.40
codegen_flags: <defaults>
</compile_context>

<pallas_src>
import functools

import jax
import jax.numpy as jnp
from jax.experimental import pallas as pl
from jax.experimental.pallas import tpu as pltpu


def _round_up(x, m):
    return (x + m - 1) // m * m


def _conv_tile_kernel(x_ref, w_ref, b_ref, o_ref, *, K, stride, C_in, C_out,
                      tile_h, W_out):
    """Direct small-channel conv for one (batch, row-tile) grid step.

    x_ref: (1, C_in, rows_in, W_pad)   VMEM   rows_in = (tile_h-1)*stride + K
    w_ref: (C_out*C_in*K*K,)           SMEM   flattened OIHW weights
    b_ref: (C_out,)                    SMEM
    o_ref: (1, C_out, tile_h, W_out)   VMEM
    """
    # One (tile_h, W_out) f32 accumulator per output channel -- a few vregs each,
    # W on lanes, so the final stores are lane-dense and nothing spills.
    accs = [jnp.full((tile_h, W_out), b_ref[co], dtype=jnp.float32)
            for co in range(C_out)]

    for ci in range(C_in):
        # Slice the K*K shifted windows of this input channel straight off the
        # Ref (static offsets -> cheap shifted loads, no materialized copies),
        # and reuse each window for every output channel.
        taps = []
        for kh in range(K):
            row = []
            for kw in range(K):
                if stride == 1:
                    row.append(x_ref[0, ci, pl.ds(kh, tile_h), pl.ds(kw, W_out)])
                else:
                    # stride > 1 path (unused in the demo); a space-to-depth in
                    # the wrapper would lower better than strided slices.
                    row.append(x_ref[0, ci,
                                     pl.ds(kh, tile_h, stride),
                                     pl.ds(kw, W_out, stride)])
            taps.append(row)

        for co in range(C_out):
            base = (co * C_in + ci) * K * K
            for kh in range(K):
                for kw in range(K):
                    w = w_ref[base + kh * K + kw]            # scalar from SMEM
                    accs[co] = accs[co] + w * taps[kh][kw]   # VPU mul + add

    for co in range(C_out):
        o_ref[0, co, :, :] = accs[co].astype(o_ref.dtype)


def _choose_tile_h(H_out, W_pad, W_out, C_in, C_out, K, stride,
                   budget_bytes=8 * 1024 * 1024):
    """Largest row tile whose double-buffered in+out VMEM blocks fit the budget
    (budget chosen to be safe even under v5e's 16 MiB default scoped VMEM)."""
    best = None
    for t in range(8, H_out + 1, 8):
        if H_out % t:
            continue
        rows_in = (t - 1) * stride + K
        in_b = C_in * _round_up(rows_in, 8) * _round_up(W_pad, 128) * 4
        out_b = C_out * _round_up(t, 8) * _round_up(W_out, 128) * 4
        if 2 * (in_b + out_b) <= budget_bytes:      # x2 for double buffering
            best = t
    if best is None:
        divs = [t for t in range(8, H_out + 1, 8) if H_out % t == 0]
        best = divs[0] if divs else H_out
    return best


@functools.partial(jax.jit,
                   static_argnames=("kernel_size", "stride", "upsample", "tile_h"))
def deconvolutional_block_forward(x_nchw, weight_oihw, bias, *,
                                  kernel_size, stride, upsample=None,
                                  tile_h=None):
    """Forward pass matching the PyTorch DeconvolutionalBlock.

    x_nchw:      (N, C_in, H, W)
    weight_oihw: (C_out, C_in, K, K)   (PyTorch Conv2d layout)
    bias:        (C_out,)
    """
    N, C_in, H, W = x_nchw.shape
    C_out = weight_oihw.shape[0]
    K = kernel_size

    x = x_nchw
    # --- glue (plain JAX): nearest upsample + reflection pad --------------------
    if upsample:
        x = jnp.repeat(jnp.repeat(x, upsample, axis=2), upsample, axis=3)
    pad = K // 2
    if pad:
        x = jnp.pad(x, ((0, 0), (0, 0), (pad, pad), (pad, pad)), mode="reflect")

    H_pad, W_pad = x.shape[2], x.shape[3]
    H_out = (H_pad - K) // stride + 1
    W_out = (W_pad - K) // stride + 1

    if tile_h is None:
        tile_h = _choose_tile_h(H_out, W_pad, W_out, C_in, C_out, K, stride)
    assert H_out % tile_h == 0 and (tile_h % 8 == 0 or tile_h == H_out), (
        f"tile_h={tile_h} must divide H_out={H_out} and be a multiple of 8 "
        f"(or the full H_out)")
    n_tiles = H_out // tile_h
    rows_in = (tile_h - 1) * stride + K

    # Materialize the halo'd row tiles once in the wrapper (duplicates only the
    # (K - stride) halo rows per tile) so plain Blocked BlockSpecs give
    # overlapping input windows with automatic double-buffered DMA.
    row_tiles = [x[:, :, r * tile_h * stride: r * tile_h * stride + rows_in, :]
                 for r in range(n_tiles)]
    x_tiles = (jnp.stack(row_tiles, axis=1)
               .reshape(N * n_tiles, C_in, rows_in, W_pad))

    w_flat = weight_oihw.astype(jnp.float32).reshape(-1)   # (C_out*C_in*K*K,)
    b_flat = bias.astype(jnp.float32).reshape(-1)          # (C_out,)

    kern = functools.partial(_conv_tile_kernel, K=K, stride=stride, C_in=C_in,
                             C_out=C_out, tile_h=tile_h, W_out=W_out)

    out = pl.pallas_call(
        kern,
        out_shape=jax.ShapeDtypeStruct((N, C_out, H_out, W_out), x.dtype),
        grid=(N, n_tiles),
        in_specs=[
            # Halo'd input row tile: NCHW-ish block, W (full) on lanes.
            pl.BlockSpec((1, C_in, rows_in, W_pad),
                         lambda n, r: (n * n_tiles + r, 0, 0, 0)),
            # Weights / bias live in SMEM as scalars -> never enter the VMEM
            # pipeline, no double-buffered copies of a constant.
            pl.BlockSpec(memory_space=pltpu.MemorySpace.SMEM),
            pl.BlockSpec(memory_space=pltpu.MemorySpace.SMEM),
        ],
        out_specs=pl.BlockSpec((1, C_out, tile_h, W_out),
                               lambda n, r: (n, 0, r, 0)),
        compiler_params=pltpu.CompilerParams(
            dimension_semantics=("parallel", "parallel")),
    )(x_tiles, w_flat, b_flat)
    return out


def init_conv_params(key, in_channels, out_channels, kernel_size):
    """Deterministic Conv2d init (mimics PyTorch's default kaiming-uniform)."""
    fan_in = in_channels * kernel_size * kernel_size
    bound = 1.0 / (fan_in ** 0.5)
    kw, kb = jax.random.split(key)
    weight = jax.random.uniform(
        kw, (out_channels, in_channels, kernel_size, kernel_size),
        minval=-bound, maxval=bound, dtype=jnp.float32)
    bias = jax.random.uniform(
        kb, (out_channels,), minval=-bound, maxval=bound, dtype=jnp.float32)
    return weight, bias


def _reference_forward(x_nchw, weight, bias, *, kernel_size, stride, upsample):
    """Pure-JAX reference (XLA conv) for correctness checking."""
    x = x_nchw
    if upsample:
        x = jnp.repeat(jnp.repeat(x, upsample, axis=2), upsample, axis=3)
    pad = kernel_size // 2
    if pad:
        x = jnp.pad(x, ((0, 0), (0, 0), (pad, pad), (pad, pad)), mode="reflect")
    out = jax.lax.conv_general_dilated(
        x, weight, window_strides=(stride, stride), padding="VALID",
        dimension_numbers=("NCHW", "OIHW", "NCHW"))
    return out + bias[None, :, None, None]


if __name__ == "__main__":
    # DeconvolutionalBlock(in_channels=4, out_channels=8, kernel_size=3,
    #                      stride=1, upsample=2)
    in_channels, out_channels, kernel_size, stride, upsample = 4, 8, 3, 1, 2

    key = jax.random.PRNGKey(0)
    k_x, k_p = jax.random.split(key)
    x = jax.random.normal(k_x, (2, in_channels, 16, 16), dtype=jnp.float32)
    weight, bias = init_conv_params(k_p, in_channels, out_channels, kernel_size)

    # tile_h=16 exercises the halo'd spatial-tiling path even at this small size
    # (grid = (2 batches, 2 row tiles), both axes "parallel").
    out = deconvolutional_block_forward(
        x, weight, bias, kernel_size=kernel_size, stride=stride,
        upsample=upsample, tile_h=16)
    out = jax.block_until_ready(out)

    ref = _reference_forward(x, weight, bias, kernel_size=kernel_size,
                             stride=stride, upsample=upsample)
    assert out.shape == ref.shape == (2, out_channels, 32, 32), out.shape
    assert jnp.allclose(out, ref, atol=1e-4, rtol=1e-4), "mismatch vs reference"

    print("KERNEL_OK")
</pallas_src>

<mosaic_0001>
module attributes {stable_mosaic.version = 11 : i64} {
  func.func @_conv_tile_kernel(%arg0: i32, %arg1: i32, %arg2: memref<1x4x18x34xf32, #tpu.memory_space<vmem>>, %arg3: memref<288xf32, #tpu.memory_space<smem>>, %arg4: memref<8xf32, #tpu.memory_space<smem>>, %arg5: memref<1x8x16x32xf32, #tpu.memory_space<vmem>>) attributes {dimension_semantics = [#tpu.dimension_semantics<parallel>, #tpu.dimension_semantics<parallel>], iteration_bounds = array<i64: 2, 2>, scalar_prefetch = 0 : i64, scratch_operands = 0 : i64, tpu.core_type = #tpu.core_type<tc>, window_params = [{transform_indices = @transform_0, window_bounds = array<i64: 1, 4, 18, 34>}, {transform_indices = @transform_1, window_bounds = array<i64: 288>}, {transform_indices = @transform_2, window_bounds = array<i64: 8>}, {transform_indices = @transform_3, window_bounds = array<i64: 1, 8, 16, 32>}]} {
    %c0 = arith.constant 0 : index
    %0 = memref.load %arg4[%c0] : memref<8xf32, #tpu.memory_space<smem>>
    %1 = vector.broadcast %0 : f32 to vector<16x32xf32>
    %c1 = arith.constant 1 : index
    %2 = memref.load %arg4[%c1] : memref<8xf32, #tpu.memory_space<smem>>
    %3 = vector.broadcast %2 : f32 to vector<16x32xf32>
    %c2 = arith.constant 2 : index
    %4 = memref.load %arg4[%c2] : memref<8xf32, #tpu.memory_space<smem>>
    %5 = vector.broadcast %4 : f32 to vector<16x32xf32>
    %c3 = arith.constant 3 : index
    %6 = memref.load %arg4[%c3] : memref<8xf32, #tpu.memory_space<smem>>
    %7 = vector.broadcast %6 : f32 to vector<16x32xf32>
    %c4 = arith.constant 4 : index
    %8 = memref.load %arg4[%c4] : memref<8xf32, #tpu.memory_space<smem>>
    %9 = vector.broadcast %8 : f32 to vector<16x32xf32>
    %c5 = arith.constant 5 : index
    %10 = memref.load %arg4[%c5] : memref<8xf32, #tpu.memory_space<smem>>
    %11 = vector.broadcast %10 : f32 to vector<16x32xf32>
    %c6 = arith.constant 6 : index
    %12 = memref.load %arg4[%c6] : memref<8xf32, #tpu.memory_space<smem>>
    %13 = vector.broadcast %12 : f32 to vector<16x32xf32>
    %c7 = arith.constant 7 : index
    %14 = memref.load %arg4[%c7] : memref<8xf32, #tpu.memory_space<smem>>
    %15 = vector.broadcast %14 : f32 to vector<16x32xf32>
    %c0_0 = arith.constant 0 : index
    %c0_1 = arith.constant 0 : index
    %c0_2 = arith.constant 0 : index
    %c0_3 = arith.constant 0 : index
    %16 = vector.load %arg2[%c0_0, %c0_1, %c0_2, %c0_3] : memref<1x4x18x34xf32, #tpu.memory_space<vmem>>, vector<1x1x16x32xf32>
    %17 = vector.shape_cast %16 : vector<1x1x16x32xf32> to vector<16x32xf32>
    %c0_4 = arith.constant 0 : index
    %c0_5 = arith.constant 0 : index
    %c0_6 = arith.constant 0 : index
    %c1_7 = arith.constant 1 : index
    %18 = vector.load %arg2[%c0_4, %c0_5, %c0_6, %c1_7] : memref<1x4x18x34xf32, #tpu.memory_space<vmem>>, vector<1x1x16x32xf32>
    %19 = vector.shape_cast %18 : vector<1x1x16x32xf32> to vector<16x32xf32>
    %c0_8 = arith.constant 0 : index
    %c0_9 = arith.constant 0 : index
    %c0_10 = arith.constant 0 : index
    %c2_11 = arith.constant 2 : index
    %20 = vector.load %arg2[%c0_8, %c0_9, %c0_10, %c2_11] : memref<1x4x18x34xf32, #tpu.memory_space<vmem>>, vector<1x1x16x32xf32>
    %21 = vector.shape_cast %20 : vector<1x1x16x32xf32> to vector<16x32xf32>
    %c0_12 = arith.constant 0 : index
    %c0_13 = arith.constant 0 : index
    %c1_14 = arith.constant 1 : index
    %c0_15 = arith.constant 0 : index
    %22 = vector.load %arg2[%c0_12, %c0_13, %c1_14, %c0_15] : memref<1x4x18x34xf32, #tpu.memory_space<vmem>>, vector<1x1x16x32xf32>
    %23 = vector.shape_cast %22 : vector<1x1x16x32xf32> to vector<16x32xf32>
    %c0_16 = arith.constant 0 : index
    %c0_17 = arith.constant 0 : index
    %c1_18 = arith.constant 1 : index
    %c1_19 = arith.constant 1 : index
    %24 = vector.load %arg2[%c0_16, %c0_17, %c1_18, %c1_19] : memref<1x4x18x34xf32, #tpu.memory_space<vmem>>, vector<1x1x16x32xf32>
    %25 = vector.shape_cast %24 : vector<1x1x16x32xf32> to vector<16x32xf32>
    %c0_20 = arith.constant 0 : index
    %c0_21 = arith.constant 0 : index
    %c1_22 = arith.constant 1 : index
    %c2_23 = arith.constant 2 : index
    %26 = vector.load %arg2[%c0_20, %c0_21, %c1_22, %c2_23] : memref<1x4x18x34xf32, #tpu.memory_space<vmem>>, vector<1x1x16x32xf32>
    %27 = vector.shape_cast %26 : vector<1x1x16x32xf32> to vector<16x32xf32>
    %c0_24 = arith.constant 0 : index
    %c0_25 = arith.constant 0 : index
    %c2_26 = arith.constant 2 : index
    %c0_27 = arith.constant 0 : index
    %28 = vector.load %arg2[%c0_24, %c0_25, %c2_26, %c0_27] : memref<1x4x18x34xf32, #tpu.memory_space<vmem>>, vector<1x1x16x32xf32>
    %29 = vector.shape_cast %28 : vector<1x1x16x32xf32> to vector<16x32xf32>
    %c0_28 = arith.constant 0 : index
    %c0_29 = arith.constant 0 : index
    %c2_30 = arith.constant 2 : index
    %c1_31 = arith.constant 1 : index
    %30 = vector.load %arg2[%c0_28, %c0_29, %c2_30, %c1_31] : memref<1x4x18x34xf32, #tpu.memory_space<vmem>>, vector<1x1x16x32xf32>
    %31 = vector.shape_cast %30 : vector<1x1x16x32xf32> to vector<16x32xf32>
    %c0_32 = arith.constant 0 : index
    %c0_33 = arith.constant 0 : index
    %c2_34 = arith.constant 2 : index
    %c2_35 = arith.constant 2 : index
    %32 = vector.load %arg2[%c0_32, %c0_33, %c2_34, %c2_35] : memref<1x4x18x34xf32, #tpu.memory_space<vmem>>, vector<1x1x16x32xf32>
    %33 = vector.shape_cast %32 : vector<1x1x16x32xf32> to vector<16x32xf32>
    %c0_36 = arith.constant 0 : index
    %34 = memref.load %arg3[%c0_36] : memref<288xf32, #tpu.memory_space<smem>>
    %35 = vector.broadcast %34 : f32 to vector<16x32xf32>
    %36 = arith.mulf %35, %17 : vector<16x32xf32>
    %37 = arith.addf %1, %36 : vector<16x32xf32>
    %c1_37 = arith.constant 1 : index
    %38 = memref.load %arg3[%c1_37] : memref<288xf32, #tpu.memory_space<smem>>
    %39 = vector.broadcast %38 : f32 to vector<16x32xf32>
    %40 = arith.mulf %39, %19 : vector<16x32xf32>
    %41 = arith.addf %37, %40 : vector<16x32xf32>
    %c2_38 = arith.constant 2 : index
    %42 = memref.load %arg3[%c2_38] : memref<288xf32, #tpu.memory_space<smem>>
    %43 = vector.broadcast %42 : f32 to vector<16x32xf32>
    %44 = arith.mulf %43, %21 : vector<16x32xf32>
    %45 = arith.addf %41, %44 : vector<16x32xf32>
    %c3_39 = arith.constant 3 : index
    %46 = memref.load %arg3[%c3_39] : memref<288xf32, #tpu.memory_space<smem>>
    %47 = vector.broadcast %46 : f32 to vector<16x32xf32>
    %48 = arith.mulf %47, %23 : vector<16x32xf32>
    %49 = arith.addf %45, %48 : vector<16x32xf32>
    %c4_40 = arith.constant 4 : index
    %50 = memref.load %arg3[%c4_40] : memref<288xf32, #tpu.memory_space<smem>>
    %51 = vector.broadcast %50 : f32 to vector<16x32xf32>
    %52 = arith.mulf %51, %25 : vector<16x32xf32>
    %53 = arith.addf %49, %52 : vector<16x32xf32>
    %c5_41 = arith.constant 5 : index
    %54 = memref.load %arg3[%c5_41] : memref<288xf32, #tpu.memory_space<smem>>
    %55 = vector.broadcast %54 : f32 to vector<16x32xf32>
    %56 = arith.mulf %55, %27 : vector<16x32xf32>
    %57 = arith.addf %53, %56 : vector<16x32xf32>
    %c6_42 = arith.constant 6 : index
    %58 = memref.load %arg3[%c6_42] : memref<288xf32, #tpu.memory_space<smem>>
    %59 = vector.broadcast %58 : f32 to vector<16x32xf32>
    %60 = arith.mulf %59, %29 : vector<16x32xf32>
    %61 = arith.addf %57, %60 : vector<16x32xf32>
    %c7_43 = arith.constant 7 : index
    %62 = memref.load %arg3[%c7_43] : memref<288xf32, #tpu.memory_space<smem>>
    %63 = vector.broadcast %62 : f32 to vector<16x32xf32>
    %64 = arith.mulf %63, %31 : vector<16x32xf32>
    %65 = arith.addf %61, %64 : vector<16x32xf32>
    %c8 = arith.constant 8 : index
    %66 = memref.load %arg3[%c8] : memref<288xf32, #tpu.memory_space<smem>>
    %67 = vector.broadcast %66 : f32 to vector<16x32xf32>
    %68 = arith.mulf %67, %33 : vector<16x32xf32>
    %69 = arith.addf %65, %68 : vector<16x32xf32>
    %c36 = arith.constant 36 : index
    %70 = memref.load %arg3[%c36] : memref<288xf32, #tpu.memory_space<smem>>
    %71 = vector.broadcast %70 : f32 to vector<16x32xf32>
    %72 = arith.mulf %71, %17 : vector<16x32xf32>
    %73 = arith.addf %3, %72 : vector<16x32xf32>
    %c37 = arith.constant 37 : index
    %74 = memref.load %arg3[%c37] : memref<288xf32, #tpu.memory_space<smem>>
    %75 = vector.broadcast %74 : f32 to vector<16x32xf32>
    %76 = arith.mulf %75, %19 : vector<16x32xf32>
    %77 = arith.addf %73, %76 : vector<16x32xf32>
    %c38 = arith.constant 38 : index
    %78 = memref.load %arg3[%c38] : memref<288xf32, #tpu.memory_space<smem>>
    %79 = vector.broadcast %78 : f32 to vector<16x32xf32>
    %80 = arith.mulf %79, %21 : vector<16x32xf32>
    %81 = arith.addf %77, %80 : vector<16x32xf32>
    %c39 = arith.constant 39 : index
    %82 = memref.load %arg3[%c39] : memref<288xf32, #tpu.memory_space<smem>>
    %83 = vector.broadcast %82 : f32 to vector<16x32xf32>
    %84 = arith.mulf %83, %23 : vector<16x32xf32>
    %85 = arith.addf %81, %84 : vector<16x32xf32>
    %c40 = arith.constant 40 : index
    %86 = memref.load %arg3[%c40] : memref<288xf32, #tpu.memory_space<smem>>
    %87 = vector.broadcast %86 : f32 to vector<16x32xf32>
    %88 = arith.mulf %87, %25 : vector<16x32xf32>
    %89 = arith.addf %85, %88 : vector<16x32xf32>
    %c41 = arith.constant 41 : index
    %90 = memref.load %arg3[%c41] : memref<288xf32, #tpu.memory_space<smem>>
    %91 = vector.broadcast %90 : f32 to vector<16x32xf32>
    %92 = arith.mulf %91, %27 : vector<16x32xf32>
    %93 = arith.addf %89, %92 : vector<16x32xf32>
    %c42 = arith.constant 42 : index
    %94 = memref.load %arg3[%c42] : memref<288xf32, #tpu.memory_space<smem>>
    %95 = vector.broadcast %94 : f32 to vector<16x32xf32>
    %96 = arith.mulf %95, %29 : vector<16x32xf32>
    %97 = arith.addf %93, %96 : vector<16x32xf32>
    %c43 = arith.constant 43 : index
    %98 = memref.load %arg3[%c43] : memref<288xf32, #tpu.memory_space<smem>>
    %99 = vector.broadcast %98 : f32 to vector<16x32xf32>
    %100 = arith.mulf %99, %31 : vector<16x32xf32>
    %101 = arith.addf %97, %100 : vector<16x32xf32>
    %c44 = arith.constant 44 : index
    %102 = memref.load %arg3[%c44] : memref<288xf32, #tpu.memory_space<smem>>
    %103 = vector.broadcast %102 : f32 to vector<16x32xf32>
    %104 = arith.mulf %103, %33 : vector<16x32xf32>
    %105 = arith.addf %101, %104 : vector<16x32xf32>
    %c72 = arith.constant 72 : index
    %106 = memref.load %arg3[%c72] : memref<288xf32, #tpu.memory_space<smem>>
    %107 = vector.broadcast %106 : f32 to vector<16x32xf32>
    %108 = arith.mulf %107, %17 : vector<16x32xf32>
    %109 = arith.addf %5, %108 : vector<16x32xf32>
    %c73 = arith.constant 73 : index
    %110 = memref.load %arg3[%c73] : memref<288xf32, #tpu.memory_space<smem>>
    %111 = vector.broadcast %110 : f32 to vector<16x32xf32>
    %112 = arith.mulf %111, %19 : vector<16x32xf32>
    %113 = arith.addf %109, %112 : vector<16x32xf32>
    %c74 = arith.constant 74 : index
    %114 = memref.load %arg3[%c74] : memref<288xf32, #tpu.memory_space<smem>>
    %115 = vector.broadcast %114 : f32 to vector<16x32xf32>
    %116 = arith.mulf %115, %21 : vector<16x32xf32>
    %117 = arith.addf %113, %116 : vector<16x32xf32>
    %c75 = arith.constant 75 : index
    %118 = memref.load %arg3[%c75] : memref<288xf32, #tpu.memory_space<smem>>
    %119 = vector.broadcast %118 : f32 to vector<16x32xf32>
    %120 = arith.mulf %119, %23 : vector<16x32xf32>
    %121 = arith.addf %117, %120 : vector<16x32xf32>
    %c76 = arith.constant 76 : index
    %122 = memref.load %arg3[%c76] : memref<288xf32, #tpu.memory_space<smem>>
    %123 = vector.broadcast %122 : f32 to vector<16x32xf32>
    %124 = arith.mulf %123, %25 : vector<16x32xf32>
    %125 = arith.addf %121, %124 : vector<16x32xf32>
    %c77 = arith.constant 77 : index
    %126 = memref.load %arg3[%c77] : memref<288xf32, #tpu.memory_space<smem>>
    %127 = vector.broadcast %126 : f32 to vector<16x32xf32>
    %128 = arith.mulf %127, %27 : vector<16x32xf32>
    %129 = arith.addf %125, %128 : vector<16x32xf32>
    %c78 = arith.constant 78 : index
    %130 = memref.load %arg3[%c78] : memref<288xf32, #tpu.memory_space<smem>>
    %131 = vector.broadcast %130 : f32 to vector<16x32xf32>
    %132 = arith.mulf %131, %29 : vector<16x32xf32>
    %133 = arith.addf %129, %132 : vector<16x32xf32>
    %c79 = arith.constant 79 : index
    %134 = memref.load %arg3[%c79] : memref<288xf32, #tpu.memory_space<smem>>
    %135 = vector.broadcast %134 : f32 to vector<16x32xf32>
    %136 = arith.mulf %135, %31 : vector<16x32xf32>
    %137 = arith.addf %133, %136 : vector<16x32xf32>
    %c80 = arith.constant 80 : index
    %138 = memref.load %arg3[%c80] : memref<288xf32, #tpu.memory_space<smem>>
    %139 = vector.broadcast %138 : f32 to vector<16x32xf32>
    %140 = arith.mulf %139, %33 : vector<16x32xf32>
    %141 = arith.addf %137, %140 : vector<16x32xf32>
    %c108 = arith.constant 108 : index
    %142 = memref.load %arg3[%c108] : memref<288xf32, #tpu.memory_space<smem>>
    %143 = vector.broadcast %142 : f32 to vector<16x32xf32>
    %144 = arith.mulf %143, %17 : vector<16x32xf32>
    %145 = arith.addf %7, %144 : vector<16x32xf32>
    %c109 = arith.constant 109 : index
    %146 = memref.load %arg3[%c109] : memref<288xf32, #tpu.memory_space<smem>>
    %147 = vector.broadcast %146 : f32 to vector<16x32xf32>
    %148 = arith.mulf %147, %19 : vector<16x32xf32>
    %149 = arith.addf %145, %148 : vector<16x32xf32>
    %c110 = arith.constant 110 : index
    %150 = memref.load %arg3[%c110] : memref<288xf32, #tpu.memory_space<smem>>
    %151 = vector.broadcast %150 : f32 to vector<16x32xf32>
    %152 = arith.mulf %151, %21 : vector<16x32xf32>
    %153 = arith.addf %149, %152 : vector<16x32xf32>
    %c111 = arith.constant 111 : index
    %154 = memref.load %arg3[%c111] : memref<288xf32, #tpu.memory_space<smem>>
    %155 = vector.broadcast %154 : f32 to vector<16x32xf32>
    %156 = arith.mulf %155, %23 : vector<16x32xf32>
    %157 = arith.addf %153, %156 : vector<16x32xf32>
    %c112 = arith.constant 112 : index
    %158 = memref.load %arg3[%c112] : memref<288xf32, #tpu.memory_space<smem>>
    %159 = vector.broadcast %158 : f32 to vector<16x32xf32>
    %160 = arith.mulf %159, %25 : vector<16x32xf32>
    %161 = arith.addf %157, %160 : vector<16x32xf32>
    %c113 = arith.constant 113 : index
    %162 = memref.load %arg3[%c113] : memref<288xf32, #tpu.memory_space<smem>>
    %163 = vector.broadcast %162 : f32 to vector<16x32xf32>
    %164 = arith.mulf %163, %27 : vector<16x32xf32>
    %165 = arith.addf %161, %164 : vector<16x32xf32>
    %c114 = arith.constant 114 : index
    %166 = memref.load %arg3[%c114] : memref<288xf32, #tpu.memory_space<smem>>
    %167 = vector.broadcast %166 : f32 to vector<16x32xf32>
    %168 = arith.mulf %167, %29 : vector<16x32xf32>
    %169 = arith.addf %165, %168 : vector<16x32xf32>
    %c115 = arith.constant 115 : index
    %170 = memref.load %arg3[%c115] : memref<288xf32, #tpu.memory_space<smem>>
    %171 = vector.broadcast %170 : f32 to vector<16x32xf32>
    %172 = arith.mulf %171, %31 : vector<16x32xf32>
    %173 = arith.addf %169, %172 : vector<16x32xf32>
    %c116 = arith.constant 116 : index
    %174 = memref.load %arg3[%c116] : memref<288xf32, #tpu.memory_space<smem>>
    %175 = vector.broadcast %174 : f32 to vector<16x32xf32>
    %176 = arith.mulf %175, %33 : vector<16x32xf32>
    %177 = arith.addf %173, %176 : vector<16x32xf32>
    %c144 = arith.constant 144 : index
    %178 = memref.load %arg3[%c144] : memref<288xf32, #tpu.memory_space<smem>>
    %179 = vector.broadcast %178 : f32 to vector<16x32xf32>
    %180 = arith.mulf %179, %17 : vector<16x32xf32>
    %181 = arith.addf %9, %180 : vector<16x32xf32>
    %c145 = arith.constant 145 : index
    %182 = memref.load %arg3[%c145] : memref<288xf32, #tpu.memory_space<smem>>
    %183 = vector.broadcast %182 : f32 to vector<16x32xf32>
    %184 = arith.mulf %183, %19 : vector<16x32xf32>
    %185 = arith.addf %181, %184 : vector<16x32xf32>
    %c146 = arith.constant 146 : index
    %186 = memref.load %arg3[%c146] : memref<288xf32, #tpu.memory_space<smem>>
    %187 = vector.broadcast %186 : f32 to vector<16x32xf32>
    %188 = arith.mulf %187, %21 : vector<16x32xf32>
    %189 = arith.addf %185, %188 : vector<16x32xf32>
    %c147 = arith.constant 147 : index
    %190 = memref.load %arg3[%c147] : memref<288xf32, #tpu.memory_space<smem>>
    %191 = vector.broadcast %190 : f32 to vector<16x32xf32>
    %192 = arith.mulf %191, %23 : vector<16x32xf32>
    %193 = arith.addf %189, %192 : vector<16x32xf32>
    %c148 = arith.constant 148 : index
    %194 = memref.load %arg3[%c148] : memref<288xf32, #tpu.memory_space<smem>>
    %195 = vector.broadcast %194 : f32 to vector<16x32xf32>
    %196 = arith.mulf %195, %25 : vector<16x32xf32>
    %197 = arith.addf %193, %196 : vector<16x32xf32>
    %c149 = arith.constant 149 : index
    %198 = memref.load %arg3[%c149] : memref<288xf32, #tpu.memory_space<smem>>
    %199 = vector.broadcast %198 : f32 to vector<16x32xf32>
    %200 = arith.mulf %199, %27 : vector<16x32xf32>
    %201 = arith.addf %197, %200 : vector<16x32xf32>
    %c150 = arith.constant 150 : index
    %202 = memref.load %arg3[%c150] : memref<288xf32, #tpu.memory_space<smem>>
    %203 = vector.broadcast %202 : f32 to vector<16x32xf32>
    %204 = arith.mulf %203, %29 : vector<16x32xf32>
    %205 = arith.addf %201, %204 : vector<16x32xf32>
    %c151 = arith.constant 151 : index
    %206 = memref.load %arg3[%c151] : memref<288xf32, #tpu.memory_space<smem>>
    %207 = vector.broadcast %206 : f32 to vector<16x32xf32>
    %208 = arith.mulf %207, %31 : vector<16x32xf32>
    %209 = arith.addf %205, %208 : vector<16x32xf32>
    %c152 = arith.constant 152 : index
    %210 = memref.load %arg3[%c152] : memref<288xf32, #tpu.memory_space<smem>>
    %211 = vector.broadcast %210 : f32 to vector<16x32xf32>
    %212 = arith.mulf %211, %33 : vector<16x32xf32>
    %213 = arith.addf %209, %212 : vector<16x32xf32>
    %c180 = arith.constant 180 : index
    %214 = memref.load %arg3[%c180] : memref<288xf32, #tpu.memory_space<smem>>
    %215 = vector.broadcast %214 : f32 to vector<16x32xf32>
    %216 = arith.mulf %215, %17 : vector<16x32xf32>
    %217 = arith.addf %11, %216 : vector<16x32xf32>
    %c181 = arith.constant 181 : index
    %218 = memref.load %arg3[%c181] : memref<288xf32, #tpu.memory_space<smem>>
    %219 = vector.broadcast %218 : f32 to vector<16x32xf32>
    %220 = arith.mulf %219, %19 : vector<16x32xf32>
    %221 = arith.addf %217, %220 : vector<16x32xf32>
    %c182 = arith.constant 182 : index
    %222 = memref.load %arg3[%c182] : memref<288xf32, #tpu.memory_space<smem>>
    %223 = vector.broadcast %222 : f32 to vector<16x32xf32>
    %224 = arith.mulf %223, %21 : vector<16x32xf32>
    %225 = arith.addf %221, %224 : vector<16x32xf32>
    %c183 = arith.constant 183 : index
    %226 = memref.load %arg3[%c183] : memref<288xf32, #tpu.memory_space<smem>>
    %227 = vector.broadcast %226 : f32 to vector<16x32xf32>
    %228 = arith.mulf %227, %23 : vector<16x32xf32>
    %229 = arith.addf %225, %228 : vector<16x32xf32>
    %c184 = arith.constant 184 : index
    %230 = memref.load %arg3[%c184] : memref<288xf32, #tpu.memory_space<smem>>
    %231 = vector.broadcast %230 : f32 to vector<16x32xf32>
    %232 = arith.mulf %231, %25 : vector<16x32xf32>
    %233 = arith.addf %229, %232 : vector<16x32xf32>
    %c185 = arith.constant 185 : index
    %234 = memref.load %arg3[%c185] : memref<288xf32, #tpu.memory_space<smem>>
    %235 = vector.broadcast %234 : f32 to vector<16x32xf32>
    %236 = arith.mulf %235, %27 : vector<16x32xf32>
    %237 = arith.addf %233, %236 : vector<16x32xf32>
    %c186 = arith.constant 186 : index
    %238 = memref.load %arg3[%c186] : memref<288xf32, #tpu.memory_space<smem>>
    %239 = vector.broadcast %238 : f32 to vector<16x32xf32>
    %240 = arith.mulf %239, %29 : vector<16x32xf32>
    %241 = arith.addf %237, %240 : vector<16x32xf32>
    %c187 = arith.constant 187 : index
    %242 = memref.load %arg3[%c187] : memref<288xf32, #tpu.memory_space<smem>>
    %243 = vector.broadcast %242 : f32 to vector<16x32xf32>
    %244 = arith.mulf %243, %31 : vector<16x32xf32>
    %245 = arith.addf %241, %244 : vector<16x32xf32>
    %c188 = arith.constant 188 : index
    %246 = memref.load %arg3[%c188] : memref<288xf32, #tpu.memory_space<smem>>
    %247 = vector.broadcast %246 : f32 to vector<16x32xf32>
    %248 = arith.mulf %247, %33 : vector<16x32xf32>
    %249 = arith.addf %245, %248 : vector<16x32xf32>
    %c216 = arith.constant 216 : index
    %250 = memref.load %arg3[%c216] : memref<288xf32, #tpu.memory_space<smem>>
    %251 = vector.broadcast %250 : f32 to vector<16x32xf32>
    %252 = arith.mulf %251, %17 : vector<16x32xf32>
    %253 = arith.addf %13, %252 : vector<16x32xf32>
    %c217 = arith.constant 217 : index
    %254 = memref.load %arg3[%c217] : memref<288xf32, #tpu.memory_space<smem>>
    %255 = vector.broadcast %254 : f32 to vector<16x32xf32>
    %256 = arith.mulf %255, %19 : vector<16x32xf32>
    %257 = arith.addf %253, %256 : vector<16x32xf32>
    %c218 = arith.constant 218 : index
    %258 = memref.load %arg3[%c218] : memref<288xf32, #tpu.memory_space<smem>>
    %259 = vector.broadcast %258 : f32 to vector<16x32xf32>
    %260 = arith.mulf %259, %21 : vector<16x32xf32>
    %261 = arith.addf %257, %260 : vector<16x32xf32>
    %c219 = arith.constant 219 : index
    %262 = memref.load %arg3[%c219] : memref<288xf32, #tpu.memory_space<smem>>
    %263 = vector.broadcast %262 : f32 to vector<16x32xf32>
    %264 = arith.mulf %263, %23 : vector<16x32xf32>
    %265 = arith.addf %261, %264 : vector<16x32xf32>
    %c220 = arith.constant 220 : index
    %266 = memref.load %arg3[%c220] : memref<288xf32, #tpu.memory_space<smem>>
    %267 = vector.broadcast %266 : f32 to vector<16x32xf32>
    %268 = arith.mulf %267, %25 : vector<16x32xf32>
    %269 = arith.addf %265, %268 : vector<16x32xf32>
    %c221 = arith.constant 221 : index
    %270 = memref.load %arg3[%c221] : memref<288xf32, #tpu.memory_space<smem>>
    %271 = vector.broadcast %270 : f32 to vector<16x32xf32>
    %272 = arith.mulf %271, %27 : vector<16x32xf32>
    %273 = arith.addf %269, %272 : vector<16x32xf32>
    %c222 = arith.constant 222 : index
    %274 = memref.load %arg3[%c222] : memref<288xf32, #tpu.memory_space<smem>>
    %275 = vector.broadcast %274 : f32 to vector<16x32xf32>
    %276 = arith.mulf %275, %29 : vector<16x32xf32>
    %277 = arith.addf %273, %276 : vector<16x32xf32>
    %c223 = arith.constant 223 : index
    %278 = memref.load %arg3[%c223] : memref<288xf32, #tpu.memory_space<smem>>
    %279 = vector.broadcast %278 : f32 to vector<16x32xf32>
    %280 = arith.mulf %279, %31 : vector<16x32xf32>
    %281 = arith.addf %277, %280 : vector<16x32xf32>
    %c224 = arith.constant 224 : index
    %282 = memref.load %arg3[%c224] : memref<288xf32, #tpu.memory_space<smem>>
    %283 = vector.broadcast %282 : f32 to vector<16x32xf32>
    %284 = arith.mulf %283, %33 : vector<16x32xf32>
    %285 = arith.addf %281, %284 : vector<16x32xf32>
    %c252 = arith.constant 252 : index
    %286 = memref.load %arg3[%c252] : memref<288xf32, #tpu.memory_space<smem>>
    %287 = vector.broadcast %286 : f32 to vector<16x32xf32>
    %288 = arith.mulf %287, %17 : vector<16x32xf32>
    %289 = arith.addf %15, %288 : vector<16x32xf32>
    %c253 = arith.constant 253 : index
    %290 = memref.load %arg3[%c253] : memref<288xf32, #tpu.memory_space<smem>>
    %291 = vector.broadcast %290 : f32 to vector<16x32xf32>
    %292 = arith.mulf %291, %19 : vector<16x32xf32>
    %293 = arith.addf %289, %292 : vector<16x32xf32>
    %c254 = arith.constant 254 : index
    %294 = memref.load %arg3[%c254] : memref<288xf32, #tpu.memory_space<smem>>
    %295 = vector.broadcast %294 : f32 to vector<16x32xf32>
    %296 = arith.mulf %295, %21 : vector<16x32xf32>
    %297 = arith.addf %293, %296 : vector<16x32xf32>
    %c255 = arith.constant 255 : index
    %298 = memref.load %arg3[%c255] : memref<288xf32, #tpu.memory_space<smem>>
    %299 = vector.broadcast %298 : f32 to vector<16x32xf32>
    %300 = arith.mulf %299, %23 : vector<16x32xf32>
    %301 = arith.addf %297, %300 : vector<16x32xf32>
    %c256 = arith.constant 256 : index
    %302 = memref.load %arg3[%c256] : memref<288xf32, #tpu.memory_space<smem>>
    %303 = vector.broadcast %302 : f32 to vector<16x32xf32>
    %304 = arith.mulf %303, %25 : vector<16x32xf32>
    %305 = arith.addf %301, %304 : vector<16x32xf32>
    %c257 = arith.constant 257 : index
    %306 = memref.load %arg3[%c257] : memref<288xf32, #tpu.memory_space<smem>>
    %307 = vector.broadcast %306 : f32 to vector<16x32xf32>
    %308 = arith.mulf %307, %27 : vector<16x32xf32>
    %309 = arith.addf %305, %308 : vector<16x32xf32>
    %c258 = arith.constant 258 : index
    %310 = memref.load %arg3[%c258] : memref<288xf32, #tpu.memory_space<smem>>
    %311 = vector.broadcast %310 : f32 to vector<16x32xf32>
    %312 = arith.mulf %311, %29 : vector<16x32xf32>
    %313 = arith.addf %309, %312 : vector<16x32xf32>
    %c259 = arith.constant 259 : index
    %314 = memref.load %arg3[%c259] : memref<288xf32, #tpu.memory_space<smem>>
    %315 = vector.broadcast %314 : f32 to vector<16x32xf32>
    %316 = arith.mulf %315, %31 : vector<16x32xf32>
    %317 = arith.addf %313, %316 : vector<16x32xf32>
    %c260 = arith.constant 260 : index
    %318 = memref.load %arg3[%c260] : memref<288xf32, #tpu.memory_space<smem>>
    %319 = vector.broadcast %318 : f32 to vector<16x32xf32>
    %320 = arith.mulf %319, %33 : vector<16x32xf32>
    %321 = arith.addf %317, %320 : vector<16x32xf32>
    %c0_44 = arith.constant 0 : index
    %c1_45 = arith.constant 1 : index
    %c0_46 = arith.constant 0 : index
    %c0_47 = arith.constant 0 : index
    %322 = vector.load %arg2[%c0_44, %c1_45, %c0_46, %c0_47] : memref<1x4x18x34xf32, #tpu.memory_space<vmem>>, vector<1x1x16x32xf32>
    %323 = vector.shape_cast %322 : vector<1x1x16x32xf32> to vector<16x32xf32>
    %c0_48 = arith.constant 0 : index
    %c1_49 = arith.constant 1 : index
    %c0_50 = arith.constant 0 : index
    %c1_51 = arith.constant 1 : index
    %324 = vector.load %arg2[%c0_48, %c1_49, %c0_50, %c1_51] : memref<1x4x18x34xf32, #tpu.memory_space<vmem>>, vector<1x1x16x32xf32>
    %325 = vector.shape_cast %324 : vector<1x1x16x32xf32> to vector<16x32xf32>
    %c0_52 = arith.constant 0 : index
    %c1_53 = arith.constant 1 : index
    %c0_54 = arith.constant 0 : index
    %c2_55 = arith.constant 2 : index
    %326 = vector.load %arg2[%c0_52, %c1_53, %c0_54, %c2_55] : memref<1x4x18x34xf32, #tpu.memory_space<vmem>>, vector<1x1x16x32xf32>
    %327 = vector.shape_cast %326 : vector<1x1x16x32xf32> to vector<16x32xf32>
    %c0_56 = arith.constant 0 : index
    %c1_57 = arith.constant 1 : index
    %c1_58 = arith.constant 1 : index
    %c0_59 = arith.constant 0 : index
    %328 = vector.load %arg2[%c0_56, %c1_57, %c1_58, %c0_59] : memref<1x4x18x34xf32, #tpu.memory_space<vmem>>, vector<1x1x16x32xf32>
    %329 = vector.shape_cast %328 : vector<1x1x16x32xf32> to vector<16x32xf32>
    %c0_60 = arith.constant 0 : index
    %c1_61 = arith.constant 1 : index
    %c1_62 = arith.constant 1 : index
    %c1_63 = arith.constant 1 : index
    %330 = vector.load %arg2[%c0_60, %c1_61, %c1_62, %c1_63] : memref<1x4x18x34xf32, #tpu.memory_space<vmem>>, vector<1x1x16x32xf32>
    %331 = vector.shape_cast %330 : vector<1x1x16x32xf32> to vector<16x32xf32>
    %c0_64 = arith.constant 0 : index
    %c1_65 = arith.constant 1 : index
    %c1_66 = arith.constant 1 : index
    %c2_67 = arith.constant 2 : index
    %332 = vector.load %arg2[%c0_64, %c1_65, %c1_66, %c2_67] : memref<1x4x18x34xf32, #tpu.memory_space<vmem>>, vector<1x1x16x32xf32>
    %333 = vector.shape_cast %332 : vector<1x1x16x32xf32> to vector<16x32xf32>
    %c0_68 = arith.constant 0 : index
    %c1_69 = arith.constant 1 : index
    %c2_70 = arith.constant 2 : index
    %c0_71 = arith.constant 0 : index
    %334 = vector.load %arg2[%c0_68, %c1_69, %c2_70, %c0_71] : memref<1x4x18x34xf32, #tpu.memory_space<vmem>>, vector<1x1x16x32xf32>
    %335 = vector.shape_cast %334 : vector<1x1x16x32xf32> to vector<16x32xf32>
    %c0_72 = arith.constant 0 : index
    %c1_73 = arith.constant 1 : index
    %c2_74 = arith.constant 2 : index
    %c1_75 = arith.constant 1 : index
    %336 = vector.load %arg2[%c0_72, %c1_73, %c2_74, %c1_75] : memref<1x4x18x34xf32, #tpu.memory_space<vmem>>, vector<1x1x16x32xf32>
    %337 = vector.shape_cast %336 : vector<1x1x16x32xf32> to vector<16x32xf32>
    %c0_76 = arith.constant 0 : index
    %c1_77 = arith.constant 1 : index
    %c2_78 = arith.constant 2 : index
    %c2_79 = arith.constant 2 : index
    %338 = vector.load %arg2[%c0_76, %c1_77, %c2_78, %c2_79] : memref<1x4x18x34xf32, #tpu.memory_space<vmem>>, vector<1x1x16x32xf32>
    %339 = vector.shape_cast %338 : vector<1x1x16x32xf32> to vector<16x32xf32>
    %c9 = arith.constant 9 : index
    %340 = memref.load %arg3[%c9] : memref<288xf32, #tpu.memory_space<smem>>
    %341 = vector.broadcast %340 : f32 to vector<16x32xf32>
    %342 = arith.mulf %341, %323 : vector<16x32xf32>
    %343 = arith.addf %69, %342 : vector<16x32xf32>
    %c10 = arith.constant 10 : index
    %344 = memref.load %arg3[%c10] : memref<288xf32, #tpu.memory_space<smem>>
    %345 = vector.broadcast %344 : f32 to vector<16x32xf32>
    %346 = arith.mulf %345, %325 : vector<16x32xf32>
    %347 = arith.addf %343, %346 : vector<16x32xf32>
    %c11 = arith.constant 11 : index
    %348 = memref.load %arg3[%c11] : memref<288xf32, #tpu.memory_space<smem>>
    %349 = vector.broadcast %348 : f32 to vector<16x32xf32>
    %350 = arith.mulf %349, %327 : vector<16x32xf32>
    %351 = arith.addf %347, %350 : vector<16x32xf32>
    %c12 = arith.constant 12 : index
    %352 = memref.load %arg3[%c12] : memref<288xf32, #tpu.memory_space<smem>>
    %353 = vector.broadcast %352 : f32 to vector<16x32xf32>
    %354 = arith.mulf %353, %329 : vector<16x32xf32>
    %355 = arith.addf %351, %354 : vector<16x32xf32>
    %c13 = arith.constant 13 : index
    %356 = memref.load %arg3[%c13] : memref<288xf32, #tpu.memory_space<smem>>
    %357 = vector.broadcast %356 : f32 to vector<16x32xf32>
    %358 = arith.mulf %357, %331 : vector<16x32xf32>
    %359 = arith.addf %355, %358 : vector<16x32xf32>
    %c14 = arith.constant 14 : index
    %360 = memref.load %arg3[%c14] : memref<288xf32, #tpu.memory_space<smem>>
    %361 = vector.broadcast %360 : f32 to vector<16x32xf32>
    %362 = arith.mulf %361, %333 : vector<16x32xf32>
    %363 = arith.addf %359, %362 : vector<16x32xf32>
    %c15 = arith.constant 15 : index
    %364 = memref.load %arg3[%c15] : memref<288xf32, #tpu.memory_space<smem>>
    %365 = vector.broadcast %364 : f32 to vector<16x32xf32>
    %366 = arith.mulf %365, %335 : vector<16x32xf32>
    %367 = arith.addf %363, %366 : vector<16x32xf32>
    %c16 = arith.constant 16 : index
    %368 = memref.load %arg3[%c16] : memref<288xf32, #tpu.memory_space<smem>>
    %369 = vector.broadcast %368 : f32 to vector<16x32xf32>
    %370 = arith.mulf %369, %337 : vector<16x32xf32>
    %371 = arith.addf %367, %370 : vector<16x32xf32>
    %c17 = arith.constant 17 : index
    %372 = memref.load %arg3[%c17] : memref<288xf32, #tpu.memory_space<smem>>
    %373 = vector.broadcast %372 : f32 to vector<16x32xf32>
    %374 = arith.mulf %373, %339 : vector<16x32xf32>
    %375 = arith.addf %371, %374 : vector<16x32xf32>
    %c45 = arith.constant 45 : index
    %376 = memref.load %arg3[%c45] : memref<288xf32, #tpu.memory_space<smem>>
    %377 = vector.broadcast %376 : f32 to vector<16x32xf32>
    %378 = arith.mulf %377, %323 : vector<16x32xf32>
    %379 = arith.addf %105, %378 : vector<16x32xf32>
    %c46 = arith.constant 46 : index
    %380 = memref.load %arg3[%c46] : memref<288xf32, #tpu.memory_space<smem>>
    %381 = vector.broadcast %380 : f32 to vector<16x32xf32>
    %382 = arith.mulf %381, %325 : vector<16x32xf32>
    %383 = arith.addf %379, %382 : vector<16x32xf32>
    %c47 = arith.constant 47 : index
    %384 = memref.load %arg3[%c47] : memref<288xf32, #tpu.memory_space<smem>>
    %385 = vector.broadcast %384 : f32 to vector<16x32xf32>
    %386 = arith.mulf %385, %327 : vector<16x32xf32>
    %387 = arith.addf %383, %386 : vector<16x32xf32>
    %c48 = arith.constant 48 : index
    %388 = memref.load %arg3[%c48] : memref<288xf32, #tpu.memory_space<smem>>
    %389 = vector.broadcast %388 : f32 to vector<16x32xf32>
    %390 = arith.mulf %389, %329 : vector<16x32xf32>
    %391 = arith.addf %387, %390 : vector<16x32xf32>
    %c49 = arith.constant 49 : index
    %392 = memref.load %arg3[%c49] : memref<288xf32, #tpu.memory_space<smem>>
    %393 = vector.broadcast %392 : f32 to vector<16x32xf32>
    %394 = arith.mulf %393, %331 : vector<16x32xf32>
    %395 = arith.addf %391, %394 : vector<16x32xf32>
    %c50 = arith.constant 50 : index
    %396 = memref.load %arg3[%c50] : memref<288xf32, #tpu.memory_space<smem>>
    %397 = vector.broadcast %396 : f32 to vector<16x32xf32>
    %398 = arith.mulf %397, %333 : vector<16x32xf32>
    %399 = arith.addf %395, %398 : vector<16x32xf32>
    %c51 = arith.constant 51 : index
    %400 = memref.load %arg3[%c51] : memref<288xf32, #tpu.memory_space<smem>>
    %401 = vector.broadcast %400 : f32 to vector<16x32xf32>
    %402 = arith.mulf %401, %335 : vector<16x32xf32>
    %403 = arith.addf %399, %402 : vector<16x32xf32>
    %c52 = arith.constant 52 : index
    %404 = memref.load %arg3[%c52] : memref<288xf32, #tpu.memory_space<smem>>
    %405 = vector.broadcast %404 : f32 to vector<16x32xf32>
    %406 = arith.mulf %405, %337 : vector<16x32xf32>
    %407 = arith.addf %403, %406 : vector<16x32xf32>
    %c53 = arith.constant 53 : index
    %408 = memref.load %arg3[%c53] : memref<288xf32, #tpu.memory_space<smem>>
    %409 = vector.broadcast %408 : f32 to vector<16x32xf32>
    %410 = arith.mulf %409, %339 : vector<16x32xf32>
    %411 = arith.addf %407, %410 : vector<16x32xf32>
    %c81 = arith.constant 81 : index
    %412 = memref.load %arg3[%c81] : memref<288xf32, #tpu.memory_space<smem>>
    %413 = vector.broadcast %412 : f32 to vector<16x32xf32>
    %414 = arith.mulf %413, %323 : vector<16x32xf32>
    %415 = arith.addf %141, %414 : vector<16x32xf32>
    %c82 = arith.constant 82 : index
    %416 = memref.load %arg3[%c82] : memref<288xf32, #tpu.memory_space<smem>>
    %417 = vector.broadcast %416 : f32 to vector<16x32xf32>
    %418 = arith.mulf %417, %325 : vector<16x32xf32>
    %419 = arith.addf %415, %418 : vector<16x32xf32>
    %c83 = arith.constant 83 : index
    %420 = memref.load %arg3[%c83] : memref<288xf32, #tpu.memory_space<smem>>
    %421 = vector.broadcast %420 : f32 to vector<16x32xf32>
    %422 = arith.mulf %421, %327 : vector<16x32xf32>
    %423 = arith.addf %419, %422 : vector<16x32xf32>
    %c84 = arith.constant 84 : index
    %424 = memref.load %arg3[%c84] : memref<288xf32, #tpu.memory_space<smem>>
    %425 = vector.broadcast %424 : f32 to vector<16x32xf32>
    %426 = arith.mulf %425, %329 : vector<16x32xf32>
    %427 = arith.addf %423, %426 : vector<16x32xf32>
    %c85 = arith.constant 85 : index
    %428 = memref.load %arg3[%c85] : memref<288xf32, #tpu.memory_space<smem>>
    %429 = vector.broadcast %428 : f32 to vector<16x32xf32>
    %430 = arith.mulf %429, %331 : vector<16x32xf32>
    %431 = arith.addf %427, %430 : vector<16x32xf32>
    %c86 = arith.constant 86 : index
    %432 = memref.load %arg3[%c86] : memref<288xf32, #tpu.memory_space<smem>>
    %433 = vector.broadcast %432 : f32 to vector<16x32xf32>
    %434 = arith.mulf %433, %333 : vector<16x32xf32>
    %435 = arith.addf %431, %434 : vector<16x32xf32>
    %c87 = arith.constant 87 : index
    %436 = memref.load %arg3[%c87] : memref<288xf32, #tpu.memory_space<smem>>
    %437 = vector.broadcast %436 : f32 to vector<16x32xf32>
    %438 = arith.mulf %437, %335 : vector<16x32xf32>
    %439 = arith.addf %435, %438 : vector<16x32xf32>
    %c88 = arith.constant 88 : index
    %440 = memref.load %arg3[%c88] : memref<288xf32, #tpu.memory_space<smem>>
    %441 = vector.broadcast %440 : f32 to vector<16x32xf32>
    %442 = arith.mulf %441, %337 : vector<16x32xf32>
    %443 = arith.addf %439, %442 : vector<16x32xf32>
    %c89 = arith.constant 89 : index
    %444 = memref.load %arg3[%c89] : memref<288xf32, #tpu.memory_space<smem>>
    %445 = vector.broadcast %444 : f32 to vector<16x32xf32>
    %446 = arith.mulf %445, %339 : vector<16x32xf32>
    %447 = arith.addf %443, %446 : vector<16x32xf32>
    %c117 = arith.constant 117 : index
    %448 = memref.load %arg3[%c117] : memref<288xf32, #tpu.memory_space<smem>>
    %449 = vector.broadcast %448 : f32 to vector<16x32xf32>
    %450 = arith.mulf %449, %323 : vector<16x32xf32>
    %451 = arith.addf %177, %450 : vector<16x32xf32>
    %c118 = arith.constant 118 : index
    %452 = memref.load %arg3[%c118] : memref<288xf32, #tpu.memory_space<smem>>
    %453 = vector.broadcast %452 : f32 to vector<16x32xf32>
    %454 = arith.mulf %453, %325 : vector<16x32xf32>
    %455 = arith.addf %451, %454 : vector<16x32xf32>
    %c119 = arith.constant 119 : index
    %456 = memref.load %arg3[%c119] : memref<288xf32, #tpu.memory_space<smem>>
    %457 = vector.broadcast %456 : f32 to vector<16x32xf32>
    %458 = arith.mulf %457, %327 : vector<16x32xf32>
    %459 = arith.addf %455, %458 : vector<16x32xf32>
    %c120 = arith.constant 120 : index
    %460 = memref.load %arg3[%c120] : memref<288xf32, #tpu.memory_space<smem>>
    %461 = vector.broadcast %460 : f32 to vector<16x32xf32>
    %462 = arith.mulf %461, %329 : vector<16x32xf32>
    %463 = arith.addf %459, %462 : vector<16x32xf32>
    %c121 = arith.constant 121 : index
    %464 = memref.load %arg3[%c121] : memref<288xf32, #tpu.memory_space<smem>>
    %465 = vector.broadcast %464 : f32 to vector<16x32xf32>
    %466 = arith.mulf %465, %331 : vector<16x32xf32>
    %467 = arith.addf %463, %466 : vector<16x32xf32>
    %c122 = arith.constant 122 : index
    %468 = memref.load %arg3[%c122] : memref<288xf32, #tpu.memory_space<smem>>
    %469 = vector.broadcast %468 : f32 to vector<16x32xf32>
    %470 = arith.mulf %469, %333 : vector<16x32xf32>
    %471 = arith.addf %467, %470 : vector<16x32xf32>
    %c123 = arith.constant 123 : index
    %472 = memref.load %arg3[%c123] : memref<288xf32, #tpu.memory_space<smem>>
    %473 = vector.broadcast %472 : f32 to vector<16x32xf32>
    %474 = arith.mulf %473, %335 : vector<16x32xf32>
    %475 = arith.addf %471, %474 : vector<16x32xf32>
    %c124 = arith.constant 124 : index
    %476 = memref.load %arg3[%c124] : memref<288xf32, #tpu.memory_space<smem>>
    %477 = vector.broadcast %476 : f32 to vector<16x32xf32>
    %478 = arith.mulf %477, %337 : vector<16x32xf32>
    %479 = arith.addf %475, %478 : vector<16x32xf32>
    %c125 = arith.constant 125 : index
    %480 = memref.load %arg3[%c125] : memref<288xf32, #tpu.memory_space<smem>>
    %481 = vector.broadcast %480 : f32 to vector<16x32xf32>
    %482 = arith.mulf %481, %339 : vector<16x32xf32>
    %483 = arith.addf %479, %482 : vector<16x32xf32>
    %c153 = arith.constant 153 : index
    %484 = memref.load %arg3[%c153] : memref<288xf32, #tpu.memory_space<smem>>
    %485 = vector.broadcast %484 : f32 to vector<16x32xf32>
    %486 = arith.mulf %485, %323 : vector<16x32xf32>
    %487 = arith.addf %213, %486 : vector<16x32xf32>
    %c154 = arith.constant 154 : index
    %488 = memref.load %arg3[%c154] : memref<288xf32, #tpu.memory_space<smem>>
    %489 = vector.broadcast %488 : f32 to vector<16x32xf32>
    %490 = arith.mulf %489, %325 : vector<16x32xf32>
    %491 = arith.addf %487, %490 : vector<16x32xf32>
    %c155 = arith.constant 155 : index
    %492 = memref.load %arg3[%c155] : memref<288xf32, #tpu.memory_space<smem>>
    %493 = vector.broadcast %492 : f32 to vector<16x32xf32>
    %494 = arith.mulf %493, %327 : vector<16x32xf32>
    %495 = arith.addf %491, %494 : vector<16x32xf32>
    %c156 = arith.constant 156 : index
    %496 = memref.load %arg3[%c156] : memref<288xf32, #tpu.memory_space<smem>>
    %497 = vector.broadcast %496 : f32 to vector<16x32xf32>
    %498 = arith.mulf %497, %329 : vector<16x32xf32>
    %499 = arith.addf %495, %498 : vector<16x32xf32>
    %c157 = arith.constant 157 : index
    %500 = memref.load %arg3[%c157] : memref<288xf32, #tpu.memory_space<smem>>
    %501 = vector.broadcast %500 : f32 to vector<16x32xf32>
    %502 = arith.mulf %501, %331 : vector<16x32xf32>
    %503 = arith.addf %499, %502 : vector<16x32xf32>
    %c158 = arith.constant 158 : index
    %504 = memref.load %arg3[%c158] : memref<288xf32, #tpu.memory_space<smem>>
    %505 = vector.broadcast %504 : f32 to vector<16x32xf32>
    %506 = arith.mulf %505, %333 : vector<16x32xf32>
    %507 = arith.addf %503, %506 : vector<16x32xf32>
    %c159 = arith.constant 159 : index
    %508 = memref.load %arg3[%c159] : memref<288xf32, #tpu.memory_space<smem>>
    %509 = vector.broadcast %508 : f32 to vector<16x32xf32>
    %510 = arith.mulf %509, %335 : vector<16x32xf32>
    %511 = arith.addf %507, %510 : vector<16x32xf32>
    %c160 = arith.constant 160 : index
    %512 = memref.load %arg3[%c160] : memref<288xf32, #tpu.memory_space<smem>>
    %513 = vector.broadcast %512 : f32 to vector<16x32xf32>
    %514 = arith.mulf %513, %337 : vector<16x32xf32>
    %515 = arith.addf %511, %514 : vector<16x32xf32>
    %c161 = arith.constant 161 : index
    %516 = memref.load %arg3[%c161] : memref<288xf32, #tpu.memory_space<smem>>
    %517 = vector.broadcast %516 : f32 to vector<16x32xf32>
    %518 = arith.mulf %517, %339 : vector<16x32xf32>
    %519 = arith.addf %515, %518 : vector<16x32xf32>
    %c189 = arith.constant 189 : index
    %520 = memref.load %arg3[%c189] : memref<288xf32, #tpu.memory_space<smem>>
    %521 = vector.broadcast %520 : f32 to vector<16x32xf32>
    %522 = arith.mulf %521, %323 : vector<16x32xf32>
    %523 = arith.addf %249, %522 : vector<16x32xf32>
    %c190 = arith.constant 190 : index
    %524 = memref.load %arg3[%c190] : memref<288xf32, #tpu.memory_space<smem>>
    %525 = vector.broadcast %524 : f32 to vector<16x32xf32>
    %526 = arith.mulf %525, %325 : vector<16x32xf32>
    %527 = arith.addf %523, %526 : vector<16x32xf32>
    %c191 = arith.constant 191 : index
    %528 = memref.load %arg3[%c191] : memref<288xf32, #tpu.memory_space<smem>>
    %529 = vector.broadcast %528 : f32 to vector<16x32xf32>
    %530 = arith.mulf %529, %327 : vector<16x32xf32>
    %531 = arith.addf %527, %530 : vector<16x32xf32>
    %c192 = arith.constant 192 : index
    %532 = memref.load %arg3[%c192] : memref<288xf32, #tpu.memory_space<smem>>
    %533 = vector.broadcast %532 : f32 to vector<16x32xf32>
    %534 = arith.mulf %533, %329 : vector<16x32xf32>
    %535 = arith.addf %531, %534 : vector<16x32xf32>
    %c193 = arith.constant 193 : index
    %536 = memref.load %arg3[%c193] : memref<288xf32, #tpu.memory_space<smem>>
    %537 = vector.broadcast %536 : f32 to vector<16x32xf32>
    %538 = arith.mulf %537, %331 : vector<16x32xf32>
    %539 = arith.addf %535, %538 : vector<16x32xf32>
    %c194 = arith.constant 194 : index
    %540 = memref.load %arg3[%c194] : memref<288xf32, #tpu.memory_space<smem>>
    %541 = vector.broadcast %540 : f32 to vector<16x32xf32>
    %542 = arith.mulf %541, %333 : vector<16x32xf32>
    %543 = arith.addf %539, %542 : vector<16x32xf32>
    %c195 = arith.constant 195 : index
    %544 = memref.load %arg3[%c195] : memref<288xf32, #tpu.memory_space<smem>>
    %545 = vector.broadcast %544 : f32 to vector<16x32xf32>
    %546 = arith.mulf %545, %335 : vector<16x32xf32>
    %547 = arith.addf %543, %546 : vector<16x32xf32>
    %c196 = arith.constant 196 : index
    %548 = memref.load %arg3[%c196] : memref<288xf32, #tpu.memory_space<smem>>
    %549 = vector.broadcast %548 : f32 to vector<16x32xf32>
    %550 = arith.mulf %549, %337 : vector<16x32xf32>
    %551 = arith.addf %547, %550 : vector<16x32xf32>
    %c197 = arith.constant 197 : index
    %552 = memref.load %arg3[%c197] : memref<288xf32, #tpu.memory_space<smem>>
    %553 = vector.broadcast %552 : f32 to vector<16x32xf32>
    %554 = arith.mulf %553, %339 : vector<16x32xf32>
    %555 = arith.addf %551, %554 : vector<16x32xf32>
    %c225 = arith.constant 225 : index
    %556 = memref.load %arg3[%c225] : memref<288xf32, #tpu.memory_space<smem>>
    %557 = vector.broadcast %556 : f32 to vector<16x32xf32>
    %558 = arith.mulf %557, %323 : vector<16x32xf32>
    %559 = arith.addf %285, %558 : vector<16x32xf32>
    %c226 = arith.constant 226 : index
    %560 = memref.load %arg3[%c226] : memref<288xf32, #tpu.memory_space<smem>>
    %561 = vector.broadcast %560 : f32 to vector<16x32xf32>
    %562 = arith.mulf %561, %325 : vector<16x32xf32>
    %563 = arith.addf %559, %562 : vector<16x32xf32>
    %c227 = arith.constant 227 : index
    %564 = memref.load %arg3[%c227] : memref<288xf32, #tpu.memory_space<smem>>
    %565 = vector.broadcast %564 : f32 to vector<16x32xf32>
    %566 = arith.mulf %565, %327 : vector<16x32xf32>
    %567 = arith.addf %563, %566 : vector<16x32xf32>
    %c228 = arith.constant 228 : index
    %568 = memref.load %arg3[%c228] : memref<288xf32, #tpu.memory_space<smem>>
    %569 = vector.broadcast %568 : f32 to vector<16x32xf32>
    %570 = arith.mulf %569, %329 : vector<16x32xf32>
    %571 = arith.addf %567, %570 : vector<16x32xf32>
    %c229 = arith.constant 229 : index
    %572 = memref.load %arg3[%c229] : memref<288xf32, #tpu.memory_space<smem>>
    %573 = vector.broadcast %572 : f32 to vector<16x32xf32>
    %574 = arith.mulf %573, %331 : vector<16x32xf32>
    %575 = arith.addf %571, %574 : vector<16x32xf32>
    %c230 = arith.constant 230 : index
    %576 = memref.load %arg3[%c230] : memref<288xf32, #tpu.memory_space<smem>>
    %577 = vector.broadcast %576 : f32 to vector<16x32xf32>
    %578 = arith.mulf %577, %333 : vector<16x32xf32>
    %579 = arith.addf %575, %578 : vector<16x32xf32>
    %c231 = arith.constant 231 : index
    %580 = memref.load %arg3[%c231] : memref<288xf32, #tpu.memory_space<smem>>
    %581 = vector.broadcast %580 : f32 to vector<16x32xf32>
    %582 = arith.mulf %581, %335 : vector<16x32xf32>
    %583 = arith.addf %579, %582 : vector<16x32xf32>
    %c232 = arith.constant 232 : index
    %584 = memref.load %arg3[%c232] : memref<288xf32, #tpu.memory_space<smem>>
    %585 = vector.broadcast %584 : f32 to vector<16x32xf32>
    %586 = arith.mulf %585, %337 : vector<16x32xf32>
    %587 = arith.addf %583, %586 : vector<16x32xf32>
    %c233 = arith.constant 233 : index
    %588 = memref.load %arg3[%c233] : memref<288xf32, #tpu.memory_space<smem>>
    %589 = vector.broadcast %588 : f32 to vector<16x32xf32>
    %590 = arith.mulf %589, %339 : vector<16x32xf32>
    %591 = arith.addf %587, %590 : vector<16x32xf32>
    %c261 = arith.constant 261 : index
    %592 = memref.load %arg3[%c261] : memref<288xf32, #tpu.memory_space<smem>>
    %593 = vector.broadcast %592 : f32 to vector<16x32xf32>
    %594 = arith.mulf %593, %323 : vector<16x32xf32>
    %595 = arith.addf %321, %594 : vector<16x32xf32>
    %c262 = arith.constant 262 : index
    %596 = memref.load %arg3[%c262] : memref<288xf32, #tpu.memory_space<smem>>
    %597 = vector.broadcast %596 : f32 to vector<16x32xf32>
    %598 = arith.mulf %597, %325 : vector<16x32xf32>
    %599 = arith.addf %595, %598 : vector<16x32xf32>
    %c263 = arith.constant 263 : index
    %600 = memref.load %arg3[%c263] : memref<288xf32, #tpu.memory_space<smem>>
    %601 = vector.broadcast %600 : f32 to vector<16x32xf32>
    %602 = arith.mulf %601, %327 : vector<16x32xf32>
    %603 = arith.addf %599, %602 : vector<16x32xf32>
    %c264 = arith.constant 264 : index
    %604 = memref.load %arg3[%c264] : memref<288xf32, #tpu.memory_space<smem>>
    %605 = vector.broadcast %604 : f32 to vector<16x32xf32>
    %606 = arith.mulf %605, %329 : vector<16x32xf32>
    %607 = arith.addf %603, %606 : vector<16x32xf32>
    %c265 = arith.constant 265 : index
    %608 = memref.load %arg3[%c265] : memref<288xf32, #tpu.memory_space<smem>>
    %609 = vector.broadcast %608 : f32 to vector<16x32xf32>
    %610 = arith.mulf %609, %331 : vector<16x32xf32>
    %611 = arith.addf %607, %610 : vector<16x32xf32>
    %c266 = arith.constant 266 : index
    %612 = memref.load %arg3[%c266] : memref<288xf32, #tpu.memory_space<smem>>
    %613 = vector.broadcast %612 : f32 to vector<16x32xf32>
    %614 = arith.mulf %613, %333 : vector<16x32xf32>
    %615 = arith.addf %611, %614 : vector<16x32xf32>
    %c267 = arith.constant 267 : index
    %616 = memref.load %arg3[%c267] : memref<288xf32, #tpu.memory_space<smem>>
    %617 = vector.broadcast %616 : f32 to vector<16x32xf32>
    %618 = arith.mulf %617, %335 : vector<16x32xf32>
    %619 = arith.addf %615, %618 : vector<16x32xf32>
    %c268 = arith.constant 268 : index
    %620 = memref.load %arg3[%c268] : memref<288xf32, #tpu.memory_space<smem>>
    %621 = vector.broadcast %620 : f32 to vector<16x32xf32>
    %622 = arith.mulf %621, %337 : vector<16x32xf32>
    %623 = arith.addf %619, %622 : vector<16x32xf32>
    %c269 = arith.constant 269 : index
    %624 = memref.load %arg3[%c269] : memref<288xf32, #tpu.memory_space<smem>>
    %625 = vector.broadcast %624 : f32 to vector<16x32xf32>
    %626 = arith.mulf %625, %339 : vector<16x32xf32>
    %627 = arith.addf %623, %626 : vector<16x32xf32>
    %c0_80 = arith.constant 0 : index
    %c2_81 = arith.constant 2 : index
    %c0_82 = arith.constant 0 : index
    %c0_83 = arith.constant 0 : index
    %628 = vector.load %arg2[%c0_80, %c2_81, %c0_82, %c0_83] : memref<1x4x18x34xf32, #tpu.memory_space<vmem>>, vector<1x1x16x32xf32>
    %629 = vector.shape_cast %628 : vector<1x1x16x32xf32> to vector<16x32xf32>
    %c0_84 = arith.constant 0 : index
    %c2_85 = arith.constant 2 : index
    %c0_86 = arith.constant 0 : index
    %c1_87 = arith.constant 1 : index
    %630 = vector.load %arg2[%c0_84, %c2_85, %c0_86, %c1_87] : memref<1x4x18x34xf32, #tpu.memory_space<vmem>>, vector<1x1x16x32xf32>
    %631 = vector.shape_cast %630 : vector<1x1x16x32xf32> to vector<16x32xf32>
    %c0_88 = arith.constant 0 : index
    %c2_89 = arith.constant 2 : index
    %c0_90 = arith.constant 0 : index
    %c2_91 = arith.constant 2 : index
    %632 = vector.load %arg2[%c0_88, %c2_89, %c0_90, %c2_91] : memref<1x4x18x34xf32, #tpu.memory_space<vmem>>, vector<1x1x16x32xf32>
    %633 = vector.shape_cast %632 : vector<1x1x16x32xf32> to vector<16x32xf32>
    %c0_92 = arith.constant 0 : index
    %c2_93 = arith.constant 2 : index
    %c1_94 = arith.constant 1 : index
    %c0_95 = arith.constant 0 : index
    %634 = vector.load %arg2[%c0_92, %c2_93, %c1_94, %c0_95] : memref<1x4x18x34xf32, #tpu.memory_space<vmem>>, vector<1x1x16x32xf32>
    %635 = vector.shape_cast %634 : vector<1x1x16x32xf32> to vector<16x32xf32>
    %c0_96 = arith.constant 0 : index
    %c2_97 = arith.constant 2 : index
    %c1_98 = arith.constant 1 : index
    %c1_99 = arith.constant 1 : index
    %636 = vector.load %arg2[%c0_96, %c2_97, %c1_98, %c1_99] : memref<1x4x18x34xf32, #tpu.memory_space<vmem>>, vector<1x1x16x32xf32>
    %637 = vector.shape_cast %636 : vector<1x1x16x32xf32> to vector<16x32xf32>
    %c0_100 = arith.constant 0 : index
    %c2_101 = arith.constant 2 : index
    %c1_102 = arith.constant 1 : index
    %c2_103 = arith.constant 2 : index
    %638 = vector.load %arg2[%c0_100, %c2_101, %c1_102, %c2_103] : memref<1x4x18x34xf32, #tpu.memory_space<vmem>>, vector<1x1x16x32xf32>
    %639 = vector.shape_cast %638 : vector<1x1x16x32xf32> to vector<16x32xf32>
    %c0_104 = arith.constant 0 : index
    %c2_105 = arith.constant 2 : index
    %c2_106 = arith.constant 2 : index
    %c0_107 = arith.constant 0 : index
    %640 = vector.load %arg2[%c0_104, %c2_105, %c2_106, %c0_107] : memref<1x4x18x34xf32, #tpu.memory_space<vmem>>, vector<1x1x16x32xf32>
    %641 = vector.shape_cast %640 : vector<1x1x16x32xf32> to vector<16x32xf32>
    %c0_108 = arith.constant 0 : index
    %c2_109 = arith.constant 2 : index
    %c2_110 = arith.constant 2 : index
    %c1_111 = arith.constant 1 : index
    %642 = vector.load %arg2[%c0_108, %c2_109, %c2_110, %c1_111] : memref<1x4x18x34xf32, #tpu.memory_space<vmem>>, vector<1x1x16x32xf32>
    %643 = vector.shape_cast %642 : vector<1x1x16x32xf32> to vector<16x32xf32>
    %c0_112 = arith.constant 0 : index
    %c2_113 = arith.constant 2 : index
    %c2_114 = arith.constant 2 : index
    %c2_115 = arith.constant 2 : index
    %644 = vector.load %arg2[%c0_112, %c2_113, %c2_114, %c2_115] : memref<1x4x18x34xf32, #tpu.memory_space<vmem>>, vector<1x1x16x32xf32>
    %645 = vector.shape_cast %644 : vector<1x1x16x32xf32> to vector<16x32xf32>
    %c18 = arith.constant 18 : index
    %646 = memref.load %arg3[%c18] : memref<288xf32, #tpu.memory_space<smem>>
    %647 = vector.broadcast %646 : f32 to vector<16x32xf32>
    %648 = arith.mulf %647, %629 : vector<16x32xf32>
    %649 = arith.addf %375, %648 : vector<16x32xf32>
    %c19 = arith.constant 19 : index
    %650 = memref.load %arg3[%c19] : memref<288xf32, #tpu.memory_space<smem>>
    %651 = vector.broadcast %650 : f32 to vector<16x32xf32>
    %652 = arith.mulf %651, %631 : vector<16x32xf32>
    %653 = arith.addf %649, %652 : vector<16x32xf32>
    %c20 = arith.constant 20 : index
    %654 = memref.load %arg3[%c20] : memref<288xf32, #tpu.memory_space<smem>>
    %655 = vector.broadcast %654 : f32 to vector<16x32xf32>
    %656 = arith.mulf %655, %633 : vector<16x32xf32>
    %657 = arith.addf %653, %656 : vector<16x32xf32>
    %c21 = arith.constant 21 : index
    %658 = memref.load %arg3[%c21] : memref<288xf32, #tpu.memory_space<smem>>
    %659 = vector.broadcast %658 : f32 to vector<16x32xf32>
    %660 = arith.mulf %659, %635 : vector<16x32xf32>
    %661 = arith.addf %657, %660 : vector<16x32xf32>
    %c22 = arith.constant 22 : index
    %662 = memref.load %arg3[%c22] : memref<288xf32, #tpu.memory_space<smem>>
    %663 = vector.broadcast %662 : f32 to vector<16x32xf32>
    %664 = arith.mulf %663, %637 : vector<16x32xf32>
    %665 = arith.addf %661, %664 : vector<16x32xf32>
    %c23 = arith.constant 23 : index
    %666 = memref.load %arg3[%c23] : memref<288xf32, #tpu.memory_space<smem>>
    %667 = vector.broadcast %666 : f32 to vector<16x32xf32>
    %668 = arith.mulf %667, %639 : vector<16x32xf32>
    %669 = arith.addf %665, %668 : vector<16x32xf32>
    %c24 = arith.constant 24 : index
    %670 = memref.load %arg3[%c24] : memref<288xf32, #tpu.memory_space<smem>>
    %671 = vector.broadcast %670 : f32 to vector<16x32xf32>
    %672 = arith.mulf %671, %641 : vector<16x32xf32>
    %673 = arith.addf %669, %672 : vector<16x32xf32>
    %c25 = arith.constant 25 : index
    %674 = memref.load %arg3[%c25] : memref<288xf32, #tpu.memory_space<smem>>
    %675 = vector.broadcast %674 : f32 to vector<16x32xf32>
    %676 = arith.mulf %675, %643 : vector<16x32xf32>
    %677 = arith.addf %673, %676 : vector<16x32xf32>
    %c26 = arith.constant 26 : index
    %678 = memref.load %arg3[%c26] : memref<288xf32, #tpu.memory_space<smem>>
    %679 = vector.broadcast %678 : f32 to vector<16x32xf32>
    %680 = arith.mulf %679, %645 : vector<16x32xf32>
    %681 = arith.addf %677, %680 : vector<16x32xf32>
    %c54 = arith.constant 54 : index
    %682 = memref.load %arg3[%c54] : memref<288xf32, #tpu.memory_space<smem>>
    %683 = vector.broadcast %682 : f32 to vector<16x32xf32>
    %684 = arith.mulf %683, %629 : vector<16x32xf32>
    %685 = arith.addf %411, %684 : vector<16x32xf32>
    %c55 = arith.constant 55 : index
    %686 = memref.load %arg3[%c55] : memref<288xf32, #tpu.memory_space<smem>>
    %687 = vector.broadcast %686 : f32 to vector<16x32xf32>
    %688 = arith.mulf %687, %631 : vector<16x32xf32>
    %689 = arith.addf %685, %688 : vector<16x32xf32>
    %c56 = arith.constant 56 : index
    %690 = memref.load %arg3[%c56] : memref<288xf32, #tpu.memory_space<smem>>
    %691 = vector.broadcast %690 : f32 to vector<16x32xf32>
    %692 = arith.mulf %691, %633 : vector<16x32xf32>
    %693 = arith.addf %689, %692 : vector<16x32xf32>
    %c57 = arith.constant 57 : index
    %694 = memref.load %arg3[%c57] : memref<288xf32, #tpu.memory_space<smem>>
    %695 = vector.broadcast %694 : f32 to vector<16x32xf32>
    %696 = arith.mulf %695, %635 : vector<16x32xf32>
    %697 = arith.addf %693, %696 : vector<16x32xf32>
    %c58 = arith.constant 58 : index
    %698 = memref.load %arg3[%c58] : memref<288xf32, #tpu.memory_space<smem>>
    %699 = vector.broadcast %698 : f32 to vector<16x32xf32>
    %700 = arith.mulf %699, %637 : vector<16x32xf32>
    %701 = arith.addf %697, %700 : vector<16x32xf32>
    %c59 = arith.constant 59 : index
    %702 = memref.load %arg3[%c59] : memref<288xf32, #tpu.memory_space<smem>>
    %703 = vector.broadcast %702 : f32 to vector<16x32xf32>
    %704 = arith.mulf %703, %639 : vector<16x32xf32>
    %705 = arith.addf %701, %704 : vector<16x32xf32>
    %c60 = arith.constant 60 : index
    %706 = memref.load %arg3[%c60] : memref<288xf32, #tpu.memory_space<smem>>
    %707 = vector.broadcast %706 : f32 to vector<16x32xf32>
    %708 = arith.mulf %707, %641 : vector<16x32xf32>
    %709 = arith.addf %705, %708 : vector<16x32xf32>
    %c61 = arith.constant 61 : index
    %710 = memref.load %arg3[%c61] : memref<288xf32, #tpu.memory_space<smem>>
    %711 = vector.broadcast %710 : f32 to vector<16x32xf32>
    %712 = arith.mulf %711, %643 : vector<16x32xf32>
    %713 = arith.addf %709, %712 : vector<16x32xf32>
    %c62 = arith.constant 62 : index
    %714 = memref.load %arg3[%c62] : memref<288xf32, #tpu.memory_space<smem>>
    %715 = vector.broadcast %714 : f32 to vector<16x32xf32>
    %716 = arith.mulf %715, %645 : vector<16x32xf32>
    %717 = arith.addf %713, %716 : vector<16x32xf32>
    %c90 = arith.constant 90 : index
    %718 = memref.load %arg3[%c90] : memref<288xf32, #tpu.memory_space<smem>>
    %719 = vector.broadcast %718 : f32 to vector<16x32xf32>
    %720 = arith.mulf %719, %629 : vector<16x32xf32>
    %721 = arith.addf %447, %720 : vector<16x32xf32>
    %c91 = arith.constant 91 : index
    %722 = memref.load %arg3[%c91] : memref<288xf32, #tpu.memory_space<smem>>
    %723 = vector.broadcast %722 : f32 to vector<16x32xf32>
    %724 = arith.mulf %723, %631 : vector<16x32xf32>
    %725 = arith.addf %721, %724 : vector<16x32xf32>
    %c92 = arith.constant 92 : index
    %726 = memref.load %arg3[%c92] : memref<288xf32, #tpu.memory_space<smem>>
    %727 = vector.broadcast %726 : f32 to vector<16x32xf32>
    %728 = arith.mulf %727, %633 : vector<16x32xf32>
    %729 = arith.addf %725, %728 : vector<16x32xf32>
    %c93 = arith.constant 93 : index
    %730 = memref.load %arg3[%c93] : memref<288xf32, #tpu.memory_space<smem>>
    %731 = vector.broadcast %730 : f32 to vector<16x32xf32>
    %732 = arith.mulf %731, %635 : vector<16x32xf32>
    %733 = arith.addf %729, %732 : vector<16x32xf32>
    %c94 = arith.constant 94 : index
    %734 = memref.load %arg3[%c94] : memref<288xf32, #tpu.memory_space<smem>>
    %735 = vector.broadcast %734 : f32 to vector<16x32xf32>
    %736 = arith.mulf %735, %637 : vector<16x32xf32>
    %737 = arith.addf %733, %736 : vector<16x32xf32>
    %c95 = arith.constant 95 : index
    %738 = memref.load %arg3[%c95] : memref<288xf32, #tpu.memory_space<smem>>
    %739 = vector.broadcast %738 : f32 to vector<16x32xf32>
    %740 = arith.mulf %739, %639 : vector<16x32xf32>
    %741 = arith.addf %737, %740 : vector<16x32xf32>
    %c96 = arith.constant 96 : index
    %742 = memref.load %arg3[%c96] : memref<288xf32, #tpu.memory_space<smem>>
    %743 = vector.broadcast %742 : f32 to vector<16x32xf32>
    %744 = arith.mulf %743, %641 : vector<16x32xf32>
    %745 = arith.addf %741, %744 : vector<16x32xf32>
    %c97 = arith.constant 97 : index
    %746 = memref.load %arg3[%c97] : memref<288xf32, #tpu.memory_space<smem>>
    %747 = vector.broadcast %746 : f32 to vector<16x32xf32>
    %748 = arith.mulf %747, %643 : vector<16x32xf32>
    %749 = arith.addf %745, %748 : vector<16x32xf32>
    %c98 = arith.constant 98 : index
    %750 = memref.load %arg3[%c98] : memref<288xf32, #tpu.memory_space<smem>>
    %751 = vector.broadcast %750 : f32 to vector<16x32xf32>
    %752 = arith.mulf %751, %645 : vector<16x32xf32>
    %753 = arith.addf %749, %752 : vector<16x32xf32>
    %c126 = arith.constant 126 : index
    %754 = memref.load %arg3[%c126] : memref<288xf32, #tpu.memory_space<smem>>
    %755 = vector.broadcast %754 : f32 to vector<16x32xf32>
    %756 = arith.mulf %755, %629 : vector<16x32xf32>
    %757 = arith.addf %483, %756 : vector<16x32xf32>
    %c127 = arith.constant 127 : index
    %758 = memref.load %arg3[%c127] : memref<288xf32, #tpu.memory_space<smem>>
    %759 = vector.broadcast %758 : f32 to vector<16x32xf32>
    %760 = arith.mulf %759, %631 : vector<16x32xf32>
    %761 = arith.addf %757, %760 : vector<16x32xf32>
    %c128 = arith.constant 128 : index
    %762 = memref.load %arg3[%c128] : memref<288xf32, #tpu.memory_space<smem>>
    %763 = vector.broadcast %762 : f32 to vector<16x32xf32>
    %764 = arith.mulf %763, %633 : vector<16x32xf32>
    %765 = arith.addf %761, %764 : vector<16x32xf32>
    %c129 = arith.constant 129 : index
    %766 = memref.load %arg3[%c129] : memref<288xf32, #tpu.memory_space<smem>>
    %767 = vector.broadcast %766 : f32 to vector<16x32xf32>
    %768 = arith.mulf %767, %635 : vector<16x32xf32>
    %769 = arith.addf %765, %768 : vector<16x32xf32>
    %c130 = arith.constant 130 : index
    %770 = memref.load %arg3[%c130] : memref<288xf32, #tpu.memory_space<smem>>
    %771 = vector.broadcast %770 : f32 to vector<16x32xf32>
    %772 = arith.mulf %771, %637 : vector<16x32xf32>
    %773 = arith.addf %769, %772 : vector<16x32xf32>
    %c131 = arith.constant 131 : index
    %774 = memref.load %arg3[%c131] : memref<288xf32, #tpu.memory_space<smem>>
    %775 = vector.broadcast %774 : f32 to vector<16x32xf32>
    %776 = arith.mulf %775, %639 : vector<16x32xf32>
    %777 = arith.addf %773, %776 : vector<16x32xf32>
    %c132 = arith.constant 132 : index
    %778 = memref.load %arg3[%c132] : memref<288xf32, #tpu.memory_space<smem>>
    %779 = vector.broadcast %778 : f32 to vector<16x32xf32>
    %780 = arith.mulf %779, %641 : vector<16x32xf32>
    %781 = arith.addf %777, %780 : vector<16x32xf32>
    %c133 = arith.constant 133 : index
    %782 = memref.load %arg3[%c133] : memref<288xf32, #tpu.memory_space<smem>>
    %783 = vector.broadcast %782 : f32 to vector<16x32xf32>
    %784 = arith.mulf %783, %643 : vector<16x32xf32>
    %785 = arith.addf %781, %784 : vector<16x32xf32>
    %c134 = arith.constant 134 : index
    %786 = memref.load %arg3[%c134] : memref<288xf32, #tpu.memory_space<smem>>
    %787 = vector.broadcast %786 : f32 to vector<16x32xf32>
    %788 = arith.mulf %787, %645 : vector<16x32xf32>
    %789 = arith.addf %785, %788 : vector<16x32xf32>
    %c162 = arith.constant 162 : index
    %790 = memref.load %arg3[%c162] : memref<288xf32, #tpu.memory_space<smem>>
    %791 = vector.broadcast %790 : f32 to vector<16x32xf32>
    %792 = arith.mulf %791, %629 : vector<16x32xf32>
    %793 = arith.addf %519, %792 : vector<16x32xf32>
    %c163 = arith.constant 163 : index
    %794 = memref.load %arg3[%c163] : memref<288xf32, #tpu.memory_space<smem>>
    %795 = vector.broadcast %794 : f32 to vector<16x32xf32>
    %796 = arith.mulf %795, %631 : vector<16x32xf32>
    %797 = arith.addf %793, %796 : vector<16x32xf32>
    %c164 = arith.constant 164 : index
    %798 = memref.load %arg3[%c164] : memref<288xf32, #tpu.memory_space<smem>>
    %799 = vector.broadcast %798 : f32 to vector<16x32xf32>
    %800 = arith.mulf %799, %633 : vector<16x32xf32>
    %801 = arith.addf %797, %800 : vector<16x32xf32>
    %c165 = arith.constant 165 : index
    %802 = memref.load %arg3[%c165] : memref<288xf32, #tpu.memory_space<smem>>
    %803 = vector.broadcast %802 : f32 to vector<16x32xf32>
    %804 = arith.mulf %803, %635 : vector<16x32xf32>
    %805 = arith.addf %801, %804 : vector<16x32xf32>
    %c166 = arith.constant 166 : index
    %806 = memref.load %arg3[%c166] : memref<288xf32, #tpu.memory_space<smem>>
    %807 = vector.broadcast %806 : f32 to vector<16x32xf32>
    %808 = arith.mulf %807, %637 : vector<16x32xf32>
    %809 = arith.addf %805, %808 : vector<16x32xf32>
    %c167 = arith.constant 167 : index
    %810 = memref.load %arg3[%c167] : memref<288xf32, #tpu.memory_space<smem>>
    %811 = vector.broadcast %810 : f32 to vector<16x32xf32>
    %812 = arith.mulf %811, %639 : vector<16x32xf32>
    %813 = arith.addf %809, %812 : vector<16x32xf32>
    %c168 = arith.constant 168 : index
    %814 = memref.load %arg3[%c168] : memref<288xf32, #tpu.memory_space<smem>>
    %815 = vector.broadcast %814 : f32 to vector<16x32xf32>
    %816 = arith.mulf %815, %641 : vector<16x32xf32>
    %817 = arith.addf %813, %816 : vector<16x32xf32>
    %c169 = arith.constant 169 : index
    %818 = memref.load %arg3[%c169] : memref<288xf32, #tpu.memory_space<smem>>
    %819 = vector.broadcast %818 : f32 to vector<16x32xf32>
    %820 = arith.mulf %819, %643 : vector<16x32xf32>
    %821 = arith.addf %817, %820 : vector<16x32xf32>
    %c170 = arith.constant 170 : index
    %822 = memref.load %arg3[%c170] : memref<288xf32, #tpu.memory_space<smem>>
    %823 = vector.broadcast %822 : f32 to vector<16x32xf32>
    %824 = arith.mulf %823, %645 : vector<16x32xf32>
    %825 = arith.addf %821, %824 : vector<16x32xf32>
    %c198 = arith.constant 198 : index
    %826 = memref.load %arg3[%c198] : memref<288xf32, #tpu.memory_space<smem>>
    %827 = vector.broadcast %826 : f32 to vector<16x32xf32>
    %828 = arith.mulf %827, %629 : vector<16x32xf32>
    %829 = arith.addf %555, %828 : vector<16x32xf32>
    %c199 = arith.constant 199 : index
    %830 = memref.load %arg3[%c199] : memref<288xf32, #tpu.memory_space<smem>>
    %831 = vector.broadcast %830 : f32 to vector<16x32xf32>
    %832 = arith.mulf %831, %631 : vector<16x32xf32>
    %833 = arith.addf %829, %832 : vector<16x32xf32>
    %c200 = arith.constant 200 : index
    %834 = memref.load %arg3[%c200] : memref<288xf32, #tpu.memory_space<smem>>
    %835 = vector.broadcast %834 : f32 to vector<16x32xf32>
    %836 = arith.mulf %835, %633 : vector<16x32xf32>
    %837 = arith.addf %833, %836 : vector<16x32xf32>
    %c201 = arith.constant 201 : index
    %838 = memref.load %arg3[%c201] : memref<288xf32, #tpu.memory_space<smem>>
    %839 = vector.broadcast %838 : f32 to vector<16x32xf32>
    %840 = arith.mulf %839, %635 : vector<16x32xf32>
    %841 = arith.addf %837, %840 : vector<16x32xf32>
    %c202 = arith.constant 202 : index
    %842 = memref.load %arg3[%c202] : memref<288xf32, #tpu.memory_space<smem>>
    %843 = vector.broadcast %842 : f32 to vector<16x32xf32>
    %844 = arith.mulf %843, %637 : vector<16x32xf32>
    %845 = arith.addf %841, %844 : vector<16x32xf32>
    %c203 = arith.constant 203 : index
    %846 = memref.load %arg3[%c203] : memref<288xf32, #tpu.memory_space<smem>>
    %847 = vector.broadcast %846 : f32 to vector<16x32xf32>
    %848 = arith.mulf %847, %639 : vector<16x32xf32>
    %849 = arith.addf %845, %848 : vector<16x32xf32>
    %c204 = arith.constant 204 : index
    %850 = memref.load %arg3[%c204] : memref<288xf32, #tpu.memory_space<smem>>
    %851 = vector.broadcast %850 : f32 to vector<16x32xf32>
    %852 = arith.mulf %851, %641 : vector<16x32xf32>
    %853 = arith.addf %849, %852 : vector<16x32xf32>
    %c205 = arith.constant 205 : index
    %854 = memref.load %arg3[%c205] : memref<288xf32, #tpu.memory_space<smem>>
    %855 = vector.broadcast %854 : f32 to vector<16x32xf32>
    %856 = arith.mulf %855, %643 : vector<16x32xf32>
    %857 = arith.addf %853, %856 : vector<16x32xf32>
    %c206 = arith.constant 206 : index
    %858 = memref.load %arg3[%c206] : memref<288xf32, #tpu.memory_space<smem>>
    %859 = vector.broadcast %858 : f32 to vector<16x32xf32>
    %860 = arith.mulf %859, %645 : vector<16x32xf32>
    %861 = arith.addf %857, %860 : vector<16x32xf32>
    %c234 = arith.constant 234 : index
    %862 = memref.load %arg3[%c234] : memref<288xf32, #tpu.memory_space<smem>>
    %863 = vector.broadcast %862 : f32 to vector<16x32xf32>
    %864 = arith.mulf %863, %629 : vector<16x32xf32>
    %865 = arith.addf %591, %864 : vector<16x32xf32>
    %c235 = arith.constant 235 : index
    %866 = memref.load %arg3[%c235] : memref<288xf32, #tpu.memory_space<smem>>
    %867 = vector.broadcast %866 : f32 to vector<16x32xf32>
    %868 = arith.mulf %867, %631 : vector<16x32xf32>
    %869 = arith.addf %865, %868 : vector<16x32xf32>
    %c236 = arith.constant 236 : index
    %870 = memref.load %arg3[%c236] : memref<288xf32, #tpu.memory_space<smem>>
    %871 = vector.broadcast %870 : f32 to vector<16x32xf32>
    %872 = arith.mulf %871, %633 : vector<16x32xf32>
    %873 = arith.addf %869, %872 : vector<16x32xf32>
    %c237 = arith.constant 237 : index
    %874 = memref.load %arg3[%c237] : memref<288xf32, #tpu.memory_space<smem>>
    %875 = vector.broadcast %874 : f32 to vector<16x32xf32>
    %876 = arith.mulf %875, %635 : vector<16x32xf32>
    %877 = arith.addf %873, %876 : vector<16x32xf32>
    %c238 = arith.constant 238 : index
    %878 = memref.load %arg3[%c238] : memref<288xf32, #tpu.memory_space<smem>>
    %879 = vector.broadcast %878 : f32 to vector<16x32xf32>
    %880 = arith.mulf %879, %637 : vector<16x32xf32>
    %881 = arith.addf %877, %880 : vector<16x32xf32>
    %c239 = arith.constant 239 : index
    %882 = memref.load %arg3[%c239] : memref<288xf32, #tpu.memory_space<smem>>
    %883 = vector.broadcast %882 : f32 to vector<16x32xf32>
    %884 = arith.mulf %883, %639 : vector<16x32xf32>
    %885 = arith.addf %881, %884 : vector<16x32xf32>
    %c240 = arith.constant 240 : index
    %886 = memref.load %arg3[%c240] : memref<288xf32, #tpu.memory_space<smem>>
    %887 = vector.broadcast %886 : f32 to vector<16x32xf32>
    %888 = arith.mulf %887, %641 : vector<16x32xf32>
    %889 = arith.addf %885, %888 : vector<16x32xf32>
    %c241 = arith.constant 241 : index
    %890 = memref.load %arg3[%c241] : memref<288xf32, #tpu.memory_space<smem>>
    %891 = vector.broadcast %890 : f32 to vector<16x32xf32>
    %892 = arith.mulf %891, %643 : vector<16x32xf32>
    %893 = arith.addf %889, %892 : vector<16x32xf32>
    %c242 = arith.constant 242 : index
    %894 = memref.load %arg3[%c242] : memref<288xf32, #tpu.memory_space<smem>>
    %895 = vector.broadcast %894 : f32 to vector<16x32xf32>
    %896 = arith.mulf %895, %645 : vector<16x32xf32>
    %897 = arith.addf %893, %896 : vector<16x32xf32>
    %c270 = arith.constant 270 : index
    %898 = memref.load %arg3[%c270] : memref<288xf32, #tpu.memory_space<smem>>
    %899 = vector.broadcast %898 : f32 to vector<16x32xf32>
    %900 = arith.mulf %899, %629 : vector<16x32xf32>
    %901 = arith.addf %627, %900 : vector<16x32xf32>
    %c271 = arith.constant 271 : index
    %902 = memref.load %arg3[%c271] : memref<288xf32, #tpu.memory_space<smem>>
    %903 = vector.broadcast %902 : f32 to vector<16x32xf32>
    %904 = arith.mulf %903, %631 : vector<16x32xf32>
    %905 = arith.addf %901, %904 : vector<16x32xf32>
    %c272 = arith.constant 272 : index
    %906 = memref.load %arg3[%c272] : memref<288xf32, #tpu.memory_space<smem>>
    %907 = vector.broadcast %906 : f32 to vector<16x32xf32>
    %908 = arith.mulf %907, %633 : vector<16x32xf32>
    %909 = arith.addf %905, %908 : vector<16x32xf32>
    %c273 = arith.constant 273 : index
    %910 = memref.load %arg3[%c273] : memref<288xf32, #tpu.memory_space<smem>>
    %911 = vector.broadcast %910 : f32 to vector<16x32xf32>
    %912 = arith.mulf %911, %635 : vector<16x32xf32>
    %913 = arith.addf %909, %912 : vector<16x32xf32>
    %c274 = arith.constant 274 : index
    %914 = memref.load %arg3[%c274] : memref<288xf32, #tpu.memory_space<smem>>
    %915 = vector.broadcast %914 : f32 to vector<16x32xf32>
    %916 = arith.mulf %915, %637 : vector<16x32xf32>
    %917 = arith.addf %913, %916 : vector<16x32xf32>
    %c275 = arith.constant 275 : index
    %918 = memref.load %arg3[%c275] : memref<288xf32, #tpu.memory_space<smem>>
    %919 = vector.broadcast %918 : f32 to vector<16x32xf32>
    %920 = arith.mulf %919, %639 : vector<16x32xf32>
    %921 = arith.addf %917, %920 : vector<16x32xf32>
    %c276 = arith.constant 276 : index
    %922 = memref.load %arg3[%c276] : memref<288xf32, #tpu.memory_space<smem>>
    %923 = vector.broadcast %922 : f32 to vector<16x32xf32>
    %924 = arith.mulf %923, %641 : vector<16x32xf32>
    %925 = arith.addf %921, %924 : vector<16x32xf32>
    %c277 = arith.constant 277 : index
    %926 = memref.load %arg3[%c277] : memref<288xf32, #tpu.memory_space<smem>>
    %927 = vector.broadcast %926 : f32 to vector<16x32xf32>
    %928 = arith.mulf %927, %643 : vector<16x32xf32>
    %929 = arith.addf %925, %928 : vector<16x32xf32>
    %c278 = arith.constant 278 : index
    %930 = memref.load %arg3[%c278] : memref<288xf32, #tpu.memory_space<smem>>
    %931 = vector.broadcast %930 : f32 to vector<16x32xf32>
    %932 = arith.mulf %931, %645 : vector<16x32xf32>
    %933 = arith.addf %929, %932 : vector<16x32xf32>
    %c0_116 = arith.constant 0 : index
    %c3_117 = arith.constant 3 : index
    %c0_118 = arith.constant 0 : index
    %c0_119 = arith.constant 0 : index
    %934 = vector.load %arg2[%c0_116, %c3_117, %c0_118, %c0_119] : memref<1x4x18x34xf32, #tpu.memory_space<vmem>>, vector<1x1x16x32xf32>
    %935 = vector.shape_cast %934 : vector<1x1x16x32xf32> to vector<16x32xf32>
    %c0_120 = arith.constant 0 : index
    %c3_121 = arith.constant 3 : index
    %c0_122 = arith.constant 0 : index
    %c1_123 = arith.constant 1 : index
    %936 = vector.load %arg2[%c0_120, %c3_121, %c0_122, %c1_123] : memref<1x4x18x34xf32, #tpu.memory_space<vmem>>, vector<1x1x16x32xf32>
    %937 = vector.shape_cast %936 : vector<1x1x16x32xf32> to vector<16x32xf32>
    %c0_124 = arith.constant 0 : index
    %c3_125 = arith.constant 3 : index
    %c0_126 = arith.constant 0 : index
    %c2_127 = arith.constant 2 : index
    %938 = vector.load %arg2[%c0_124, %c3_125, %c0_126, %c2_127] : memref<1x4x18x34xf32, #tpu.memory_space<vmem>>, vector<1x1x16x32xf32>
    %939 = vector.shape_cast %938 : vector<1x1x16x32xf32> to vector<16x32xf32>
    %c0_128 = arith.constant 0 : index
    %c3_129 = arith.constant 3 : index
    %c1_130 = arith.constant 1 : index
    %c0_131 = arith.constant 0 : index
    %940 = vector.load %arg2[%c0_128, %c3_129, %c1_130, %c0_131] : memref<1x4x18x34xf32, #tpu.memory_space<vmem>>, vector<1x1x16x32xf32>
    %941 = vector.shape_cast %940 : vector<1x1x16x32xf32> to vector<16x32xf32>
    %c0_132 = arith.constant 0 : index
    %c3_133 = arith.constant 3 : index
    %c1_134 = arith.constant 1 : index
    %c1_135 = arith.constant 1 : index
    %942 = vector.load %arg2[%c0_132, %c3_133, %c1_134, %c1_135] : memref<1x4x18x34xf32, #tpu.memory_space<vmem>>, vector<1x1x16x32xf32>
    %943 = vector.shape_cast %942 : vector<1x1x16x32xf32> to vector<16x32xf32>
    %c0_136 = arith.constant 0 : index
    %c3_137 = arith.constant 3 : index
    %c1_138 = arith.constant 1 : index
    %c2_139 = arith.constant 2 : index
    %944 = vector.load %arg2[%c0_136, %c3_137, %c1_138, %c2_139] : memref<1x4x18x34xf32, #tpu.memory_space<vmem>>, vector<1x1x16x32xf32>
    %945 = vector.shape_cast %944 : vector<1x1x16x32xf32> to vector<16x32xf32>
    %c0_140 = arith.constant 0 : index
    %c3_141 = arith.constant 3 : index
    %c2_142 = arith.constant 2 : index
    %c0_143 = arith.constant 0 : index
    %946 = vector.load %arg2[%c0_140, %c3_141, %c2_142, %c0_143] : memref<1x4x18x34xf32, #tpu.memory_space<vmem>>, vector<1x1x16x32xf32>
    %947 = vector.shape_cast %946 : vector<1x1x16x32xf32> to vector<16x32xf32>
    %c0_144 = arith.constant 0 : index
    %c3_145 = arith.constant 3 : index
    %c2_146 = arith.constant 2 : index
    %c1_147 = arith.constant 1 : index
    %948 = vector.load %arg2[%c0_144, %c3_145, %c2_146, %c1_147] : memref<1x4x18x34xf32, #tpu.memory_space<vmem>>, vector<1x1x16x32xf32>
    %949 = vector.shape_cast %948 : vector<1x1x16x32xf32> to vector<16x32xf32>
    %c0_148 = arith.constant 0 : index
    %c3_149 = arith.constant 3 : index
    %c2_150 = arith.constant 2 : index
    %c2_151 = arith.constant 2 : index
    %950 = vector.load %arg2[%c0_148, %c3_149, %c2_150, %c2_151] : memref<1x4x18x34xf32, #tpu.memory_space<vmem>>, vector<1x1x16x32xf32>
    %951 = vector.shape_cast %950 : vector<1x1x16x32xf32> to vector<16x32xf32>
    %c27 = arith.constant 27 : index
    %952 = memref.load %arg3[%c27] : memref<288xf32, #tpu.memory_space<smem>>
    %953 = vector.broadcast %952 : f32 to vector<16x32xf32>
    %954 = arith.mulf %953, %935 : vector<16x32xf32>
    %955 = arith.addf %681, %954 : vector<16x32xf32>
    %c28 = arith.constant 28 : index
    %956 = memref.load %arg3[%c28] : memref<288xf32, #tpu.memory_space<smem>>
    %957 = vector.broadcast %956 : f32 to vector<16x32xf32>
    %958 = arith.mulf %957, %937 : vector<16x32xf32>
    %959 = arith.addf %955, %958 : vector<16x32xf32>
    %c29 = arith.constant 29 : index
    %960 = memref.load %arg3[%c29] : memref<288xf32, #tpu.memory_space<smem>>
    %961 = vector.broadcast %960 : f32 to vector<16x32xf32>
    %962 = arith.mulf %961, %939 : vector<16x32xf32>
    %963 = arith.addf %959, %962 : vector<16x32xf32>
    %c30 = arith.constant 30 : index
    %964 = memref.load %arg3[%c30] : memref<288xf32, #tpu.memory_space<smem>>
    %965 = vector.broadcast %964 : f32 to vector<16x32xf32>
    %966 = arith.mulf %965, %941 : vector<16x32xf32>
    %967 = arith.addf %963, %966 : vector<16x32xf32>
    %c31 = arith.constant 31 : index
    %968 = memref.load %arg3[%c31] : memref<288xf32, #tpu.memory_space<smem>>
    %969 = vector.broadcast %968 : f32 to vector<16x32xf32>
    %970 = arith.mulf %969, %943 : vector<16x32xf32>
    %971 = arith.addf %967, %970 : vector<16x32xf32>
    %c32 = arith.constant 32 : index
    %972 = memref.load %arg3[%c32] : memref<288xf32, #tpu.memory_space<smem>>
    %973 = vector.broadcast %972 : f32 to vector<16x32xf32>
    %974 = arith.mulf %973, %945 : vector<16x32xf32>
    %975 = arith.addf %971, %974 : vector<16x32xf32>
    %c33 = arith.constant 33 : index
    %976 = memref.load %arg3[%c33] : memref<288xf32, #tpu.memory_space<smem>>
    %977 = vector.broadcast %976 : f32 to vector<16x32xf32>
    %978 = arith.mulf %977, %947 : vector<16x32xf32>
    %979 = arith.addf %975, %978 : vector<16x32xf32>
    %c34 = arith.constant 34 : index
    %980 = memref.load %arg3[%c34] : memref<288xf32, #tpu.memory_space<smem>>
    %981 = vector.broadcast %980 : f32 to vector<16x32xf32>
    %982 = arith.mulf %981, %949 : vector<16x32xf32>
    %983 = arith.addf %979, %982 : vector<16x32xf32>
    %c35 = arith.constant 35 : index
    %984 = memref.load %arg3[%c35] : memref<288xf32, #tpu.memory_space<smem>>
    %985 = vector.broadcast %984 : f32 to vector<16x32xf32>
    %986 = arith.mulf %985, %951 : vector<16x32xf32>
    %987 = arith.addf %983, %986 : vector<16x32xf32>
    %c63 = arith.constant 63 : index
    %988 = memref.load %arg3[%c63] : memref<288xf32, #tpu.memory_space<smem>>
    %989 = vector.broadcast %988 : f32 to vector<16x32xf32>
    %990 = arith.mulf %989, %935 : vector<16x32xf32>
    %991 = arith.addf %717, %990 : vector<16x32xf32>
    %c64 = arith.constant 64 : index
    %992 = memref.load %arg3[%c64] : memref<288xf32, #tpu.memory_space<smem>>
    %993 = vector.broadcast %992 : f32 to vector<16x32xf32>
    %994 = arith.mulf %993, %937 : vector<16x32xf32>
    %995 = arith.addf %991, %994 : vector<16x32xf32>
    %c65 = arith.constant 65 : index
    %996 = memref.load %arg3[%c65] : memref<288xf32, #tpu.memory_space<smem>>
    %997 = vector.broadcast %996 : f32 to vector<16x32xf32>
    %998 = arith.mulf %997, %939 : vector<16x32xf32>
    %999 = arith.addf %995, %998 : vector<16x32xf32>
    %c66 = arith.constant 66 : index
    %1000 = memref.load %arg3[%c66] : memref<288xf32, #tpu.memory_space<smem>>
    %1001 = vector.broadcast %1000 : f32 to vector<16x32xf32>
    %1002 = arith.mulf %1001, %941 : vector<16x32xf32>
    %1003 = arith.addf %999, %1002 : vector<16x32xf32>
    %c67 = arith.constant 67 : index
    %1004 = memref.load %arg3[%c67] : memref<288xf32, #tpu.memory_space<smem>>
    %1005 = vector.broadcast %1004 : f32 to vector<16x32xf32>
    %1006 = arith.mulf %1005, %943 : vector<16x32xf32>
    %1007 = arith.addf %1003, %1006 : vector<16x32xf32>
    %c68 = arith.constant 68 : index
    %1008 = memref.load %arg3[%c68] : memref<288xf32, #tpu.memory_space<smem>>
    %1009 = vector.broadcast %1008 : f32 to vector<16x32xf32>
    %1010 = arith.mulf %1009, %945 : vector<16x32xf32>
    %1011 = arith.addf %1007, %1010 : vector<16x32xf32>
    %c69 = arith.constant 69 : index
    %1012 = memref.load %arg3[%c69] : memref<288xf32, #tpu.memory_space<smem>>
    %1013 = vector.broadcast %1012 : f32 to vector<16x32xf32>
    %1014 = arith.mulf %1013, %947 : vector<16x32xf32>
    %1015 = arith.addf %1011, %1014 : vector<16x32xf32>
    %c70 = arith.constant 70 : index
    %1016 = memref.load %arg3[%c70] : memref<288xf32, #tpu.memory_space<smem>>
    %1017 = vector.broadcast %1016 : f32 to vector<16x32xf32>
    %1018 = arith.mulf %1017, %949 : vector<16x32xf32>
    %1019 = arith.addf %1015, %1018 : vector<16x32xf32>
    %c71 = arith.constant 71 : index
    %1020 = memref.load %arg3[%c71] : memref<288xf32, #tpu.memory_space<smem>>
    %1021 = vector.broadcast %1020 : f32 to vector<16x32xf32>
    %1022 = arith.mulf %1021, %951 : vector<16x32xf32>
    %1023 = arith.addf %1019, %1022 : vector<16x32xf32>
    %c99 = arith.constant 99 : index
    %1024 = memref.load %arg3[%c99] : memref<288xf32, #tpu.memory_space<smem>>
    %1025 = vector.broadcast %1024 : f32 to vector<16x32xf32>
    %1026 = arith.mulf %1025, %935 : vector<16x32xf32>
    %1027 = arith.addf %753, %1026 : vector<16x32xf32>
    %c100 = arith.constant 100 : index
    %1028 = memref.load %arg3[%c100] : memref<288xf32, #tpu.memory_space<smem>>
    %1029 = vector.broadcast %1028 : f32 to vector<16x32xf32>
    %1030 = arith.mulf %1029, %937 : vector<16x32xf32>
    %1031 = arith.addf %1027, %1030 : vector<16x32xf32>
    %c101 = arith.constant 101 : index
    %1032 = memref.load %arg3[%c101] : memref<288xf32, #tpu.memory_space<smem>>
    %1033 = vector.broadcast %1032 : f32 to vector<16x32xf32>
    %1034 = arith.mulf %1033, %939 : vector<16x32xf32>
    %1035 = arith.addf %1031, %1034 : vector<16x32xf32>
    %c102 = arith.constant 102 : index
    %1036 = memref.load %arg3[%c102] : memref<288xf32, #tpu.memory_space<smem>>
    %1037 = vector.broadcast %1036 : f32 to vector<16x32xf32>
    %1038 = arith.mulf %1037, %941 : vector<16x32xf32>
    %1039 = arith.addf %1035, %1038 : vector<16x32xf32>
    %c103 = arith.constant 103 : index
    %1040 = memref.load %arg3[%c103] : memref<288xf32, #tpu.memory_space<smem>>
    %1041 = vector.broadcast %1040 : f32 to vector<16x32xf32>
    %1042 = arith.mulf %1041, %943 : vector<16x32xf32>
    %1043 = arith.addf %1039, %1042 : vector<16x32xf32>
    %c104 = arith.constant 104 : index
    %1044 = memref.load %arg3[%c104] : memref<288xf32, #tpu.memory_space<smem>>
    %1045 = vector.broadcast %1044 : f32 to vector<16x32xf32>
    %1046 = arith.mulf %1045, %945 : vector<16x32xf32>
    %1047 = arith.addf %1043, %1046 : vector<16x32xf32>
    %c105 = arith.constant 105 : index
    %1048 = memref.load %arg3[%c105] : memref<288xf32, #tpu.memory_space<smem>>
    %1049 = vector.broadcast %1048 : f32 to vector<16x32xf32>
    %1050 = arith.mulf %1049, %947 : vector<16x32xf32>
    %1051 = arith.addf %1047, %1050 : vector<16x32xf32>
    %c106 = arith.constant 106 : index
    %1052 = memref.load %arg3[%c106] : memref<288xf32, #tpu.memory_space<smem>>
    %1053 = vector.broadcast %1052 : f32 to vector<16x32xf32>
    %1054 = arith.mulf %1053, %949 : vector<16x32xf32>
    %1055 = arith.addf %1051, %1054 : vector<16x32xf32>
    %c107 = arith.constant 107 : index
    %1056 = memref.load %arg3[%c107] : memref<288xf32, #tpu.memory_space<smem>>
    %1057 = vector.broadcast %1056 : f32 to vector<16x32xf32>
    %1058 = arith.mulf %1057, %951 : vector<16x32xf32>
    %1059 = arith.addf %1055, %1058 : vector<16x32xf32>
    %c135 = arith.constant 135 : index
    %1060 = memref.load %arg3[%c135] : memref<288xf32, #tpu.memory_space<smem>>
    %1061 = vector.broadcast %1060 : f32 to vector<16x32xf32>
    %1062 = arith.mulf %1061, %935 : vector<16x32xf32>
    %1063 = arith.addf %789, %1062 : vector<16x32xf32>
    %c136 = arith.constant 136 : index
    %1064 = memref.load %arg3[%c136] : memref<288xf32, #tpu.memory_space<smem>>
    %1065 = vector.broadcast %1064 : f32 to vector<16x32xf32>
    %1066 = arith.mulf %1065, %937 : vector<16x32xf32>
    %1067 = arith.addf %1063, %1066 : vector<16x32xf32>
    %c137 = arith.constant 137 : index
    %1068 = memref.load %arg3[%c137] : memref<288xf32, #tpu.memory_space<smem>>
    %1069 = vector.broadcast %1068 : f32 to vector<16x32xf32>
    %1070 = arith.mulf %1069, %939 : vector<16x32xf32>
    %1071 = arith.addf %1067, %1070 : vector<16x32xf32>
    %c138 = arith.constant 138 : index
    %1072 = memref.load %arg3[%c138] : memref<288xf32, #tpu.memory_space<smem>>
    %1073 = vector.broadcast %1072 : f32 to vector<16x32xf32>
    %1074 = arith.mulf %1073, %941 : vector<16x32xf32>
    %1075 = arith.addf %1071, %1074 : vector<16x32xf32>
    %c139 = arith.constant 139 : index
    %1076 = memref.load %arg3[%c139] : memref<288xf32, #tpu.memory_space<smem>>
    %1077 = vector.broadcast %1076 : f32 to vector<16x32xf32>
    %1078 = arith.mulf %1077, %943 : vector<16x32xf32>
    %1079 = arith.addf %1075, %1078 : vector<16x32xf32>
    %c140 = arith.constant 140 : index
    %1080 = memref.load %arg3[%c140] : memref<288xf32, #tpu.memory_space<smem>>
    %1081 = vector.broadcast %1080 : f32 to vector<16x32xf32>
    %1082 = arith.mulf %1081, %945 : vector<16x32xf32>
    %1083 = arith.addf %1079, %1082 : vector<16x32xf32>
    %c141 = arith.constant 141 : index
    %1084 = memref.load %arg3[%c141] : memref<288xf32, #tpu.memory_space<smem>>
    %1085 = vector.broadcast %1084 : f32 to vector<16x32xf32>
    %1086 = arith.mulf %1085, %947 : vector<16x32xf32>
    %1087 = arith.addf %1083, %1086 : vector<16x32xf32>
    %c142 = arith.constant 142 : index
    %1088 = memref.load %arg3[%c142] : memref<288xf32, #tpu.memory_space<smem>>
    %1089 = vector.broadcast %1088 : f32 to vector<16x32xf32>
    %1090 = arith.mulf %1089, %949 : vector<16x32xf32>
    %1091 = arith.addf %1087, %1090 : vector<16x32xf32>
    %c143 = arith.constant 143 : index
    %1092 = memref.load %arg3[%c143] : memref<288xf32, #tpu.memory_space<smem>>
    %1093 = vector.broadcast %1092 : f32 to vector<16x32xf32>
    %1094 = arith.mulf %1093, %951 : vector<16x32xf32>
    %1095 = arith.addf %1091, %1094 : vector<16x32xf32>
    %c171 = arith.constant 171 : index
    %1096 = memref.load %arg3[%c171] : memref<288xf32, #tpu.memory_space<smem>>
    %1097 = vector.broadcast %1096 : f32 to vector<16x32xf32>
    %1098 = arith.mulf %1097, %935 : vector<16x32xf32>
    %1099 = arith.addf %825, %1098 : vector<16x32xf32>
    %c172 = arith.constant 172 : index
    %1100 = memref.load %arg3[%c172] : memref<288xf32, #tpu.memory_space<smem>>
    %1101 = vector.broadcast %1100 : f32 to vector<16x32xf32>
    %1102 = arith.mulf %1101, %937 : vector<16x32xf32>
    %1103 = arith.addf %1099, %1102 : vector<16x32xf32>
    %c173 = arith.constant 173 : index
    %1104 = memref.load %arg3[%c173] : memref<288xf32, #tpu.memory_space<smem>>
    %1105 = vector.broadcast %1104 : f32 to vector<16x32xf32>
    %1106 = arith.mulf %1105, %939 : vector<16x32xf32>
    %1107 = arith.addf %1103, %1106 : vector<16x32xf32>
    %c174 = arith.constant 174 : index
    %1108 = memref.load %arg3[%c174] : memref<288xf32, #tpu.memory_space<smem>>
    %1109 = vector.broadcast %1108 : f32 to vector<16x32xf32>
    %1110 = arith.mulf %1109, %941 : vector<16x32xf32>
    %1111 = arith.addf %1107, %1110 : vector<16x32xf32>
    %c175 = arith.constant 175 : index
    %1112 = memref.load %arg3[%c175] : memref<288xf32, #tpu.memory_space<smem>>
    %1113 = vector.broadcast %1112 : f32 to vector<16x32xf32>
    %1114 = arith.mulf %1113, %943 : vector<16x32xf32>
    %1115 = arith.addf %1111, %1114 : vector<16x32xf32>
    %c176 = arith.constant 176 : index
    %1116 = memref.load %arg3[%c176] : memref<288xf32, #tpu.memory_space<smem>>
    %1117 = vector.broadcast %1116 : f32 to vector<16x32xf32>
    %1118 = arith.mulf %1117, %945 : vector<16x32xf32>
    %1119 = arith.addf %1115, %1118 : vector<16x32xf32>
    %c177 = arith.constant 177 : index
    %1120 = memref.load %arg3[%c177] : memref<288xf32, #tpu.memory_space<smem>>
    %1121 = vector.broadcast %1120 : f32 to vector<16x32xf32>
    %1122 = arith.mulf %1121, %947 : vector<16x32xf32>
    %1123 = arith.addf %1119, %1122 : vector<16x32xf32>
    %c178 = arith.constant 178 : index
    %1124 = memref.load %arg3[%c178] : memref<288xf32, #tpu.memory_space<smem>>
    %1125 = vector.broadcast %1124 : f32 to vector<16x32xf32>
    %1126 = arith.mulf %1125, %949 : vector<16x32xf32>
    %1127 = arith.addf %1123, %1126 : vector<16x32xf32>
    %c179 = arith.constant 179 : index
    %1128 = memref.load %arg3[%c179] : memref<288xf32, #tpu.memory_space<smem>>
    %1129 = vector.broadcast %1128 : f32 to vector<16x32xf32>
    %1130 = arith.mulf %1129, %951 : vector<16x32xf32>
    %1131 = arith.addf %1127, %1130 : vector<16x32xf32>
    %c207 = arith.constant 207 : index
    %1132 = memref.load %arg3[%c207] : memref<288xf32, #tpu.memory_space<smem>>
    %1133 = vector.broadcast %1132 : f32 to vector<16x32xf32>
    %1134 = arith.mulf %1133, %935 : vector<16x32xf32>
    %1135 = arith.addf %861, %1134 : vector<16x32xf32>
    %c208 = arith.constant 208 : index
    %1136 = memref.load %arg3[%c208] : memref<288xf32, #tpu.memory_space<smem>>
    %1137 = vector.broadcast %1136 : f32 to vector<16x32xf32>
    %1138 = arith.mulf %1137, %937 : vector<16x32xf32>
    %1139 = arith.addf %1135, %1138 : vector<16x32xf32>
    %c209 = arith.constant 209 : index
    %1140 = memref.load %arg3[%c209] : memref<288xf32, #tpu.memory_space<smem>>
    %1141 = vector.broadcast %1140 : f32 to vector<16x32xf32>
    %1142 = arith.mulf %1141, %939 : vector<16x32xf32>
    %1143 = arith.addf %1139, %1142 : vector<16x32xf32>
    %c210 = arith.constant 210 : index
    %1144 = memref.load %arg3[%c210] : memref<288xf32, #tpu.memory_space<smem>>
    %1145 = vector.broadcast %1144 : f32 to vector<16x32xf32>
    %1146 = arith.mulf %1145, %941 : vector<16x32xf32>
    %1147 = arith.addf %1143, %1146 : vector<16x32xf32>
    %c211 = arith.constant 211 : index
    %1148 = memref.load %arg3[%c211] : memref<288xf32, #tpu.memory_space<smem>>
    %1149 = vector.broadcast %1148 : f32 to vector<16x32xf32>
    %1150 = arith.mulf %1149, %943 : vector<16x32xf32>
    %1151 = arith.addf %1147, %1150 : vector<16x32xf32>
    %c212 = arith.constant 212 : index
    %1152 = memref.load %arg3[%c212] : memref<288xf32, #tpu.memory_space<smem>>
    %1153 = vector.broadcast %1152 : f32 to vector<16x32xf32>
    %1154 = arith.mulf %1153, %945 : vector<16x32xf32>
    %1155 = arith.addf %1151, %1154 : vector<16x32xf32>
    %c213 = arith.constant 213 : index
    %1156 = memref.load %arg3[%c213] : memref<288xf32, #tpu.memory_space<smem>>
    %1157 = vector.broadcast %1156 : f32 to vector<16x32xf32>
    %1158 = arith.mulf %1157, %947 : vector<16x32xf32>
    %1159 = arith.addf %1155, %1158 : vector<16x32xf32>
    %c214 = arith.constant 214 : index
    %1160 = memref.load %arg3[%c214] : memref<288xf32, #tpu.memory_space<smem>>
    %1161 = vector.broadcast %1160 : f32 to vector<16x32xf32>
    %1162 = arith.mulf %1161, %949 : vector<16x32xf32>
    %1163 = arith.addf %1159, %1162 : vector<16x32xf32>
    %c215 = arith.constant 215 : index
    %1164 = memref.load %arg3[%c215] : memref<288xf32, #tpu.memory_space<smem>>
    %1165 = vector.broadcast %1164 : f32 to vector<16x32xf32>
    %1166 = arith.mulf %1165, %951 : vector<16x32xf32>
    %1167 = arith.addf %1163, %1166 : vector<16x32xf32>
    %c243 = arith.constant 243 : index
    %1168 = memref.load %arg3[%c243] : memref<288xf32, #tpu.memory_space<smem>>
    %1169 = vector.broadcast %1168 : f32 to vector<16x32xf32>
    %1170 = arith.mulf %1169, %935 : vector<16x32xf32>
    %1171 = arith.addf %897, %1170 : vector<16x32xf32>
    %c244 = arith.constant 244 : index
    %1172 = memref.load %arg3[%c244] : memref<288xf32, #tpu.memory_space<smem>>
    %1173 = vector.broadcast %1172 : f32 to vector<16x32xf32>
    %1174 = arith.mulf %1173, %937 : vector<16x32xf32>
    %1175 = arith.addf %1171, %1174 : vector<16x32xf32>
    %c245 = arith.constant 245 : index
    %1176 = memref.load %arg3[%c245] : memref<288xf32, #tpu.memory_space<smem>>
    %1177 = vector.broadcast %1176 : f32 to vector<16x32xf32>
    %1178 = arith.mulf %1177, %939 : vector<16x32xf32>
    %1179 = arith.addf %1175, %1178 : vector<16x32xf32>
    %c246 = arith.constant 246 : index
    %1180 = memref.load %arg3[%c246] : memref<288xf32, #tpu.memory_space<smem>>
    %1181 = vector.broadcast %1180 : f32 to vector<16x32xf32>
    %1182 = arith.mulf %1181, %941 : vector<16x32xf32>
    %1183 = arith.addf %1179, %1182 : vector<16x32xf32>
    %c247 = arith.constant 247 : index
    %1184 = memref.load %arg3[%c247] : memref<288xf32, #tpu.memory_space<smem>>
    %1185 = vector.broadcast %1184 : f32 to vector<16x32xf32>
    %1186 = arith.mulf %1185, %943 : vector<16x32xf32>
    %1187 = arith.addf %1183, %1186 : vector<16x32xf32>
    %c248 = arith.constant 248 : index
    %1188 = memref.load %arg3[%c248] : memref<288xf32, #tpu.memory_space<smem>>
    %1189 = vector.broadcast %1188 : f32 to vector<16x32xf32>
    %1190 = arith.mulf %1189, %945 : vector<16x32xf32>
    %1191 = arith.addf %1187, %1190 : vector<16x32xf32>
    %c249 = arith.constant 249 : index
    %1192 = memref.load %arg3[%c249] : memref<288xf32, #tpu.memory_space<smem>>
    %1193 = vector.broadcast %1192 : f32 to vector<16x32xf32>
    %1194 = arith.mulf %1193, %947 : vector<16x32xf32>
    %1195 = arith.addf %1191, %1194 : vector<16x32xf32>
    %c250 = arith.constant 250 : index
    %1196 = memref.load %arg3[%c250] : memref<288xf32, #tpu.memory_space<smem>>
    %1197 = vector.broadcast %1196 : f32 to vector<16x32xf32>
    %1198 = arith.mulf %1197, %949 : vector<16x32xf32>
    %1199 = arith.addf %1195, %1198 : vector<16x32xf32>
    %c251 = arith.constant 251 : index
    %1200 = memref.load %arg3[%c251] : memref<288xf32, #tpu.memory_space<smem>>
    %1201 = vector.broadcast %1200 : f32 to vector<16x32xf32>
    %1202 = arith.mulf %1201, %951 : vector<16x32xf32>
    %1203 = arith.addf %1199, %1202 : vector<16x32xf32>
    %c279 = arith.constant 279 : index
    %1204 = memref.load %arg3[%c279] : memref<288xf32, #tpu.memory_space<smem>>
    %1205 = vector.broadcast %1204 : f32 to vector<16x32xf32>
    %1206 = arith.mulf %1205, %935 : vector<16x32xf32>
    %1207 = arith.addf %933, %1206 : vector<16x32xf32>
    %c280 = arith.constant 280 : index
    %1208 = memref.load %arg3[%c280] : memref<288xf32, #tpu.memory_space<smem>>
    %1209 = vector.broadcast %1208 : f32 to vector<16x32xf32>
    %1210 = arith.mulf %1209, %937 : vector<16x32xf32>
    %1211 = arith.addf %1207, %1210 : vector<16x32xf32>
    %c281 = arith.constant 281 : index
    %1212 = memref.load %arg3[%c281] : memref<288xf32, #tpu.memory_space<smem>>
    %1213 = vector.broadcast %1212 : f32 to vector<16x32xf32>
    %1214 = arith.mulf %1213, %939 : vector<16x32xf32>
    %1215 = arith.addf %1211, %1214 : vector<16x32xf32>
    %c282 = arith.constant 282 : index
    %1216 = memref.load %arg3[%c282] : memref<288xf32, #tpu.memory_space<smem>>
    %1217 = vector.broadcast %1216 : f32 to vector<16x32xf32>
    %1218 = arith.mulf %1217, %941 : vector<16x32xf32>
    %1219 = arith.addf %1215, %1218 : vector<16x32xf32>
    %c283 = arith.constant 283 : index
    %1220 = memref.load %arg3[%c283] : memref<288xf32, #tpu.memory_space<smem>>
    %1221 = vector.broadcast %1220 : f32 to vector<16x32xf32>
    %1222 = arith.mulf %1221, %943 : vector<16x32xf32>
    %1223 = arith.addf %1219, %1222 : vector<16x32xf32>
    %c284 = arith.constant 284 : index
    %1224 = memref.load %arg3[%c284] : memref<288xf32, #tpu.memory_space<smem>>
    %1225 = vector.broadcast %1224 : f32 to vector<16x32xf32>
    %1226 = arith.mulf %1225, %945 : vector<16x32xf32>
    %1227 = arith.addf %1223, %1226 : vector<16x32xf32>
    %c285 = arith.constant 285 : index
    %1228 = memref.load %arg3[%c285] : memref<288xf32, #tpu.memory_space<smem>>
    %1229 = vector.broadcast %1228 : f32 to vector<16x32xf32>
    %1230 = arith.mulf %1229, %947 : vector<16x32xf32>
    %1231 = arith.addf %1227, %1230 : vector<16x32xf32>
    %c286 = arith.constant 286 : index
    %1232 = memref.load %arg3[%c286] : memref<288xf32, #tpu.memory_space<smem>>
    %1233 = vector.broadcast %1232 : f32 to vector<16x32xf32>
    %1234 = arith.mulf %1233, %949 : vector<16x32xf32>
    %1235 = arith.addf %1231, %1234 : vector<16x32xf32>
    %c287 = arith.constant 287 : index
    %1236 = memref.load %arg3[%c287] : memref<288xf32, #tpu.memory_space<smem>>
    %1237 = vector.broadcast %1236 : f32 to vector<16x32xf32>
    %1238 = arith.mulf %1237, %951 : vector<16x32xf32>
    %1239 = arith.addf %1235, %1238 : vector<16x32xf32>
    %c0_152 = arith.constant 0 : index
    %c0_153 = arith.constant 0 : index
    %c0_154 = arith.constant 0 : index
    %c0_155 = arith.constant 0 : index
    %1240 = vector.load %arg5[%c0_152, %c0_153, %c0_154, %c0_155] : memref<1x8x16x32xf32, #tpu.memory_space<vmem>>, vector<1x1x16x32xf32>
    %1241 = vector.shape_cast %1240 : vector<1x1x16x32xf32> to vector<16x32xf32>
    %1242 = vector.shape_cast %987 : vector<16x32xf32> to vector<1x1x16x32xf32>
    tpu.vector_store %arg5[%c0_152, %c0_153, %c0_154, %c0_155], %1242 {strides = array<i32>} : memref<1x8x16x32xf32, #tpu.memory_space<vmem>>, vector<1x1x16x32xf32>,
    %c0_156 = arith.constant 0 : index
    %c1_157 = arith.constant 1 : index
    %c0_158 = arith.constant 0 : index
    %c0_159 = arith.constant 0 : index
    %1243 = vector.load %arg5[%c0_156, %c1_157, %c0_158, %c0_159] : memref<1x8x16x32xf32, #tpu.memory_space<vmem>>, vector<1x1x16x32xf32>
    %1244 = vector.shape_cast %1243 : vector<1x1x16x32xf32> to vector<16x32xf32>
    %1245 = vector.shape_cast %1023 : vector<16x32xf32> to vector<1x1x16x32xf32>
    tpu.vector_store %arg5[%c0_156, %c1_157, %c0_158, %c0_159], %1245 {strides = array<i32>} : memref<1x8x16x32xf32, #tpu.memory_space<vmem>>, vector<1x1x16x32xf32>,
    %c0_160 = arith.constant 0 : index
    %c2_161 = arith.constant 2 : index
    %c0_162 = arith.constant 0 : index
    %c0_163 = arith.constant 0 : index
    %1246 = vector.load %arg5[%c0_160, %c2_161, %c0_162, %c0_163] : memref<1x8x16x32xf32, #tpu.memory_space<vmem>>, vector<1x1x16x32xf32>
    %1247 = vector.shape_cast %1246 : vector<1x1x16x32xf32> to vector<16x32xf32>
    %1248 = vector.shape_cast %1059 : vector<16x32xf32> to vector<1x1x16x32xf32>
    tpu.vector_store %arg5[%c0_160, %c2_161, %c0_162, %c0_163], %1248 {strides = array<i32>} : memref<1x8x16x32xf32, #tpu.memory_space<vmem>>, vector<1x1x16x32xf32>,
    %c0_164 = arith.constant 0 : index
    %c3_165 = arith.constant 3 : index
    %c0_166 = arith.constant 0 : index
    %c0_167 = arith.constant 0 : index
    %1249 = vector.load %arg5[%c0_164, %c3_165, %c0_166, %c0_167] : memref<1x8x16x32xf32, #tpu.memory_space<vmem>>, vector<1x1x16x32xf32>
    %1250 = vector.shape_cast %1249 : vector<1x1x16x32xf32> to vector<16x32xf32>
    %1251 = vector.shape_cast %1095 : vector<16x32xf32> to vector<1x1x16x32xf32>
    tpu.vector_store %arg5[%c0_164, %c3_165, %c0_166, %c0_167], %1251 {strides = array<i32>} : memref<1x8x16x32xf32, #tpu.memory_space<vmem>>, vector<1x1x16x32xf32>,
    %c0_168 = arith.constant 0 : index
    %c4_169 = arith.constant 4 : index
    %c0_170 = arith.constant 0 : index
    %c0_171 = arith.constant 0 : index
    %1252 = vector.load %arg5[%c0_168, %c4_169, %c0_170, %c0_171] : memref<1x8x16x32xf32, #tpu.memory_space<vmem>>, vector<1x1x16x32xf32>
    %1253 = vector.shape_cast %1252 : vector<1x1x16x32xf32> to vector<16x32xf32>
    %1254 = vector.shape_cast %1131 : vector<16x32xf32> to vector<1x1x16x32xf32>
    tpu.vector_store %arg5[%c0_168, %c4_169, %c0_170, %c0_171], %1254 {strides = array<i32>} : memref<1x8x16x32xf32, #tpu.memory_space<vmem>>, vector<1x1x16x32xf32>,
    %c0_172 = arith.constant 0 : index
    %c5_173 = arith.constant 5 : index
    %c0_174 = arith.constant 0 : index
    %c0_175 = arith.constant 0 : index
    %1255 = vector.load %arg5[%c0_172, %c5_173, %c0_174, %c0_175] : memref<1x8x16x32xf32, #tpu.memory_space<vmem>>, vector<1x1x16x32xf32>
    %1256 = vector.shape_cast %1255 : vector<1x1x16x32xf32> to vector<16x32xf32>
    %1257 = vector.shape_cast %1167 : vector<16x32xf32> to vector<1x1x16x32xf32>
    tpu.vector_store %arg5[%c0_172, %c5_173, %c0_174, %c0_175], %1257 {strides = array<i32>} : memref<1x8x16x32xf32, #tpu.memory_space<vmem>>, vector<1x1x16x32xf32>,
    %c0_176 = arith.constant 0 : index
    %c6_177 = arith.constant 6 : index
    %c0_178 = arith.constant 0 : index
    %c0_179 = arith.constant 0 : index
    %1258 = vector.load %arg5[%c0_176, %c6_177, %c0_178, %c0_179] : memref<1x8x16x32xf32, #tpu.memory_space<vmem>>, vector<1x1x16x32xf32>
    %1259 = vector.shape_cast %1258 : vector<1x1x16x32xf32> to vector<16x32xf32>
    %1260 = vector.shape_cast %1203 : vector<16x32xf32> to vector<1x1x16x32xf32>
    tpu.vector_store %arg5[%c0_176, %c6_177, %c0_178, %c0_179], %1260 {strides = array<i32>} : memref<1x8x16x32xf32, #tpu.memory_space<vmem>>, vector<1x1x16x32xf32>,
    %c0_180 = arith.constant 0 : index
    %c7_181 = arith.constant 7 : index
    %c0_182 = arith.constant 0 : index
    %c0_183 = arith.constant 0 : index
    %1261 = vector.load %arg5[%c0_180, %c7_181, %c0_182, %c0_183] : memref<1x8x16x32xf32, #tpu.memory_space<vmem>>, vector<1x1x16x32xf32>
    %1262 = vector.shape_cast %1261 : vector<1x1x16x32xf32> to vector<16x32xf32>
    %1263 = vector.shape_cast %1239 : vector<16x32xf32> to vector<1x1x16x32xf32>
    tpu.vector_store %arg5[%c0_180, %c7_181, %c0_182, %c0_183], %1263 {strides = array<i32>} : memref<1x8x16x32xf32, #tpu.memory_space<vmem>>, vector<1x1x16x32xf32>,
    return
  }
  func.func @transform_0(%arg0: i32, %arg1: i32) -> (i32, i32, i32, i32) {
    %c2_i32 = arith.constant 2 : i32
    %0 = arith.muli %arg0, %c2_i32 : i32
    %1 = arith.addi %0, %arg1 : i32
    %c0_i32 = arith.constant 0 : i32
    %c0_i32_0 = arith.constant 0 : i32
    %c0_i32_1 = arith.constant 0 : i32
    %c0_i32_2 = arith.constant 0 : i32
    return %1, %c0_i32, %c0_i32_0, %c0_i32_1 : i32, i32, i32, i32
  }
  func.func @transform_1(%arg0: i32, %arg1: i32) -> i32 {
    %c0_i32 = arith.constant 0 : i32
    %c0_i32_0 = arith.constant 0 : i32
    return %c0_i32 : i32
  }
  func.func @transform_2(%arg0: i32, %arg1: i32) -> i32 {
    %c0_i32 = arith.constant 0 : i32
    %c0_i32_0 = arith.constant 0 : i32
    return %c0_i32 : i32
  }
  func.func @transform_3(%arg0: i32, %arg1: i32) -> (i32, i32, i32, i32) {
    %c0_i32 = arith.constant 0 : i32
    %c0_i32_0 = arith.constant 0 : i32
    %c0_i32_1 = arith.constant 0 : i32
    return %arg0, %c0_i32, %arg1, %c0_i32_0 : i32, i32, i32, i32
  }
}

</mosaic_0001>

<llo_original>
// kernel: deconvolutional_block_forward.1
$region0: #{deconvolutional_block_forward.1}
  #allocation0 [shape = 'u32[]', space=smem, size = 0x4, offset = 0x4, fixed_abs, tag = 'smem constant byte address 0x4 - core index']
  #allocation1 [shape = 'u32[144,128]{1,0:T(1,128)}', space=vmem, size = 0x12000, scoped, tag = 'internal scratch']
  #allocation8 [shape = 's32[]', space=sflag, size = 0x4, offset = 0, fixed_abs, tag = 'sflag constant byte address 0x0 - dummy sync flag']
  %s0 = inlined_call_operand.vmem [shape: f32[4,4,18,34], index: 0, kind: input, shape index: {}]
  %s1 = inlined_call_operand.vmem [shape: f32[288], index: 1, kind: input, shape index: {}]
  %s2 = inlined_call_operand.vmem [shape: f32[8], index: 2, kind: input, shape index: {}]
  %s3 = inlined_call_operand.hbm [shape: f32[2,8,32,32], index: 3, kind: output, shape index: {}]
  %s4 = sld [smem:[#allocation0]]
  $region53: #{deconvolutional_block_forward.1} parent=0
    _
  %s6 = ssub.s32 1, %s4
  %s7 = scalar_select 0, %s6, %s4
  $region1: #{deconvolutional_block_forward.1} parent=0
    #allocation2 [shape = 'u8[1536]{0}', space=smem, size = 0x600, scoped, tag = 'input window, operand 1, single buffered']
    #allocation3 [shape = 's32[2]{0}', space=sflag, size = 0x8, scoped, tag = 'scoped memory for deconvolutional_block_forward.1']
    #allocation4 [shape = 's32[2]{0}', space=sflag, size = 0x8, scoped, tag = 'scoped memory for deconvolutional_block_forward.1']
    #allocation5 [shape = 'u8[512]{0}', space=smem, size = 0x200, scoped, tag = 'input window, operand 2, single buffered']
    #allocation6 [shape = 's32[1]{0}', space=sflag, size = 0x4, scoped, tag = 'scoped memory for deconvolutional_block_forward.1']
    #allocation7 [shape = 'u8[131072]{0}', space=vmem, size = 0x20000, scoped, tag = 'output window, operand 0']
    %8 = vsyncpa [#allocation4], 0
    %9 = vsyncpa [#allocation6], 0
    %10 = vsyncpa [#allocation3], 0
    %s11 = scalar_lea.sflag [#allocation3], 1
    %12 = vsyncpa %s11, 0
    loop: start=0, step=1, limit=6
    $region2: #{deconvolutional_block_forward.1} parent=1 // loop_pre_header
      _
    $region3: #{deconvolutional_block_forward.1} parent=1 // loop_header
      %s14 = sphi 0, %s18
      %p15 = scmp.ge.s32.totalorder %s14, 6
      %s21 = sphi 0, %s33
      %s22 = sphi 0, %s29
      %s23 = sphi 0, %s21
      %s24 = sphi 0, %s22
      %s25 = sphi 0, %s23
      %s26 = sphi 0, %s24
      %s40 = sphi 0, %s42
      %s43 = sphi 0, %s40
      %s44 = sphi 0, %s43
      %s60 = sphi 0, %s44
      %s64 = sphi 0, %s64
      %s66 = sphi 0, %s64
      %s67 = sphi 0, %s66
      %s81 = sphi 0, %s67
      %s85 = sphi 0, %s85
      %s87 = sphi 0, %s85
      %s88 = sphi 0, %s87
      %s102 = sphi 0, %s88
      %s110 = sphi 0, %s112
      %s113 = sphi 0, %s110
      %s114 = sphi 0, %s113
      %s130 = sphi 0, %s114
    $region4: #{deconvolutional_block_forward.1} parent=1 // loop_header_branch
      %17 = sbr.rel (%p15) target = $region8
    $region5: #{deconvolutional_block_forward.1} parent=1 // loop_body
      %s19 = ssub.s32 %s14, 1
      %s20 = ssub.s32 %s14, 2
      %s27 = sadd.s32 1, %s22
      %p28 = scmp.ge.s32.totalorder %s27, 2
      %s29 = scalar_select %p28, 0, %s27
      %s30 = sadd.s32 1, %s21
      %s31 = scalar_select %p28, %s30, %s21
      %p32 = scmp.ge.s32.totalorder %s31, 2
      %s33 = scalar_select %p32, 0, %s31
      %s34 = smul.u32 %s21, 2
      %s35 = sadd.s32 %s34, %s22
      %s36 = smul.u32 %s33, 2
      %s37 = sadd.s32 %s36, %s29
      %s38 = ssub.s32 %s35, %s37
      %p39 = scmp.eq.s32.totalorder %s38, 0
      %s41 = sadd.s32 %s40, 1
      %s42 = scalar_select %p39, %s40, %s41
      %p45 = pneg %p39
      %p46 = scmp.eq.s32.totalorder %s14, 3
      %p47 = por %p45, %p46
      %p48 = scmp.ne.s32.totalorder %s40, %s43
      %p49 = scmp.eq.s32.totalorder %s14, 0
      %p50 = por %p48, %p49
      %p51 = scmp.ne.s32.totalorder %s40, %s43
      %p52 = scmp.eq.s32.totalorder %s19, 3
      %p53 = por %p51, %p52
      %p54 = scmp.ne.s32.totalorder %s43, %s44
      %p55 = scmp.eq.s32.totalorder %s19, 0
      %p56 = por %p54, %p55
      %p57 = scmp.ne.s32.totalorder %s43, %s44
      %p58 = scmp.eq.s32.totalorder %s20, 3
      %p59 = por %p57, %p58
      %p61 = scmp.ne.s32.totalorder %s44, %s60
      %p62 = scmp.eq.s32.totalorder %s20, 0
      %p63 = por %p61, %p62
      %s65 = sadd.s32 %s64, 1
      %p68 = scmp.eq.s32.totalorder %s14, 3
      %p69 = scmp.ne.s32.totalorder %s64, %s66
      %p70 = scmp.eq.s32.totalorder %s14, 0
      %p71 = por %p69, %p70
      %p72 = scmp.ne.s32.totalorder %s64, %s66
      %p73 = scmp.eq.s32.totalorder %s19, 3
      %p74 = por %p72, %p73
      %p75 = scmp.ne.s32.totalorder %s66, %s67
      %p76 = scmp.eq.s32.totalorder %s19, 0
      %p77 = por %p75, %p76
      %p78 = scmp.ne.s32.totalorder %s66, %s67
      %p79 = scmp.eq.s32.totalorder %s20, 3
      %p80 = por %p78, %p79
      %p82 = scmp.ne.s32.totalorder %s67, %s81
      %p83 = scmp.eq.s32.totalorder %s20, 0
      %p84 = por %p82, %p83
      %s86 = sadd.s32 %s85, 1
      %p89 = scmp.eq.s32.totalorder %s14, 3
      %p90 = scmp.ne.s32.totalorder %s85, %s87
      %p91 = scmp.eq.s32.totalorder %s14, 0
      %p92 = por %p90, %p91
      %p93 = scmp.ne.s32.totalorder %s85, %s87
      %p94 = scmp.eq.s32.totalorder %s19, 3
      %p95 = por %p93, %p94
      %p96 = scmp.ne.s32.totalorder %s87, %s88
      %p97 = scmp.eq.s32.totalorder %s19, 0
      %p98 = por %p96, %p97
      %p99 = scmp.ne.s32.totalorder %s87, %s88
      %p100 = scmp.eq.s32.totalorder %s20, 3
      %p101 = por %p99, %p100
      %p103 = scmp.ne.s32.totalorder %s88, %s102
      %p104 = scmp.eq.s32.totalorder %s20, 0
      %p105 = por %p103, %p104
      %s106 = ssub.s32 %s21, %s33
      %s107 = ssub.s32 %s22, %s29
      %s108 = sor.u32 %s106, %s107
      %p109 = scmp.eq.s32.totalorder %s108, 0
      %s111 = sadd.s32 %s110, 1
      %s112 = scalar_select %p109, %s110, %s111
      %p115 = pneg %p109
      %p116 = scmp.eq.s32.totalorder %s14, 3
      %p117 = por %p115, %p116
      %p118 = scmp.ne.s32.totalorder %s110, %s113
      %p119 = scmp.eq.s32.totalorder %s14, 0
      %p120 = por %p118, %p119
      %p121 = scmp.ne.s32.totalorder %s110, %s113
      %p122 = scmp.eq.s32.totalorder %s19, 3
      %p123 = por %p121, %p122
      %p124 = scmp.ne.s32.totalorder %s113, %s114
      %p125 = scmp.eq.s32.totalorder %s19, 0
      %p126 = por %p124, %p125
      %p127 = scmp.ne.s32.totalorder %s113, %s114
      %p128 = scmp.eq.s32.totalorder %s20, 3
      %p129 = por %p127, %p128
      %p131 = scmp.ne.s32.totalorder %s114, %s130
      %p132 = scmp.eq.s32.totalorder %s20, 0
      %p133 = por %p131, %p132
      %p134 = scmp.le.s32.totalorder 1, %s14
      %p135 = scmp.lt.s32.totalorder %s14, 5
      %p136 = pnand %p134, %p135
      %p137 = pneg %p136
      // Predicated region
      $region9: #{deconvolutional_block_forward.1} parent=5 // pred_check
        _
      $region10: #{deconvolutional_block_forward.1} parent=5 // pred_check_branch
        %139 = sbr.rel (%p136) target = $region12
      $region11: #{deconvolutional_block_forward.1} parent=5 // pred_region
        %s140 = ssub.s32 %s14, 1
        // Predicated region
        $region13: #{deconvolutional_block_forward.1} parent=11 // pred_check
          %p141 = pneg %p77
        $region14: #{deconvolutional_block_forward.1} parent=11 // pred_check_branch
          %143 = sbr.rel (%p141) target = $region16
        $region15: #{deconvolutional_block_forward.1} parent=11 // pred_region
          %s145 = ssub.s32 48, 48
          %146 = vsyncadd [#allocation4], %s145
          %s148 = sshll.u32 %s1, 4
          %s149 = int_to_ptr.vmem [resolvable:$true] %s148
          %151 = dma.vmem_to_smem %s149, 48, [#allocation2], [#allocation4]
        $region16: #{deconvolutional_block_forward.1} parent=11 // pred_fallthru
          _
        // Predicated region
        $region17: #{deconvolutional_block_forward.1} parent=11 // pred_check
          %p152 = pneg %p98
        $region18: #{deconvolutional_block_forward.1} parent=11 // pred_check_branch
          %154 = sbr.rel (%p152) target = $region20
        $region19: #{deconvolutional_block_forward.1} parent=11 // pred_region
          %s156 = ssub.s32 16, 16
          %157 = vsyncadd [#allocation6], %s156
          %s159 = sshll.u32 %s2, 4
          %s160 = int_to_ptr.vmem [resolvable:$true] %s159
          %162 = dma.vmem_to_smem %s160, 16, [#allocation5], [#allocation6]
        $region20: #{deconvolutional_block_forward.1} parent=11 // pred_fallthru
          _
      $region12: #{deconvolutional_block_forward.1} parent=5 // pred_fallthru
        _
      %p163 = scmp.lt.s32.totalorder %s14, 4
      // Predicated region
      $region21: #{deconvolutional_block_forward.1} parent=5 // pred_check
        %p164 = pneg %p163
      $region22: #{deconvolutional_block_forward.1} parent=5 // pred_check_branch
        %166 = sbr.rel (%p164) target = $region24
      $region23: #{deconvolutional_block_forward.1} parent=5 // pred_region
        // Predicated region
        $region25: #{deconvolutional_block_forward.1} parent=23 // pred_check
          %p167 = pneg %p50
        $region26: #{deconvolutional_block_forward.1} parent=23 // pred_check_branch
          %169 = sbr.rel (%p167) target = $region28
        $region27: #{deconvolutional_block_forward.1} parent=23 // pred_region
          %s170 = smul.u32 %s21, 2
          %s171 = sadd.s32 %s170, %s22
          %p172 = scmp.lt.s32.totalorder %s171, 3
          %s173 = scalar_select %p172, %s171, 3
          %s174 = smul.addr %s173, 12
          %s175 = smul.addr %s174, 8
          %s176 = scalar_lea.vmem %s0, %s175
          %s177 = smul.u32 %s21, 2
          %s178 = sadd.s32 %s177, %s22
        $region28: #{deconvolutional_block_forward.1} parent=23 // pred_fallthru
          _
      $region24: #{deconvolutional_block_forward.1} parent=5 // pred_fallthru
        _
      %p179 = scmp.le.s32.totalorder 1, %s14
      %p180 = scmp.lt.s32.totalorder %s14, 5
      %p181 = pnand %p179, %p180
      %p182 = pneg %p181
      // Predicated region
      $region29: #{deconvolutional_block_forward.1} parent=5 // pred_check
        _
      $region30: #{deconvolutional_block_forward.1} parent=5 // pred_check_branch
        %184 = sbr.rel (%p181) target = $region32
      $region31: #{deconvolutional_block_forward.1} parent=5 // pred_region
        %s185 = ssub.s32 %s14, 1
        // Predicated region
        $region33: #{deconvolutional_block_forward.1} parent=31 // pred_check
          %p186 = pneg %p77
        $region34: #{deconvolutional_block_forward.1} parent=31 // pred_check_branch
          %188 = sbr.rel (%p186) target = $region36
        $region35: #{deconvolutional_block_forward.1} parent=31 // pred_region
          %189 = dma.done [#allocation4], 48
        $region36: #{deconvolutional_block_forward.1} parent=31 // pred_fallthru
          _
        // Predicated region
        $region37: #{deconvolutional_block_forward.1} parent=31 // pred_check
          %p190 = pneg %p98
        $region38: #{deconvolutional_block_forward.1} parent=31 // pred_check_branch
          %192 = sbr.rel (%p190) target = $region40
        $region39: #{deconvolutional_block_forward.1} parent=31 // pred_region
          %193 = dma.done [#allocation6], 16
        $region40: #{deconvolutional_block_forward.1} parent=31 // pred_fallthru
          _
        %194 = sfence
        %s195 = smul.u32 %s23, 2
        %s196 = sadd.s32 %s195, %s24
        %p197 = scmp.lt.s32.totalorder %s196, 3
        %s198 = scalar_select %p197, %s196, 3
        %s199 = smul.addr %s198, 12
        %s200 = smul.addr %s199, 8
        %s201 = scalar_lea.vmem %s0, %s200
        %p202 = pneg %p56
        %p203 = pneg %p53
        %p204 = pneg %p77
        %p205 = pneg %p74
        %p206 = pneg %p98
        %p207 = pneg %p95
        %p208 = pneg %p126
        %p209 = pneg %p123
        %s210 = sand.u32 %s113, 1
        %s211 = scalar_lea.sflag [#allocation3], %s210
        %s212 = sand.u32 %s113, 1
        %s213 = smul.addr %s212, 128
        %s214 = scalar_lea.vmem [#allocation7], %s213
        %s215 = smul.u32 %s23, 2
        %s216 = sadd.s32 %s215, %s24
        %p217 = scmp.lt.s32.totalorder %s216, 3
        %s218 = scalar_select %p217, %s216, 3
        %s219 = smul.addr %s218, 12
        %s220 = smul.addr %s219, 8
        %s221 = scalar_lea.vmem %s0, %s220
        %s222 = smul.u32 %s23, 2
        %s223 = sadd.s32 %s222, %s24
        %s224 = smul.u32 2, %s24
        %s225 = sld [smem:[#allocation5]]
        %v226 = vstv %s225
        %s227 = sld [smem:[#allocation5 + $0x1]]
        %v228 = vstv %s227
        %s229 = sld [smem:[#allocation5 + $0x2]]
        %v230 = vstv %s229
        %s231 = sld [smem:[#allocation5 + $0x3]]
        %v232 = vstv %s231
        %s233 = sld [smem:[#allocation5 + $0x4]]
        %v234 = vstv %s233
        %s235 = sld [smem:[#allocation5 + $0x5]]
        %v236 = vstv %s235
        %s237 = sld [smem:[#allocation5 + $0x6]]
        %v238 = vstv %s237
        %s239 = sld [smem:[#allocation5 + $0x7]]
        %v240 = vstv %s239
        %v241 = vld [vmem:[%s221] sm:$0xff]
        %v242 = vld [vmem:[%s221 + $0x8] sm:$0xff]
        %v243 = vld [vmem:[%s221 + $0x1] sm:$0xff]
        %v244 = vld [vmem:[%s221 + $0x9] sm:$0xff]
        %v245 = vld [vmem:[%s221 + $0x2] sm:$0xff]
        %v246 = vld [vmem:[%s221 + $0xa] sm:$0xff]
        %s247 = sld [smem:[#allocation2]]
        %v248 = vstv %s247
        %v249 = vmul.f32 %v248, %v241
        %v250 = vmul.f32 %v248, %v242
        %v251 = vadd.f32 %v226, %v249
        %v252 = vadd.f32 %v226, %v250
        %s253 = sld [smem:[#allocation2 + $0x1]]
        %v254 = vstv %s253
        %v255 = vmul.f32 %v254, %v241
        %v256 = vmul.f32 %v254, %v242
        %259 = vrot.lane.b32.xlu0 %v255, 127
        %v260 = vpop.permute.xlu0 %259
        %261 = vrot.lane.b32.xlu0 %v256, 127
        %v262 = vpop.permute.xlu0 %261
        %v265 = vadd.f32 %v251, %v260
        %v266 = vadd.f32 %v252, %v262
        %s267 = sld [smem:[#allocation2 + $0x2]]
        %v268 = vstv %s267
        %v269 = vmul.f32 %v268, %v241
        %v270 = vmul.f32 %v268, %v242
        %273 = vrot.lane.b32.xlu0 %v269, 126
        %v274 = vpop.permute.xlu0 %273
        %275 = vrot.lane.b32.xlu0 %v270, 126
        %v276 = vpop.permute.xlu0 %275
        %v279 = vadd.f32 %v265, %v274
        %v280 = vadd.f32 %v266, %v276
        %s281 = sld [smem:[#allocation2 + $0x3]]
        %v282 = vstv %s281
        %v283 = vmul.f32 %v282, %v243
        %v284 = vmul.f32 %v282, %v244
        %v285 = vadd.f32 %v279, %v283
        %v286 = vadd.f32 %v280, %v284
        %s287 = sld [smem:[#allocation2 + $0x4]]
        %v288 = vstv %s287
        %v289 = vmul.f32 %v288, %v243
        %v290 = vmul.f32 %v288, %v244
        %293 = vrot.lane.b32.xlu0 %v289, 127
        %v294 = vpop.permute.xlu0 %293
        %295 = vrot.lane.b32.xlu0 %v290, 127
        %v296 = vpop.permute.xlu0 %295
        %v299 = vadd.f32 %v285, %v294
        %v300 = vadd.f32 %v286, %v296
        %s301 = sld [smem:[#allocation2 + $0x5]]
        %v302 = vstv %s301
        %v303 = vmul.f32 %v302, %v243
        %v304 = vmul.f32 %v302, %v244
        %307 = vrot.lane.b32.xlu0 %v303, 126
        %v308 = vpop.permute.xlu0 %307
        %309 = vrot.lane.b32.xlu0 %v304, 126
        %v310 = vpop.permute.xlu0 %309
        %v313 = vadd.f32 %v299, %v308
        %v314 = vadd.f32 %v300, %v310
        %s315 = sld [smem:[#allocation2 + $0x6]]
        %v316 = vstv %s315
        %v317 = vmul.f32 %v316, %v245
        %v318 = vmul.f32 %v316, %v246
        %v319 = vadd.f32 %v313, %v317
        %v320 = vadd.f32 %v314, %v318
        %s321 = sld [smem:[#allocation2 + $0x7]]
        %v322 = vstv %s321
        %v323 = vmul.f32 %v322, %v245
        %v324 = vmul.f32 %v322, %v246
        %327 = vrot.lane.b32.xlu0 %v323, 127
        %v328 = vpop.permute.xlu0 %327
        %329 = vrot.lane.b32.xlu0 %v324, 127
        %v330 = vpop.permute.xlu0 %329
        %v333 = vadd.f32 %v319, %v328
        %v334 = vadd.f32 %v320, %v330
        %s335 = sld [smem:[#allocation2 + $0x8]]
        %v336 = vstv %s335
        %v337 = vmul.f32 %v336, %v245
        %v338 = vmul.f32 %v336, %v246
        %341 = vrot.lane.b32.xlu0 %v337, 126
        %v342 = vpop.permute.xlu0 %341
        %343 = vrot.lane.b32.xlu0 %v338, 126
        %v344 = vpop.permute.xlu0 %343
        %v347 = vadd.f32 %v333, %v342
        %v348 = vadd.f32 %v334, %v344
        %s349 = sld [smem:[#allocation2 + $0x24]]
        %v350 = vstv %s349
        %v351 = vmul.f32 %v350, %v241
        %v352 = vmul.f32 %v350, %v242
        %v353 = vadd.f32 %v228, %v351
        %v354 = vadd.f32 %v228, %v352
        %s355 = sld [smem:[#allocation2 + $0x25]]
        %v356 = vstv %s355
        %v357 = vmul.f32 %v356, %v241
        %v358 = vmul.f32 %v356, %v242
        %361 = vrot.lane.b32.xlu0 %v357, 127
        %v362 = vpop.permute.xlu0 %361
        %363 = vrot.lane.b32.xlu0 %v358, 127
        %v364 = vpop.permute.xlu0 %363
        %v367 = vadd.f32 %v353, %v362
        %v368 = vadd.f32 %v354, %v364
        %s369 = sld [smem:[#allocation2 + $0x26]]
        %v370 = vstv %s369
        %v371 = vmul.f32 %v370, %v241
        %v372 = vmul.f32 %v370, %v242
        %375 = vrot.lane.b32.xlu0 %v371, 126
        %v376 = vpop.permute.xlu0 %375
        %377 = vrot.lane.b32.xlu0 %v372, 126
        %v378 = vpop.permute.xlu0 %377
        %v381 = vadd.f32 %v367, %v376
        %v382 = vadd.f32 %v368, %v378
        %s383 = sld [smem:[#allocation2 + $0x27]]
        %v384 = vstv %s383
        %v385 = vmul.f32 %v384, %v243
        %v386 = vmul.f32 %v384, %v244
        %v387 = vadd.f32 %v381, %v385
        %v388 = vadd.f32 %v382, %v386
        %s389 = sld [smem:[#allocation2 + $0x28]]
        %v390 = vstv %s389
        %v391 = vmul.f32 %v390, %v243
        %v392 = vmul.f32 %v390, %v244
        %395 = vrot.lane.b32.xlu0 %v391, 127
        %v396 = vpop.permute.xlu0 %395
        %397 = vrot.lane.b32.xlu0 %v392, 127
        %v398 = vpop.permute.xlu0 %397
        %v401 = vadd.f32 %v387, %v396
        %v402 = vadd.f32 %v388, %v398
        %s403 = sld [smem:[#allocation2 + $0x29]]
        %v404 = vstv %s403
        %v405 = vmul.f32 %v404, %v243
        %v406 = vmul.f32 %v404, %v244
        %409 = vrot.lane.b32.xlu0 %v405, 126
        %v410 = vpop.permute.xlu0 %409
        %411 = vrot.lane.b32.xlu0 %v406, 126
        %v412 = vpop.permute.xlu0 %411
        %v415 = vadd.f32 %v401, %v410
        %v416 = vadd.f32 %v402, %v412
        %s417 = sld [smem:[#allocation2 + $0x2a]]
        %v418 = vstv %s417
        %v419 = vmul.f32 %v418, %v245
        %v420 = vmul.f32 %v418, %v246
        %v421 = vadd.f32 %v415, %v419
        %v422 = vadd.f32 %v416, %v420
        %s423 = sld [smem:[#allocation2 + $0x2b]]
        %v424 = vstv %s423
        %v425 = vmul.f32 %v424, %v245
        %v426 = vmul.f32 %v424, %v246
        %429 = vrot.lane.b32.xlu0 %v425, 127
        %v430 = vpop.permute.xlu0 %429
        %431 = vrot.lane.b32.xlu0 %v426, 127
        %v432 = vpop.permute.xlu0 %431
        %v435 = vadd.f32 %v421, %v430
        %v436 = vadd.f32 %v422, %v432
        %s437 = sld [smem:[#allocation2 + $0x2c]]
        %v438 = vstv %s437
        %v439 = vmul.f32 %v438, %v245
        %v440 = vmul.f32 %v438, %v246
        %443 = vrot.lane.b32.xlu0 %v439, 126
        %v444 = vpop.permute.xlu0 %443
        %445 = vrot.lane.b32.xlu0 %v440, 126
        %v446 = vpop.permute.xlu0 %445
        %v449 = vadd.f32 %v435, %v444
        %v450 = vadd.f32 %v436, %v446
        %s451 = sld [smem:[#allocation2 + $0x48]]
        %v452 = vstv %s451
        %v453 = vmul.f32 %v452, %v241
        %v454 = vmul.f32 %v452, %v242
        %v455 = vadd.f32 %v230, %v453
        %v456 = vadd.f32 %v230, %v454
        %s457 = sld [smem:[#allocation2 + $0x49]]
        %v458 = vstv %s457
        %v459 = vmul.f32 %v458, %v241
        %v460 = vmul.f32 %v458, %v242
        %463 = vrot.lane.b32.xlu0 %v459, 127
        %v464 = vpop.permute.xlu0 %463
        %465 = vrot.lane.b32.xlu0 %v460, 127
        %v466 = vpop.permute.xlu0 %465
        %v469 = vadd.f32 %v455, %v464
        %v470 = vadd.f32 %v456, %v466
        %s471 = sld [smem:[#allocation2 + $0x4a]]
        %v472 = vstv %s471
        %v473 = vmul.f32 %v472, %v241
        %v474 = vmul.f32 %v472, %v242
        %477 = vrot.lane.b32.xlu0 %v473, 126
        %v478 = vpop.permute.xlu0 %477
        %479 = vrot.lane.b32.xlu0 %v474, 126
        %v480 = vpop.permute.xlu0 %479
        %v483 = vadd.f32 %v469, %v478
        %v484 = vadd.f32 %v470, %v480
        %s485 = sld [smem:[#allocation2 + $0x4b]]
        %v486 = vstv %s485
        %v487 = vmul.f32 %v486, %v243
        %v488 = vmul.f32 %v486, %v244
        %v489 = vadd.f32 %v483, %v487
        %v490 = vadd.f32 %v484, %v488
        %s491 = sld [smem:[#allocation2 + $0x4c]]
        %v492 = vstv %s491
        %v493 = vmul.f32 %v492, %v243
        %v494 = vmul.f32 %v492, %v244
        %497 = vrot.lane.b32.xlu0 %v493, 127
        %v498 = vpop.permute.xlu0 %497
        %499 = vrot.lane.b32.xlu0 %v494, 127
        %v500 = vpop.permute.xlu0 %499
        %v503 = vadd.f32 %v489, %v498
        %v504 = vadd.f32 %v490, %v500
        %s505 = sld [smem:[#allocation2 + $0x4d]]
        %v506 = vstv %s505
        %v507 = vmul.f32 %v506, %v243
        %v508 = vmul.f32 %v506, %v244
        %511 = vrot.lane.b32.xlu0 %v507, 126
        %v512 = vpop.permute.xlu0 %511
        %513 = vrot.lane.b32.xlu0 %v508, 126
        %v514 = vpop.permute.xlu0 %513
        %v517 = vadd.f32 %v503, %v512
        %v518 = vadd.f32 %v504, %v514
        %s519 = sld [smem:[#allocation2 + $0x4e]]
        %v520 = vstv %s519
        %v521 = vmul.f32 %v520, %v245
        %v522 = vmul.f32 %v520, %v246
        %v523 = vadd.f32 %v517, %v521
        %v524 = vadd.f32 %v518, %v522
        %s525 = sld [smem:[#allocation2 + $0x4f]]
        %v526 = vstv %s525
        %v527 = vmul.f32 %v526, %v245
        %v528 = vmul.f32 %v526, %v246
        %531 = vrot.lane.b32.xlu0 %v527, 127
        %v532 = vpop.permute.xlu0 %531
        %533 = vrot.lane.b32.xlu0 %v528, 127
        %v534 = vpop.permute.xlu0 %533
        %v537 = vadd.f32 %v523, %v532
        %v538 = vadd.f32 %v524, %v534
        %s539 = sld [smem:[#allocation2 + $0x50]]
        %v540 = vstv %s539
        %v541 = vmul.f32 %v540, %v245
        %v542 = vmul.f32 %v540, %v246
        %545 = vrot.lane.b32.xlu0 %v541, 126
        %v546 = vpop.permute.xlu0 %545
        %547 = vrot.lane.b32.xlu0 %v542, 126
        %v548 = vpop.permute.xlu0 %547
        %v551 = vadd.f32 %v537, %v546
        %v552 = vadd.f32 %v538, %v548
        %s553 = sld [smem:[#allocation2 + $0x6c]]
        %v554 = vstv %s553
        %v555 = vmul.f32 %v554, %v241
        %v556 = vmul.f32 %v554, %v242
        %v557 = vadd.f32 %v232, %v555
        %v558 = vadd.f32 %v232, %v556
        %s559 = sld [smem:[#allocation2 + $0x6d]]
        %v560 = vstv %s559
        %v561 = vmul.f32 %v560, %v241
        %v562 = vmul.f32 %v560, %v242
        %565 = vrot.lane.b32.xlu0 %v561, 127
        %v566 = vpop.permute.xlu0 %565
        %567 = vrot.lane.b32.xlu0 %v562, 127
        %v568 = vpop.permute.xlu0 %567
        %v571 = vadd.f32 %v557, %v566
        %v572 = vadd.f32 %v558, %v568
        %s573 = sld [smem:[#allocation2 + $0x6e]]
        %v574 = vstv %s573
        %v575 = vmul.f32 %v574, %v241
        %v576 = vmul.f32 %v574, %v242
        %579 = vrot.lane.b32.xlu0 %v575, 126
        %v580 = vpop.permute.xlu0 %579
        %581 = vrot.lane.b32.xlu0 %v576, 126
        %v582 = vpop.permute.xlu0 %581
        %v585 = vadd.f32 %v571, %v580
        %v586 = vadd.f32 %v572, %v582
        %s587 = sld [smem:[#allocation2 + $0x6f]]
        %v588 = vstv %s587
        %v589 = vmul.f32 %v588, %v243
        %v590 = vmul.f32 %v588, %v244
        %v591 = vadd.f32 %v585, %v589
        %v592 = vadd.f32 %v586, %v590
        %s593 = sld [smem:[#allocation2 + $0x70]]
        %v594 = vstv %s593
        %v595 = vmul.f32 %v594, %v243
        %v596 = vmul.f32 %v594, %v244
        %599 = vrot.lane.b32.xlu0 %v595, 127
        %v600 = vpop.permute.xlu0 %599
        %601 = vrot.lane.b32.xlu0 %v596, 127
        %v602 = vpop.permute.xlu0 %601
        %v605 = vadd.f32 %v591, %v600
        %v606 = vadd.f32 %v592, %v602
        %s607 = sld [smem:[#allocation2 + $0x71]]
        %v608 = vstv %s607
        %v609 = vmul.f32 %v608, %v243
        %v610 = vmul.f32 %v608, %v244
        %613 = vrot.lane.b32.xlu0 %v609, 126
        %v614 = vpop.permute.xlu0 %613
        %615 = vrot.lane.b32.xlu0 %v610, 126
        %v616 = vpop.permute.xlu0 %615
        %v619 = vadd.f32 %v605, %v614
        %v620 = vadd.f32 %v606, %v616
        %s621 = sld [smem:[#allocation2 + $0x72]]
        %v622 = vstv %s621
        %v623 = vmul.f32 %v622, %v245
        %v624 = vmul.f32 %v622, %v246
        %v625 = vadd.f32 %v619, %v623
        %v626 = vadd.f32 %v620, %v624
        %s627 = sld [smem:[#allocation2 + $0x73]]
        %v628 = vstv %s627
        %v629 = vmul.f32 %v628, %v245
        %v630 = vmul.f32 %v628, %v246
        %633 = vrot.lane.b32.xlu0 %v629, 127
        %v634 = vpop.permute.xlu0 %633
        %635 = vrot.lane.b32.xlu0 %v630, 127
        %v636 = vpop.permute.xlu0 %635
        %v639 = vadd.f32 %v625, %v634
        %v640 = vadd.f32 %v626, %v636
        %s641 = sld [smem:[#allocation2 + $0x74]]
        %v642 = vstv %s641
        %v643 = vmul.f32 %v642, %v245
        %v644 = vmul.f32 %v642, %v246
        %647 = vrot.lane.b32.xlu0 %v643, 126
        %v648 = vpop.permute.xlu0 %647
        %649 = vrot.lane.b32.xlu0 %v644, 126
        %v650 = vpop.permute.xlu0 %649
        %v653 = vadd.f32 %v639, %v648
        %v654 = vadd.f32 %v640, %v650
        %s655 = sld [smem:[#allocation2 + $0x90]]
        %v656 = vstv %s655
        %v657 = vmul.f32 %v656, %v241
        %v658 = vmul.f32 %v656, %v242
        %v659 = vadd.f32 %v234, %v657
        %v660 = vadd.f32 %v234, %v658
        %s661 = sld [smem:[#allocation2 + $0x91]]
        %v662 = vstv %s661
        %v663 = vmul.f32 %v662, %v241
        %v664 = vmul.f32 %v662, %v242
        %667 = vrot.lane.b32.xlu0 %v663, 127
        %v668 = vpop.permute.xlu0 %667
        %669 = vrot.lane.b32.xlu0 %v664, 127
        %v670 = vpop.permute.xlu0 %669
        %v673 = vadd.f32 %v659, %v668
        %v674 = vadd.f32 %v660, %v670
        %s675 = sld [smem:[#allocation2 + $0x92]]
        %v676 = vstv %s675
        %v677 = vmul.f32 %v676, %v241
        %v678 = vmul.f32 %v676, %v242
        %681 = vrot.lane.b32.xlu0 %v677, 126
        %v682 = vpop.permute.xlu0 %681
        %683 = vrot.lane.b32.xlu0 %v678, 126
        %v684 = vpop.permute.xlu0 %683
        %v687 = vadd.f32 %v673, %v682
        %v688 = vadd.f32 %v674, %v684
        %s689 = sld [smem:[#allocation2 + $0x93]]
        %v690 = vstv %s689
        %v691 = vmul.f32 %v690, %v243
        %v692 = vmul.f32 %v690, %v244
        %v693 = vadd.f32 %v687, %v691
        %v694 = vadd.f32 %v688, %v692
        %s695 = sld [smem:[#allocation2 + $0x94]]
        %v696 = vstv %s695
        %v697 = vmul.f32 %v696, %v243
        %v698 = vmul.f32 %v696, %v244
        %701 = vrot.lane.b32.xlu0 %v697, 127
        %v702 = vpop.permute.xlu0 %701
        %703 = vrot.lane.b32.xlu0 %v698, 127
        %v704 = vpop.permute.xlu0 %703
        %v707 = vadd.f32 %v693, %v702
        %v708 = vadd.f32 %v694, %v704
        %s709 = sld [smem:[#allocation2 + $0x95]]
        %v710 = vstv %s709
        %v711 = vmul.f32 %v710, %v243
        %v712 = vmul.f32 %v710, %v244
        %715 = vrot.lane.b32.xlu0 %v711, 126
        %v716 = vpop.permute.xlu0 %715
        %717 = vrot.lane.b32.xlu0 %v712, 126
        %v718 = vpop.permute.xlu0 %717
        %v721 = vadd.f32 %v707, %v716
        %v722 = vadd.f32 %v708, %v718
        %s723 = sld [smem:[#allocation2 + $0x96]]
        %v724 = vstv %s723
        %v725 = vmul.f32 %v724, %v245
        %v726 = vmul.f32 %v724, %v246
        %v727 = vadd.f32 %v721, %v725
        %v728 = vadd.f32 %v722, %v726
        %s729 = sld [smem:[#allocation2 + $0x97]]
        %v730 = vstv %s729
        %v731 = vmul.f32 %v730, %v245
        %v732 = vmul.f32 %v730, %v246
        %735 = vrot.lane.b32.xlu0 %v731, 127
        %v736 = vpop.permute.xlu0 %735
        %737 = vrot.lane.b32.xlu0 %v732, 127
        %v738 = vpop.permute.xlu0 %737
        %v741 = vadd.f32 %v727, %v736
        %v742 = vadd.f32 %v728, %v738
        %s743 = sld [smem:[#allocation2 + $0x98]]
        %v744 = vstv %s743
        %v745 = vmul.f32 %v744, %v245
        %v746 = vmul.f32 %v744, %v246
        %749 = vrot.lane.b32.xlu0 %v745, 126
        %v750 = vpop.permute.xlu0 %749
        %751 = vrot.lane.b32.xlu0 %v746, 126
        %v752 = vpop.permute.xlu0 %751
        %v755 = vadd.f32 %v741, %v750
        %v756 = vadd.f32 %v742, %v752
        %s757 = sld [smem:[#allocation2 + $0xb4]]
        %v758 = vstv %s757
        %v759 = vmul.f32 %v758, %v241
        %v760 = vmul.f32 %v758, %v242
        %v761 = vadd.f32 %v236, %v759
        %v762 = vadd.f32 %v236, %v760
        %s763 = sld [smem:[#allocation2 + $0xb5]]
        %v764 = vstv %s763
        %v765 = vmul.f32 %v764, %v241
        %v766 = vmul.f32 %v764, %v242
        %769 = vrot.lane.b32.xlu0 %v765, 127
        %v770 = vpop.permute.xlu0 %769
        %771 = vrot.lane.b32.xlu0 %v766, 127
        %v772 = vpop.permute.xlu0 %771
        %v775 = vadd.f32 %v761, %v770
        %v776 = vadd.f32 %v762, %v772
        %s777 = sld [smem:[#allocation2 + $0xb6]]
        %v778 = vstv %s777
        %v779 = vmul.f32 %v778, %v241
        %v780 = vmul.f32 %v778, %v242
        %783 = vrot.lane.b32.xlu0 %v779, 126
        %v784 = vpop.permute.xlu0 %783
        %785 = vrot.lane.b32.xlu0 %v780, 126
        %v786 = vpop.permute.xlu0 %785
        %v789 = vadd.f32 %v775, %v784
        %v790 = vadd.f32 %v776, %v786
        %s791 = sld [smem:[#allocation2 + $0xb7]]
        %v792 = vstv %s791
        %v793 = vmul.f32 %v792, %v243
        %v794 = vmul.f32 %v792, %v244
        %v795 = vadd.f32 %v789, %v793
        %v796 = vadd.f32 %v790, %v794
        %s797 = sld [smem:[#allocation2 + $0xb8]]
        %v798 = vstv %s797
        %v799 = vmul.f32 %v798, %v243
        %v800 = vmul.f32 %v798, %v244
        %803 = vrot.lane.b32.xlu0 %v799, 127
        %v804 = vpop.permute.xlu0 %803
        %805 = vrot.lane.b32.xlu0 %v800, 127
        %v806 = vpop.permute.xlu0 %805
        %v809 = vadd.f32 %v795, %v804
        %v810 = vadd.f32 %v796, %v806
        %s811 = sld [smem:[#allocation2 + $0xb9]]
        %v812 = vstv %s811
        %v813 = vmul.f32 %v812, %v243
        %v814 = vmul.f32 %v812, %v244
        %817 = vrot.lane.b32.xlu0 %v813, 126
        %v818 = vpop.permute.xlu0 %817
        %819 = vrot.lane.b32.xlu0 %v814, 126
        %v820 = vpop.permute.xlu0 %819
        %v823 = vadd.f32 %v809, %v818
        %v824 = vadd.f32 %v810, %v820
        %s825 = sld [smem:[#allocation2 + $0xba]]
        %v826 = vstv %s825
        %v827 = vmul.f32 %v826, %v245
        %v828 = vmul.f32 %v826, %v246
        %v829 = vadd.f32 %v823, %v827
        %v830 = vadd.f32 %v824, %v828
        %s831 = sld [smem:[#allocation2 + $0xbb]]
        %v832 = vstv %s831
        %v833 = vmul.f32 %v832, %v245
        %v834 = vmul.f32 %v832, %v246
        %837 = vrot.lane.b32.xlu0 %v833, 127
        %v838 = vpop.permute.xlu0 %837
        %839 = vrot.lane.b32.xlu0 %v834, 127
        %v840 = vpop.permute.xlu0 %839
        %v843 = vadd.f32 %v829, %v838
        %v844 = vadd.f32 %v830, %v840
        %s845 = sld [smem:[#allocation2 + $0xbc]]
        %v846 = vstv %s845
        %v847 = vmul.f32 %v846, %v245
        %v848 = vmul.f32 %v846, %v246
        %851 = vrot.lane.b32.xlu0 %v847, 126
        %v852 = vpop.permute.xlu0 %851
        %853 = vrot.lane.b32.xlu0 %v848, 126
        %v854 = vpop.permute.xlu0 %853
        %v857 = vadd.f32 %v843, %v852
        %v858 = vadd.f32 %v844, %v854
        %s859 = sld [smem:[#allocation2 + $0xd8]]
        %v860 = vstv %s859
        %v861 = vmul.f32 %v860, %v241
        %v862 = vmul.f32 %v860, %v242
        %v863 = vadd.f32 %v238, %v861
        %v864 = vadd.f32 %v238, %v862
        %s865 = sld [smem:[#allocation2 + $0xd9]]
        %v866 = vstv %s865
        %v867 = vmul.f32 %v866, %v241
        %v868 = vmul.f32 %v866, %v242
        %871 = vrot.lane.b32.xlu0 %v867, 127
        %v872 = vpop.permute.xlu0 %871
        %873 = vrot.lane.b32.xlu0 %v868, 127
        %v874 = vpop.permute.xlu0 %873
        %v877 = vadd.f32 %v863, %v872
        %v878 = vadd.f32 %v864, %v874
        %s879 = sld [smem:[#allocation2 + $0xda]]
        %v880 = vstv %s879
        %v881 = vmul.f32 %v880, %v241
        %v882 = vmul.f32 %v880, %v242
        %885 = vrot.lane.b32.xlu0 %v881, 126
        %v886 = vpop.permute.xlu0 %885
        %887 = vrot.lane.b32.xlu0 %v882, 126
        %v888 = vpop.permute.xlu0 %887
        %v891 = vadd.f32 %v877, %v886
        %v892 = vadd.f32 %v878, %v888
        %s893 = sld [smem:[#allocation2 + $0xdb]]
        %v894 = vstv %s893
        %v895 = vmul.f32 %v894, %v243
        %v896 = vmul.f32 %v894, %v244
        %v897 = vadd.f32 %v891, %v895
        %v898 = vadd.f32 %v892, %v896
        %s899 = sld [smem:[#allocation2 + $0xdc]]
        %v900 = vstv %s899
        %v901 = vmul.f32 %v900, %v243
        %v902 = vmul.f32 %v900, %v244
        %905 = vrot.lane.b32.xlu0 %v901, 127
        %v906 = vpop.permute.xlu0 %905
        %907 = vrot.lane.b32.xlu0 %v902, 127
        %v908 = vpop.permute.xlu0 %907
        %v911 = vadd.f32 %v897, %v906
        %v912 = vadd.f32 %v898, %v908
        %s913 = sld [smem:[#allocation2 + $0xdd]]
        %v914 = vstv %s913
        %v915 = vmul.f32 %v914, %v243
        %v916 = vmul.f32 %v914, %v244
        %919 = vrot.lane.b32.xlu0 %v915, 126
        %v920 = vpop.permute.xlu0 %919
        %921 = vrot.lane.b32.xlu0 %v916, 126
        %v922 = vpop.permute.xlu0 %921
        %v925 = vadd.f32 %v911, %v920
        %v926 = vadd.f32 %v912, %v922
        %s927 = sld [smem:[#allocation2 + $0xde]]
        %v928 = vstv %s927
        %v929 = vmul.f32 %v928, %v245
        %v930 = vmul.f32 %v928, %v246
        %v931 = vadd.f32 %v925, %v929
        %v932 = vadd.f32 %v926, %v930
        %s933 = sld [smem:[#allocation2 + $0xdf]]
        %v934 = vstv %s933
        %v935 = vmul.f32 %v934, %v245
        %v936 = vmul.f32 %v934, %v246
        %939 = vrot.lane.b32.xlu0 %v935, 127
        %v940 = vpop.permute.xlu0 %939
        %941 = vrot.lane.b32.xlu0 %v936, 127
        %v942 = vpop.permute.xlu0 %941
        %v945 = vadd.f32 %v931, %v940
        %v946 = vadd.f32 %v932, %v942
        %s947 = sld [smem:[#allocation2 + $0xe0]]
        %v948 = vstv %s947
        %v949 = vmul.f32 %v948, %v245
        %v950 = vmul.f32 %v948, %v246
        %953 = vrot.lane.b32.xlu0 %v949, 126
        %v954 = vpop.permute.xlu0 %953
        %955 = vrot.lane.b32.xlu0 %v950, 126
        %v956 = vpop.permute.xlu0 %955
        %v959 = vadd.f32 %v945, %v954
        %v960 = vadd.f32 %v946, %v956
        %s961 = sld [smem:[#allocation2 + $0xfc]]
        %v962 = vstv %s961
        %v963 = vmul.f32 %v962, %v241
        %v964 = vmul.f32 %v962, %v242
        %v965 = vadd.f32 %v240, %v963
        %v966 = vadd.f32 %v240, %v964
        %s967 = sld [smem:[#allocation2 + $0xfd]]
        %v968 = vstv %s967
        %v969 = vmul.f32 %v968, %v241
        %v970 = vmul.f32 %v968, %v242
        %973 = vrot.lane.b32.xlu0 %v969, 127
        %v974 = vpop.permute.xlu0 %973
        %975 = vrot.lane.b32.xlu0 %v970, 127
        %v976 = vpop.permute.xlu0 %975
        %v979 = vadd.f32 %v965, %v974
        %v980 = vadd.f32 %v966, %v976
        %s981 = sld [smem:[#allocation2 + $0xfe]]
        %v982 = vstv %s981
        %v983 = vmul.f32 %v982, %v241
        %v984 = vmul.f32 %v982, %v242
        %987 = vrot.lane.b32.xlu0 %v983, 126
        %v988 = vpop.permute.xlu0 %987
        %989 = vrot.lane.b32.xlu0 %v984, 126
        %v990 = vpop.permute.xlu0 %989
        %v993 = vadd.f32 %v979, %v988
        %v994 = vadd.f32 %v980, %v990
        %s995 = sld [smem:[#allocation2 + $0xff]]
        %v996 = vstv %s995
        %v997 = vmul.f32 %v996, %v243
        %v998 = vmul.f32 %v996, %v244
        %v999 = vadd.f32 %v993, %v997
        %v1000 = vadd.f32 %v994, %v998
        %s1001 = sld [smem:[#allocation2 + $0x100]]
        %v1002 = vstv %s1001
        %v1003 = vmul.f32 %v1002, %v243
        %v1004 = vmul.f32 %v1002, %v244
        %1007 = vrot.lane.b32.xlu0 %v1003, 127
        %v1008 = vpop.permute.xlu0 %1007
        %1009 = vrot.lane.b32.xlu0 %v1004, 127
        %v1010 = vpop.permute.xlu0 %1009
        %v1013 = vadd.f32 %v999, %v1008
        %v1014 = vadd.f32 %v1000, %v1010
        %s1015 = sld [smem:[#allocation2 + $0x101]]
        %v1016 = vstv %s1015
        %v1017 = vmul.f32 %v1016, %v243
        %v1018 = vmul.f32 %v1016, %v244
        %1021 = vrot.lane.b32.xlu0 %v1017, 126
        %v1022 = vpop.permute.xlu0 %1021
        %1023 = vrot.lane.b32.xlu0 %v1018, 126
        %v1024 = vpop.permute.xlu0 %1023
        %v1027 = vadd.f32 %v1013, %v1022
        %v1028 = vadd.f32 %v1014, %v1024
        %s1029 = sld [smem:[#allocation2 + $0x102]]
        %v1030 = vstv %s1029
        %v1031 = vmul.f32 %v1030, %v245
        %v1032 = vmul.f32 %v1030, %v246
        %v1033 = vadd.f32 %v1027, %v1031
        %v1034 = vadd.f32 %v1028, %v1032
        %s1035 = sld [smem:[#allocation2 + $0x103]]
        %v1036 = vstv %s1035
        %v1037 = vmul.f32 %v1036, %v245
        %v1038 = vmul.f32 %v1036, %v246
        %1041 = vrot.lane.b32.xlu0 %v1037, 127
        %v1042 = vpop.permute.xlu0 %1041
        %1043 = vrot.lane.b32.xlu0 %v1038, 127
        %v1044 = vpop.permute.xlu0 %1043
        %v1047 = vadd.f32 %v1033, %v1042
        %v1048 = vadd.f32 %v1034, %v1044
        %s1049 = sld [smem:[#allocation2 + $0x104]]
        %v1050 = vstv %s1049
        %v1051 = vmul.f32 %v1050, %v245
        %v1052 = vmul.f32 %v1050, %v246
        %1055 = vrot.lane.b32.xlu0 %v1051, 126
        %v1056 = vpop.permute.xlu0 %1055
        %1057 = vrot.lane.b32.xlu0 %v1052, 126
        %v1058 = vpop.permute.xlu0 %1057
        %v1061 = vadd.f32 %v1047, %v1056
        %v1062 = vadd.f32 %v1048, %v1058
        %s1063 = scalar_lea.vmem %s221, 24
        %v1064 = vld [vmem:[%s1063] sm:$0xff]
        %v1065 = vld [vmem:[%s1063 + $0x8] sm:$0xff]
        %v1066 = vld [vmem:[%s1063 + $0x1] sm:$0xff]
        %v1067 = vld [vmem:[%s1063 + $0x9] sm:$0xff]
        %v1068 = vld [vmem:[%s1063 + $0x2] sm:$0xff]
        %v1069 = vld [vmem:[%s1063 + $0xa] sm:$0xff]
        %s1070 = sld [smem:[#allocation2 + $0x9]]
        %v1071 = vstv %s1070
        %v1072 = vmul.f32 %v1071, %v1064
        %v1073 = vmul.f32 %v1071, %v1065
        %v1074 = vadd.f32 %v347, %v1072
        %v1075 = vadd.f32 %v348, %v1073
        %s1076 = sld [smem:[#allocation2 + $0xa]]
        %v1077 = vstv %s1076
        %v1078 = vmul.f32 %v1077, %v1064
        %v1079 = vmul.f32 %v1077, %v1065
        %1082 = vrot.lane.b32.xlu0 %v1078, 127
        %v1083 = vpop.permute.xlu0 %1082
        %1084 = vrot.lane.b32.xlu0 %v1079, 127
        %v1085 = vpop.permute.xlu0 %1084
        %v1088 = vadd.f32 %v1074, %v1083
        %v1089 = vadd.f32 %v1075, %v1085
        %s1090 = sld [smem:[#allocation2 + $0xb]]
        %v1091 = vstv %s1090
        %v1092 = vmul.f32 %v1091, %v1064
        %v1093 = vmul.f32 %v1091, %v1065
        %1096 = vrot.lane.b32.xlu0 %v1092, 126
        %v1097 = vpop.permute.xlu0 %1096
        %1098 = vrot.lane.b32.xlu0 %v1093, 126
        %v1099 = vpop.permute.xlu0 %1098
        %v1102 = vadd.f32 %v1088, %v1097
        %v1103 = vadd.f32 %v1089, %v1099
        %s1104 = sld [smem:[#allocation2 + $0xc]]
        %v1105 = vstv %s1104
        %v1106 = vmul.f32 %v1105, %v1066
        %v1107 = vmul.f32 %v1105, %v1067
        %v1108 = vadd.f32 %v1102, %v1106
        %v1109 = vadd.f32 %v1103, %v1107
        %s1110 = sld [smem:[#allocation2 + $0xd]]
        %v1111 = vstv %s1110
        %v1112 = vmul.f32 %v1111, %v1066
        %v1113 = vmul.f32 %v1111, %v1067
        %1116 = vrot.lane.b32.xlu0 %v1112, 127
        %v1117 = vpop.permute.xlu0 %1116
        %1118 = vrot.lane.b32.xlu0 %v1113, 127
        %v1119 = vpop.permute.xlu0 %1118
        %v1122 = vadd.f32 %v1108, %v1117
        %v1123 = vadd.f32 %v1109, %v1119
        %s1124 = sld [smem:[#allocation2 + $0xe]]
        %v1125 = vstv %s1124
        %v1126 = vmul.f32 %v1125, %v1066
        %v1127 = vmul.f32 %v1125, %v1067
        %1130 = vrot.lane.b32.xlu0 %v1126, 126
        %v1131 = vpop.permute.xlu0 %1130
        %1132 = vrot.lane.b32.xlu0 %v1127, 126
        %v1133 = vpop.permute.xlu0 %1132
        %v1136 = vadd.f32 %v1122, %v1131
        %v1137 = vadd.f32 %v1123, %v1133
        %s1138 = sld [smem:[#allocation2 + $0xf]]
        %v1139 = vstv %s1138
        %v1140 = vmul.f32 %v1139, %v1068
        %v1141 = vmul.f32 %v1139, %v1069
        %v1142 = vadd.f32 %v1136, %v1140
        %v1143 = vadd.f32 %v1137, %v1141
        %s1144 = sld [smem:[#allocation2 + $0x10]]
        %v1145 = vstv %s1144
        %v1146 = vmul.f32 %v1145, %v1068
        %v1147 = vmul.f32 %v1145, %v1069
        %1150 = vrot.lane.b32.xlu0 %v1146, 127
        %v1151 = vpop.permute.xlu0 %1150
        %1152 = vrot.lane.b32.xlu0 %v1147, 127
        %v1153 = vpop.permute.xlu0 %1152
        %v1156 = vadd.f32 %v1142, %v1151
        %v1157 = vadd.f32 %v1143, %v1153
        %s1158 = sld [smem:[#allocation2 + $0x11]]
        %v1159 = vstv %s1158
        %v1160 = vmul.f32 %v1159, %v1068
        %v1161 = vmul.f32 %v1159, %v1069
        %1164 = vrot.lane.b32.xlu0 %v1160, 126
        %v1165 = vpop.permute.xlu0 %1164
        %1166 = vrot.lane.b32.xlu0 %v1161, 126
        %v1167 = vpop.permute.xlu0 %1166
        %v1170 = vadd.f32 %v1156, %v1165
        %v1171 = vadd.f32 %v1157, %v1167
        %s1172 = sld [smem:[#allocation2 + $0x2d]]
        %v1173 = vstv %s1172
        %v1174 = vmul.f32 %v1173, %v1064
        %v1175 = vmul.f32 %v1173, %v1065
        %v1176 = vadd.f32 %v449, %v1174
        %v1177 = vadd.f32 %v450, %v1175
        %s1178 = sld [smem:[#allocation2 + $0x2e]]
        %v1179 = vstv %s1178
        %v1180 = vmul.f32 %v1179, %v1064
        %v1181 = vmul.f32 %v1179, %v1065
        %1184 = vrot.lane.b32.xlu0 %v1180, 127
        %v1185 = vpop.permute.xlu0 %1184
        %1186 = vrot.lane.b32.xlu0 %v1181, 127
        %v1187 = vpop.permute.xlu0 %1186
        %v1190 = vadd.f32 %v1176, %v1185
        %v1191 = vadd.f32 %v1177, %v1187
        %s1192 = sld [smem:[#allocation2 + $0x2f]]
        %v1193 = vstv %s1192
        %v1194 = vmul.f32 %v1193, %v1064
        %v1195 = vmul.f32 %v1193, %v1065
        %1198 = vrot.lane.b32.xlu0 %v1194, 126
        %v1199 = vpop.permute.xlu0 %1198
        %1200 = vrot.lane.b32.xlu0 %v1195, 126
        %v1201 = vpop.permute.xlu0 %1200
        %v1204 = vadd.f32 %v1190, %v1199
        %v1205 = vadd.f32 %v1191, %v1201
        %s1206 = sld [smem:[#allocation2 + $0x30]]
        %v1207 = vstv %s1206
        %v1208 = vmul.f32 %v1207, %v1066
        %v1209 = vmul.f32 %v1207, %v1067
        %v1210 = vadd.f32 %v1204, %v1208
        %v1211 = vadd.f32 %v1205, %v1209
        %s1212 = sld [smem:[#allocation2 + $0x31]]
        %v1213 = vstv %s1212
        %v1214 = vmul.f32 %v1213, %v1066
        %v1215 = vmul.f32 %v1213, %v1067
        %1218 = vrot.lane.b32.xlu0 %v1214, 127
        %v1219 = vpop.permute.xlu0 %1218
        %1220 = vrot.lane.b32.xlu0 %v1215, 127
        %v1221 = vpop.permute.xlu0 %1220
        %v1224 = vadd.f32 %v1210, %v1219
        %v1225 = vadd.f32 %v1211, %v1221
        %s1226 = sld [smem:[#allocation2 + $0x32]]
        %v1227 = vstv %s1226
        %v1228 = vmul.f32 %v1227, %v1066
        %v1229 = vmul.f32 %v1227, %v1067
        %1232 = vrot.lane.b32.xlu0 %v1228, 126
        %v1233 = vpop.permute.xlu0 %1232
        %1234 = vrot.lane.b32.xlu0 %v1229, 126
        %v1235 = vpop.permute.xlu0 %1234
        %v1238 = vadd.f32 %v1224, %v1233
        %v1239 = vadd.f32 %v1225, %v1235
        %s1240 = sld [smem:[#allocation2 + $0x33]]
        %v1241 = vstv %s1240
        %v1242 = vmul.f32 %v1241, %v1068
        %v1243 = vmul.f32 %v1241, %v1069
        %v1244 = vadd.f32 %v1238, %v1242
        %v1245 = vadd.f32 %v1239, %v1243
        %s1246 = sld [smem:[#allocation2 + $0x34]]
        %v1247 = vstv %s1246
        %v1248 = vmul.f32 %v1247, %v1068
        %v1249 = vmul.f32 %v1247, %v1069
        %1252 = vrot.lane.b32.xlu0 %v1248, 127
        %v1253 = vpop.permute.xlu0 %1252
        %1254 = vrot.lane.b32.xlu0 %v1249, 127
        %v1255 = vpop.permute.xlu0 %1254
        %v1258 = vadd.f32 %v1244, %v1253
        %v1259 = vadd.f32 %v1245, %v1255
        %s1260 = sld [smem:[#allocation2 + $0x35]]
        %v1261 = vstv %s1260
        %v1262 = vmul.f32 %v1261, %v1068
        %v1263 = vmul.f32 %v1261, %v1069
        %1266 = vrot.lane.b32.xlu0 %v1262, 126
        %v1267 = vpop.permute.xlu0 %1266
        %1268 = vrot.lane.b32.xlu0 %v1263, 126
        %v1269 = vpop.permute.xlu0 %1268
        %v1272 = vadd.f32 %v1258, %v1267
        %v1273 = vadd.f32 %v1259, %v1269
        %s1274 = sld [smem:[#allocation2 + $0x51]]
        %v1275 = vstv %s1274
        %v1276 = vmul.f32 %v1275, %v1064
        %v1277 = vmul.f32 %v1275, %v1065
        %v1278 = vadd.f32 %v551, %v1276
        %v1279 = vadd.f32 %v552, %v1277
        %s1280 = sld [smem:[#allocation2 + $0x52]]
        %v1281 = vstv %s1280
        %v1282 = vmul.f32 %v1281, %v1064
        %v1283 = vmul.f32 %v1281, %v1065
        %1286 = vrot.lane.b32.xlu0 %v1282, 127
        %v1287 = vpop.permute.xlu0 %1286
        %1288 = vrot.lane.b32.xlu0 %v1283, 127
        %v1289 = vpop.permute.xlu0 %1288
        %v1292 = vadd.f32 %v1278, %v1287
        %v1293 = vadd.f32 %v1279, %v1289
        %s1294 = sld [smem:[#allocation2 + $0x53]]
        %v1295 = vstv %s1294
        %v1296 = vmul.f32 %v1295, %v1064
        %v1297 = vmul.f32 %v1295, %v1065
        %1300 = vrot.lane.b32.xlu0 %v1296, 126
        %v1301 = vpop.permute.xlu0 %1300
        %1302 = vrot.lane.b32.xlu0 %v1297, 126
        %v1303 = vpop.permute.xlu0 %1302
        %v1306 = vadd.f32 %v1292, %v1301
        %v1307 = vadd.f32 %v1293, %v1303
        %s1308 = sld [smem:[#allocation2 + $0x54]]
        %v1309 = vstv %s1308
        %v1310 = vmul.f32 %v1309, %v1066
        %v1311 = vmul.f32 %v1309, %v1067
        %v1312 = vadd.f32 %v1306, %v1310
        %v1313 = vadd.f32 %v1307, %v1311
        %s1314 = sld [smem:[#allocation2 + $0x55]]
        %v1315 = vstv %s1314
        %v1316 = vmul.f32 %v1315, %v1066
        %v1317 = vmul.f32 %v1315, %v1067
        %1320 = vrot.lane.b32.xlu0 %v1316, 127
        %v1321 = vpop.permute.xlu0 %1320
        %1322 = vrot.lane.b32.xlu0 %v1317, 127
        %v1323 = vpop.permute.xlu0 %1322
        %v1326 = vadd.f32 %v1312, %v1321
        %v1327 = vadd.f32 %v1313, %v1323
        %s1328 = sld [smem:[#allocation2 + $0x56]]
        %v1329 = vstv %s1328
        %v1330 = vmul.f32 %v1329, %v1066
        %v1331 = vmul.f32 %v1329, %v1067
        %1334 = vrot.lane.b32.xlu0 %v1330, 126
        %v1335 = vpop.permute.xlu0 %1334
        %1336 = vrot.lane.b32.xlu0 %v1331, 126
        %v1337 = vpop.permute.xlu0 %1336
        %v1340 = vadd.f32 %v1326, %v1335
        %v1341 = vadd.f32 %v1327, %v1337
        %s1342 = sld [smem:[#allocation2 + $0x57]]
        %v1343 = vstv %s1342
        %v1344 = vmul.f32 %v1343, %v1068
        %v1345 = vmul.f32 %v1343, %v1069
        %v1346 = vadd.f32 %v1340, %v1344
        %v1347 = vadd.f32 %v1341, %v1345
        %s1348 = sld [smem:[#allocation2 + $0x58]]
        %v1349 = vstv %s1348
        %v1350 = vmul.f32 %v1349, %v1068
        %v1351 = vmul.f32 %v1349, %v1069
        %1354 = vrot.lane.b32.xlu0 %v1350, 127
        %v1355 = vpop.permute.xlu0 %1354
        %1356 = vrot.lane.b32.xlu0 %v1351, 127
        %v1357 = vpop.permute.xlu0 %1356
        %v1360 = vadd.f32 %v1346, %v1355
        %v1361 = vadd.f32 %v1347, %v1357
        %s1362 = sld [smem:[#allocation2 + $0x59]]
        %v1363 = vstv %s1362
        %v1364 = vmul.f32 %v1363, %v1068
        %v1365 = vmul.f32 %v1363, %v1069
        %1368 = vrot.lane.b32.xlu0 %v1364, 126
        %v1369 = vpop.permute.xlu0 %1368
        %1370 = vrot.lane.b32.xlu0 %v1365, 126
        %v1371 = vpop.permute.xlu0 %1370
        %v1374 = vadd.f32 %v1360, %v1369
        %v1375 = vadd.f32 %v1361, %v1371
        %s1376 = sld [smem:[#allocation2 + $0x75]]
        %v1377 = vstv %s1376
        %v1378 = vmul.f32 %v1377, %v1064
        %v1379 = vmul.f32 %v1377, %v1065
        %v1380 = vadd.f32 %v653, %v1378
        %v1381 = vadd.f32 %v654, %v1379
        %s1382 = sld [smem:[#allocation2 + $0x76]]
        %v1383 = vstv %s1382
        %v1384 = vmul.f32 %v1383, %v1064
        %v1385 = vmul.f32 %v1383, %v1065
        %1388 = vrot.lane.b32.xlu0 %v1384, 127
        %v1389 = vpop.permute.xlu0 %1388
        %1390 = vrot.lane.b32.xlu0 %v1385, 127
        %v1391 = vpop.permute.xlu0 %1390
        %v1394 = vadd.f32 %v1380, %v1389
        %v1395 = vadd.f32 %v1381, %v1391
        %s1396 = sld [smem:[#allocation2 + $0x77]]
        %v1397 = vstv %s1396
        %v1398 = vmul.f32 %v1397, %v1064
        %v1399 = vmul.f32 %v1397, %v1065
        %1402 = vrot.lane.b32.xlu0 %v1398, 126
        %v1403 = vpop.permute.xlu0 %1402
        %1404 = vrot.lane.b32.xlu0 %v1399, 126
        %v1405 = vpop.permute.xlu0 %1404
        %v1408 = vadd.f32 %v1394, %v1403
        %v1409 = vadd.f32 %v1395, %v1405
        %s1410 = sld [smem:[#allocation2 + $0x78]]
        %v1411 = vstv %s1410
        %v1412 = vmul.f32 %v1411, %v1066
        %v1413 = vmul.f32 %v1411, %v1067
        %v1414 = vadd.f32 %v1408, %v1412
        %v1415 = vadd.f32 %v1409, %v1413
        %s1416 = sld [smem:[#allocation2 + $0x79]]
        %v1417 = vstv %s1416
        %v1418 = vmul.f32 %v1417, %v1066
        %v1419 = vmul.f32 %v1417, %v1067
        %1422 = vrot.lane.b32.xlu0 %v1418, 127
        %v1423 = vpop.permute.xlu0 %1422
        %1424 = vrot.lane.b32.xlu0 %v1419, 127
        %v1425 = vpop.permute.xlu0 %1424
        %v1428 = vadd.f32 %v1414, %v1423
        %v1429 = vadd.f32 %v1415, %v1425
        %s1430 = sld [smem:[#allocation2 + $0x7a]]
        %v1431 = vstv %s1430
        %v1432 = vmul.f32 %v1431, %v1066
        %v1433 = vmul.f32 %v1431, %v1067
        %1436 = vrot.lane.b32.xlu0 %v1432, 126
        %v1437 = vpop.permute.xlu0 %1436
        %1438 = vrot.lane.b32.xlu0 %v1433, 126
        %v1439 = vpop.permute.xlu0 %1438
        %v1442 = vadd.f32 %v1428, %v1437
        %v1443 = vadd.f32 %v1429, %v1439
        %s1444 = sld [smem:[#allocation2 + $0x7b]]
        %v1445 = vstv %s1444
        %v1446 = vmul.f32 %v1445, %v1068
        %v1447 = vmul.f32 %v1445, %v1069
        %v1448 = vadd.f32 %v1442, %v1446
        %v1449 = vadd.f32 %v1443, %v1447
        %s1450 = sld [smem:[#allocation2 + $0x7c]]
        %v1451 = vstv %s1450
        %v1452 = vmul.f32 %v1451, %v1068
        %v1453 = vmul.f32 %v1451, %v1069
        %1456 = vrot.lane.b32.xlu0 %v1452, 127
        %v1457 = vpop.permute.xlu0 %1456
        %1458 = vrot.lane.b32.xlu0 %v1453, 127
        %v1459 = vpop.permute.xlu0 %1458
        %v1462 = vadd.f32 %v1448, %v1457
        %v1463 = vadd.f32 %v1449, %v1459
        %s1464 = sld [smem:[#allocation2 + $0x7d]]
        %v1465 = vstv %s1464
        %v1466 = vmul.f32 %v1465, %v1068
        %v1467 = vmul.f32 %v1465, %v1069
        %1470 = vrot.lane.b32.xlu0 %v1466, 126
        %v1471 = vpop.permute.xlu0 %1470
        %1472 = vrot.lane.b32.xlu0 %v1467, 126
        %v1473 = vpop.permute.xlu0 %1472
        %v1476 = vadd.f32 %v1462, %v1471
        %v1477 = vadd.f32 %v1463, %v1473
        %s1478 = sld [smem:[#allocation2 + $0x99]]
        %v1479 = vstv %s1478
        %v1480 = vmul.f32 %v1479, %v1064
        %v1481 = vmul.f32 %v1479, %v1065
        %v1482 = vadd.f32 %v755, %v1480
        %v1483 = vadd.f32 %v756, %v1481
        %s1484 = sld [smem:[#allocation2 + $0x9a]]
        %v1485 = vstv %s1484
        %v1486 = vmul.f32 %v1485, %v1064
        %v1487 = vmul.f32 %v1485, %v1065
        %1490 = vrot.lane.b32.xlu0 %v1486, 127
        %v1491 = vpop.permute.xlu0 %1490
        %1492 = vrot.lane.b32.xlu0 %v1487, 127
        %v1493 = vpop.permute.xlu0 %1492
        %v1496 = vadd.f32 %v1482, %v1491
        %v1497 = vadd.f32 %v1483, %v1493
        %s1498 = sld [smem:[#allocation2 + $0x9b]]
        %v1499 = vstv %s1498
        %v1500 = vmul.f32 %v1499, %v1064
        %v1501 = vmul.f32 %v1499, %v1065
        %1504 = vrot.lane.b32.xlu0 %v1500, 126
        %v1505 = vpop.permute.xlu0 %1504
        %1506 = vrot.lane.b32.xlu0 %v1501, 126
        %v1507 = vpop.permute.xlu0 %1506
        %v1510 = vadd.f32 %v1496, %v1505
        %v1511 = vadd.f32 %v1497, %v1507
        %s1512 = sld [smem:[#allocation2 + $0x9c]]
        %v1513 = vstv %s1512
        %v1514 = vmul.f32 %v1513, %v1066
        %v1515 = vmul.f32 %v1513, %v1067
        %v1516 = vadd.f32 %v1510, %v1514
        %v1517 = vadd.f32 %v1511, %v1515
        %s1518 = sld [smem:[#allocation2 + $0x9d]]
        %v1519 = vstv %s1518
        %v1520 = vmul.f32 %v1519, %v1066
        %v1521 = vmul.f32 %v1519, %v1067
        %1524 = vrot.lane.b32.xlu0 %v1520, 127
        %v1525 = vpop.permute.xlu0 %1524
        %1526 = vrot.lane.b32.xlu0 %v1521, 127
        %v1527 = vpop.permute.xlu0 %1526
        %v1530 = vadd.f32 %v1516, %v1525
        %v1531 = vadd.f32 %v1517, %v1527
        %s1532 = sld [smem:[#allocation2 + $0x9e]]
        %v1533 = vstv %s1532
        %v1534 = vmul.f32 %v1533, %v1066
        %v1535 = vmul.f32 %v1533, %v1067
        %1538 = vrot.lane.b32.xlu0 %v1534, 126
        %v1539 = vpop.permute.xlu0 %1538
        %1540 = vrot.lane.b32.xlu0 %v1535, 126
        %v1541 = vpop.permute.xlu0 %1540
        %v1544 = vadd.f32 %v1530, %v1539
        %v1545 = vadd.f32 %v1531, %v1541
        %s1546 = sld [smem:[#allocation2 + $0x9f]]
        %v1547 = vstv %s1546
        %v1548 = vmul.f32 %v1547, %v1068
        %v1549 = vmul.f32 %v1547, %v1069
        %v1550 = vadd.f32 %v1544, %v1548
        %v1551 = vadd.f32 %v1545, %v1549
        %s1552 = sld [smem:[#allocation2 + $0xa0]]
        %v1553 = vstv %s1552
        %v1554 = vmul.f32 %v1553, %v1068
        %v1555 = vmul.f32 %v1553, %v1069
        %1558 = vrot.lane.b32.xlu0 %v1554, 127
        %v1559 = vpop.permute.xlu0 %1558
        %1560 = vrot.lane.b32.xlu0 %v1555, 127
        %v1561 = vpop.permute.xlu0 %1560
        %v1564 = vadd.f32 %v1550, %v1559
        %v1565 = vadd.f32 %v1551, %v1561
        %s1566 = sld [smem:[#allocation2 + $0xa1]]
        %v1567 = vstv %s1566
        %v1568 = vmul.f32 %v1567, %v1068
        %v1569 = vmul.f32 %v1567, %v1069
        %1572 = vrot.lane.b32.xlu0 %v1568, 126
        %v1573 = vpop.permute.xlu0 %1572
        %1574 = vrot.lane.b32.xlu0 %v1569, 126
        %v1575 = vpop.permute.xlu0 %1574
        %v1578 = vadd.f32 %v1564, %v1573
        %v1579 = vadd.f32 %v1565, %v1575
        %s1580 = sld [smem:[#allocation2 + $0xbd]]
        %v1581 = vstv %s1580
        %v1582 = vmul.f32 %v1581, %v1064
        %v1583 = vmul.f32 %v1581, %v1065
        %v1584 = vadd.f32 %v857, %v1582
        %v1585 = vadd.f32 %v858, %v1583
        %s1586 = sld [smem:[#allocation2 + $0xbe]]
        %v1587 = vstv %s1586
        %v1588 = vmul.f32 %v1587, %v1064
        %v1589 = vmul.f32 %v1587, %v1065
        %1592 = vrot.lane.b32.xlu0 %v1588, 127
        %v1593 = vpop.permute.xlu0 %1592
        %1594 = vrot.lane.b32.xlu0 %v1589, 127
        %v1595 = vpop.permute.xlu0 %1594
        %v1598 = vadd.f32 %v1584, %v1593
        %v1599 = vadd.f32 %v1585, %v1595
        %s1600 = sld [smem:[#allocation2 + $0xbf]]
        %v1601 = vstv %s1600
        %v1602 = vmul.f32 %v1601, %v1064
        %v1603 = vmul.f32 %v1601, %v1065
        %1606 = vrot.lane.b32.xlu0 %v1602, 126
        %v1607 = vpop.permute.xlu0 %1606
        %1608 = vrot.lane.b32.xlu0 %v1603, 126
        %v1609 = vpop.permute.xlu0 %1608
        %v1612 = vadd.f32 %v1598, %v1607
        %v1613 = vadd.f32 %v1599, %v1609
        %s1614 = sld [smem:[#allocation2 + $0xc0]]
        %v1615 = vstv %s1614
        %v1616 = vmul.f32 %v1615, %v1066
        %v1617 = vmul.f32 %v1615, %v1067
        %v1618 = vadd.f32 %v1612, %v1616
        %v1619 = vadd.f32 %v1613, %v1617
        %s1620 = sld [smem:[#allocation2 + $0xc1]]
        %v1621 = vstv %s1620
        %v1622 = vmul.f32 %v1621, %v1066
        %v1623 = vmul.f32 %v1621, %v1067
        %1626 = vrot.lane.b32.xlu0 %v1622, 127
        %v1627 = vpop.permute.xlu0 %1626
        %1628 = vrot.lane.b32.xlu0 %v1623, 127
        %v1629 = vpop.permute.xlu0 %1628
        %v1632 = vadd.f32 %v1618, %v1627
        %v1633 = vadd.f32 %v1619, %v1629
        %s1634 = sld [smem:[#allocation2 + $0xc2]]
        %v1635 = vstv %s1634
        %v1636 = vmul.f32 %v1635, %v1066
        %v1637 = vmul.f32 %v1635, %v1067
        %1640 = vrot.lane.b32.xlu0 %v1636, 126
        %v1641 = vpop.permute.xlu0 %1640
        %1642 = vrot.lane.b32.xlu0 %v1637, 126
        %v1643 = vpop.permute.xlu0 %1642
        %v1646 = vadd.f32 %v1632, %v1641
        %v1647 = vadd.f32 %v1633, %v1643
        %s1648 = sld [smem:[#allocation2 + $0xc3]]
        %v1649 = vstv %s1648
        %v1650 = vmul.f32 %v1649, %v1068
        %v1651 = vmul.f32 %v1649, %v1069
        %v1652 = vadd.f32 %v1646, %v1650
        %v1653 = vadd.f32 %v1647, %v1651
        %s1654 = sld [smem:[#allocation2 + $0xc4]]
        %v1655 = vstv %s1654
        %v1656 = vmul.f32 %v1655, %v1068
        %v1657 = vmul.f32 %v1655, %v1069
        %1660 = vrot.lane.b32.xlu0 %v1656, 127
        %v1661 = vpop.permute.xlu0 %1660
        %1662 = vrot.lane.b32.xlu0 %v1657, 127
        %v1663 = vpop.permute.xlu0 %1662
        %v1666 = vadd.f32 %v1652, %v1661
        %v1667 = vadd.f32 %v1653, %v1663
        %s1668 = sld [smem:[#allocation2 + $0xc5]]
        %v1669 = vstv %s1668
        %v1670 = vmul.f32 %v1669, %v1068
        %v1671 = vmul.f32 %v1669, %v1069
        %1674 = vrot.lane.b32.xlu0 %v1670, 126
        %v1675 = vpop.permute.xlu0 %1674
        %1676 = vrot.lane.b32.xlu0 %v1671, 126
        %v1677 = vpop.permute.xlu0 %1676
        %v1680 = vadd.f32 %v1666, %v1675
        %v1681 = vadd.f32 %v1667, %v1677
        %s1682 = sld [smem:[#allocation2 + $0xe1]]
        %v1683 = vstv %s1682
        %v1684 = vmul.f32 %v1683, %v1064
        %v1685 = vmul.f32 %v1683, %v1065
        %v1686 = vadd.f32 %v959, %v1684
        %v1687 = vadd.f32 %v960, %v1685
        %s1688 = sld [smem:[#allocation2 + $0xe2]]
        %v1689 = vstv %s1688
        %v1690 = vmul.f32 %v1689, %v1064
        %v1691 = vmul.f32 %v1689, %v1065
        %1694 = vrot.lane.b32.xlu0 %v1690, 127
        %v1695 = vpop.permute.xlu0 %1694
        %1696 = vrot.lane.b32.xlu0 %v1691, 127
        %v1697 = vpop.permute.xlu0 %1696
        %v1700 = vadd.f32 %v1686, %v1695
        %v1701 = vadd.f32 %v1687, %v1697
        %s1702 = sld [smem:[#allocation2 + $0xe3]]
        %v1703 = vstv %s1702
        %v1704 = vmul.f32 %v1703, %v1064
        %v1705 = vmul.f32 %v1703, %v1065
        %1708 = vrot.lane.b32.xlu0 %v1704, 126
        %v1709 = vpop.permute.xlu0 %1708
        %1710 = vrot.lane.b32.xlu0 %v1705, 126
        %v1711 = vpop.permute.xlu0 %1710
        %v1714 = vadd.f32 %v1700, %v1709
        %v1715 = vadd.f32 %v1701, %v1711
        %s1716 = sld [smem:[#allocation2 + $0xe4]]
        %v1717 = vstv %s1716
        %v1718 = vmul.f32 %v1717, %v1066
        %v1719 = vmul.f32 %v1717, %v1067
        %v1720 = vadd.f32 %v1714, %v1718
        %v1721 = vadd.f32 %v1715, %v1719
        %s1722 = sld [smem:[#allocation2 + $0xe5]]
        %v1723 = vstv %s1722
        %v1724 = vmul.f32 %v1723, %v1066
        %v1725 = vmul.f32 %v1723, %v1067
        %1728 = vrot.lane.b32.xlu0 %v1724, 127
        %v1729 = vpop.permute.xlu0 %1728
        %1730 = vrot.lane.b32.xlu0 %v1725, 127
        %v1731 = vpop.permute.xlu0 %1730
        %v1734 = vadd.f32 %v1720, %v1729
        %v1735 = vadd.f32 %v1721, %v1731
        %s1736 = sld [smem:[#allocation2 + $0xe6]]
        %v1737 = vstv %s1736
        %v1738 = vmul.f32 %v1737, %v1066
        %v1739 = vmul.f32 %v1737, %v1067
        %1742 = vrot.lane.b32.xlu0 %v1738, 126
        %v1743 = vpop.permute.xlu0 %1742
        %1744 = vrot.lane.b32.xlu0 %v1739, 126
        %v1745 = vpop.permute.xlu0 %1744
        %v1748 = vadd.f32 %v1734, %v1743
        %v1749 = vadd.f32 %v1735, %v1745
        %s1750 = sld [smem:[#allocation2 + $0xe7]]
        %v1751 = vstv %s1750
        %v1752 = vmul.f32 %v1751, %v1068
        %v1753 = vmul.f32 %v1751, %v1069
        %v1754 = vadd.f32 %v1748, %v1752
        %v1755 = vadd.f32 %v1749, %v1753
        %s1756 = sld [smem:[#allocation2 + $0xe8]]
        %v1757 = vstv %s1756
        %v1758 = vmul.f32 %v1757, %v1068
        %v1759 = vmul.f32 %v1757, %v1069
        %1762 = vrot.lane.b32.xlu0 %v1758, 127
        %v1763 = vpop.permute.xlu0 %1762
        %1764 = vrot.lane.b32.xlu0 %v1759, 127
        %v1765 = vpop.permute.xlu0 %1764
        %v1768 = vadd.f32 %v1754, %v1763
        %v1769 = vadd.f32 %v1755, %v1765
        %s1770 = sld [smem:[#allocation2 + $0xe9]]
        %v1771 = vstv %s1770
        %v1772 = vmul.f32 %v1771, %v1068
        %v1773 = vmul.f32 %v1771, %v1069
        %1776 = vrot.lane.b32.xlu0 %v1772, 126
        %v1777 = vpop.permute.xlu0 %1776
        %1778 = vrot.lane.b32.xlu0 %v1773, 126
        %v1779 = vpop.permute.xlu0 %1778
        %v1782 = vadd.f32 %v1768, %v1777
        %v1783 = vadd.f32 %v1769, %v1779
        %s1784 = sld [smem:[#allocation2 + $0x105]]
        %v1785 = vstv %s1784
        %v1786 = vmul.f32 %v1785, %v1064
        %v1787 = vmul.f32 %v1785, %v1065
        %v1788 = vadd.f32 %v1061, %v1786
        %v1789 = vadd.f32 %v1062, %v1787
        %s1790 = sld [smem:[#allocation2 + $0x106]]
        %v1791 = vstv %s1790
        %v1792 = vmul.f32 %v1791, %v1064
        %v1793 = vmul.f32 %v1791, %v1065
        %1796 = vrot.lane.b32.xlu0 %v1792, 127
        %v1797 = vpop.permute.xlu0 %1796
        %1798 = vrot.lane.b32.xlu0 %v1793, 127
        %v1799 = vpop.permute.xlu0 %1798
        %v1802 = vadd.f32 %v1788, %v1797
        %v1803 = vadd.f32 %v1789, %v1799
        %s1804 = sld [smem:[#allocation2 + $0x107]]
        %v1805 = vstv %s1804
        %v1806 = vmul.f32 %v1805, %v1064
        %v1807 = vmul.f32 %v1805, %v1065
        %1810 = vrot.lane.b32.xlu0 %v1806, 126
        %v1811 = vpop.permute.xlu0 %1810
        %1812 = vrot.lane.b32.xlu0 %v1807, 126
        %v1813 = vpop.permute.xlu0 %1812
        %v1816 = vadd.f32 %v1802, %v1811
        %v1817 = vadd.f32 %v1803, %v1813
        %s1818 = sld [smem:[#allocation2 + $0x108]]
        %v1819 = vstv %s1818
        %v1820 = vmul.f32 %v1819, %v1066
        %v1821 = vmul.f32 %v1819, %v1067
        %v1822 = vadd.f32 %v1816, %v1820
        %v1823 = vadd.f32 %v1817, %v1821
        %s1824 = sld [smem:[#allocation2 + $0x109]]
        %v1825 = vstv %s1824
        %v1826 = vmul.f32 %v1825, %v1066
        %v1827 = vmul.f32 %v1825, %v1067
        %1830 = vrot.lane.b32.xlu0 %v1826, 127
        %v1831 = vpop.permute.xlu0 %1830
        %1832 = vrot.lane.b32.xlu0 %v1827, 127
        %v1833 = vpop.permute.xlu0 %1832
        %v1836 = vadd.f32 %v1822, %v1831
        %v1837 = vadd.f32 %v1823, %v1833
        %s1838 = sld [smem:[#allocation2 + $0x10a]]
        %v1839 = vstv %s1838
        %v1840 = vmul.f32 %v1839, %v1066
        %v1841 = vmul.f32 %v1839, %v1067
        %1844 = vrot.lane.b32.xlu0 %v1840, 126
        %v1845 = vpop.permute.xlu0 %1844
        %1846 = vrot.lane.b32.xlu0 %v1841, 126
        %v1847 = vpop.permute.xlu0 %1846
        %v1850 = vadd.f32 %v1836, %v1845
        %v1851 = vadd.f32 %v1837, %v1847
        %s1852 = sld [smem:[#allocation2 + $0x10b]]
        %v1853 = vstv %s1852
        %v1854 = vmul.f32 %v1853, %v1068
        %v1855 = vmul.f32 %v1853, %v1069
        %v1856 = vadd.f32 %v1850, %v1854
        %v1857 = vadd.f32 %v1851, %v1855
        %s1858 = sld [smem:[#allocation2 + $0x10c]]
        %v1859 = vstv %s1858
        %v1860 = vmul.f32 %v1859, %v1068
        %v1861 = vmul.f32 %v1859, %v1069
        %1864 = vrot.lane.b32.xlu0 %v1860, 127
        %v1865 = vpop.permute.xlu0 %1864
        %1866 = vrot.lane.b32.xlu0 %v1861, 127
        %v1867 = vpop.permute.xlu0 %1866
        %v1870 = vadd.f32 %v1856, %v1865
        %v1871 = vadd.f32 %v1857, %v1867
        %s1872 = sld [smem:[#allocation2 + $0x10d]]
        %v1873 = vstv %s1872
        %v1874 = vmul.f32 %v1873, %v1068
        %v1875 = vmul.f32 %v1873, %v1069
        %1878 = vrot.lane.b32.xlu0 %v1874, 126
        %v1879 = vpop.permute.xlu0 %1878
        %1880 = vrot.lane.b32.xlu0 %v1875, 126
        %v1881 = vpop.permute.xlu0 %1880
        %v1884 = vadd.f32 %v1870, %v1879
        %v1885 = vadd.f32 %v1871, %v1881
        %s1886 = scalar_lea.vmem %s221, 48
        %v1887 = vld [vmem:[%s1886] sm:$0xff]
        %v1888 = vld [vmem:[%s1886 + $0x8] sm:$0xff]
        %v1889 = vld [vmem:[%s1886 + $0x1] sm:$0xff]
        %v1890 = vld [vmem:[%s1886 + $0x9] sm:$0xff]
        %v1891 = vld [vmem:[%s1886 + $0x2] sm:$0xff]
        %v1892 = vld [vmem:[%s1886 + $0xa] sm:$0xff]
        %s1893 = sld [smem:[#allocation2 + $0x12]]
        %v1894 = vstv %s1893
        %v1895 = vmul.f32 %v1894, %v1887
        %v1896 = vmul.f32 %v1894, %v1888
        %v1897 = vadd.f32 %v1170, %v1895
        %v1898 = vadd.f32 %v1171, %v1896
        %s1899 = sld [smem:[#allocation2 + $0x13]]
        %v1900 = vstv %s1899
        %v1901 = vmul.f32 %v1900, %v1887
        %v1902 = vmul.f32 %v1900, %v1888
        %1905 = vrot.lane.b32.xlu0 %v1901, 127
        %v1906 = vpop.permute.xlu0 %1905
        %1907 = vrot.lane.b32.xlu0 %v1902, 127
        %v1908 = vpop.permute.xlu0 %1907
        %v1911 = vadd.f32 %v1897, %v1906
        %v1912 = vadd.f32 %v1898, %v1908
        %s1913 = sld [smem:[#allocation2 + $0x14]]
        %v1914 = vstv %s1913
        %v1915 = vmul.f32 %v1914, %v1887
        %v1916 = vmul.f32 %v1914, %v1888
        %1919 = vrot.lane.b32.xlu0 %v1915, 126
        %v1920 = vpop.permute.xlu0 %1919
        %1921 = vrot.lane.b32.xlu0 %v1916, 126
        %v1922 = vpop.permute.xlu0 %1921
        %v1925 = vadd.f32 %v1911, %v1920
        %v1926 = vadd.f32 %v1912, %v1922
        %s1927 = sld [smem:[#allocation2 + $0x15]]
        %v1928 = vstv %s1927
        %v1929 = vmul.f32 %v1928, %v1889
        %v1930 = vmul.f32 %v1928, %v1890
        %v1931 = vadd.f32 %v1925, %v1929
        %v1932 = vadd.f32 %v1926, %v1930
        %s1933 = sld [smem:[#allocation2 + $0x16]]
        %v1934 = vstv %s1933
        %v1935 = vmul.f32 %v1934, %v1889
        %v1936 = vmul.f32 %v1934, %v1890
        %1939 = vrot.lane.b32.xlu0 %v1935, 127
        %v1940 = vpop.permute.xlu0 %1939
        %1941 = vrot.lane.b32.xlu0 %v1936, 127
        %v1942 = vpop.permute.xlu0 %1941
        %v1945 = vadd.f32 %v1931, %v1940
        %v1946 = vadd.f32 %v1932, %v1942
        %s1947 = sld [smem:[#allocation2 + $0x17]]
        %v1948 = vstv %s1947
        %v1949 = vmul.f32 %v1948, %v1889
        %v1950 = vmul.f32 %v1948, %v1890
        %1953 = vrot.lane.b32.xlu0 %v1949, 126
        %v1954 = vpop.permute.xlu0 %1953
        %1955 = vrot.lane.b32.xlu0 %v1950, 126
        %v1956 = vpop.permute.xlu0 %1955
        %v1959 = vadd.f32 %v1945, %v1954
        %v1960 = vadd.f32 %v1946, %v1956
        %s1961 = sld [smem:[#allocation2 + $0x18]]
        %v1962 = vstv %s1961
        %v1963 = vmul.f32 %v1962, %v1891
        %v1964 = vmul.f32 %v1962, %v1892
        %v1965 = vadd.f32 %v1959, %v1963
        %v1966 = vadd.f32 %v1960, %v1964
        %s1967 = sld [smem:[#allocation2 + $0x19]]
        %v1968 = vstv %s1967
        %v1969 = vmul.f32 %v1968, %v1891
        %v1970 = vmul.f32 %v1968, %v1892
        %1973 = vrot.lane.b32.xlu0 %v1969, 127
        %v1974 = vpop.permute.xlu0 %1973
        %1975 = vrot.lane.b32.xlu0 %v1970, 127
        %v1976 = vpop.permute.xlu0 %1975
        %v1979 = vadd.f32 %v1965, %v1974
        %v1980 = vadd.f32 %v1966, %v1976
        %s1981 = sld [smem:[#allocation2 + $0x1a]]
        %v1982 = vstv %s1981
        %v1983 = vmul.f32 %v1982, %v1891
        %v1984 = vmul.f32 %v1982, %v1892
        %1987 = vrot.lane.b32.xlu0 %v1983, 126
        %v1988 = vpop.permute.xlu0 %1987
        %1989 = vrot.lane.b32.xlu0 %v1984, 126
        %v1990 = vpop.permute.xlu0 %1989
        %v1993 = vadd.f32 %v1979, %v1988
        %v1994 = vadd.f32 %v1980, %v1990
        %s1995 = sld [smem:[#allocation2 + $0x36]]
        %v1996 = vstv %s1995
        %v1997 = vmul.f32 %v1996, %v1887
        %v1998 = vmul.f32 %v1996, %v1888
        %v1999 = vadd.f32 %v1272, %v1997
        %v2000 = vadd.f32 %v1273, %v1998
        %s2001 = sld [smem:[#allocation2 + $0x37]]
        %v2002 = vstv %s2001
        %v2003 = vmul.f32 %v2002, %v1887
        %v2004 = vmul.f32 %v2002, %v1888
        %2007 = vrot.lane.b32.xlu0 %v2003, 127
        %v2008 = vpop.permute.xlu0 %2007
        %2009 = vrot.lane.b32.xlu0 %v2004, 127
        %v2010 = vpop.permute.xlu0 %2009
        %v2013 = vadd.f32 %v1999, %v2008
        %v2014 = vadd.f32 %v2000, %v2010
        %s2015 = sld [smem:[#allocation2 + $0x38]]
        %v2016 = vstv %s2015
        %v2017 = vmul.f32 %v2016, %v1887
        %v2018 = vmul.f32 %v2016, %v1888
        %2021 = vrot.lane.b32.xlu0 %v2017, 126
        %v2022 = vpop.permute.xlu0 %2021
        %2023 = vrot.lane.b32.xlu0 %v2018, 126
        %v2024 = vpop.permute.xlu0 %2023
        %v2027 = vadd.f32 %v2013, %v2022
        %v2028 = vadd.f32 %v2014, %v2024
        %s2029 = sld [smem:[#allocation2 + $0x39]]
        %v2030 = vstv %s2029
        %v2031 = vmul.f32 %v2030, %v1889
        %v2032 = vmul.f32 %v2030, %v1890
        %v2033 = vadd.f32 %v2027, %v2031
        %v2034 = vadd.f32 %v2028, %v2032
        %s2035 = sld [smem:[#allocation2 + $0x3a]]
        %v2036 = vstv %s2035
        %v2037 = vmul.f32 %v2036, %v1889
        %v2038 = vmul.f32 %v2036, %v1890
        %2041 = vrot.lane.b32.xlu0 %v2037, 127
        %v2042 = vpop.permute.xlu0 %2041
        %2043 = vrot.lane.b32.xlu0 %v2038, 127
        %v2044 = vpop.permute.xlu0 %2043
        %v2047 = vadd.f32 %v2033, %v2042
        %v2048 = vadd.f32 %v2034, %v2044
        %s2049 = sld [smem:[#allocation2 + $0x3b]]
        %v2050 = vstv %s2049
        %v2051 = vmul.f32 %v2050, %v1889
        %v2052 = vmul.f32 %v2050, %v1890
        %2055 = vrot.lane.b32.xlu0 %v2051, 126
        %v2056 = vpop.permute.xlu0 %2055
        %2057 = vrot.lane.b32.xlu0 %v2052, 126
        %v2058 = vpop.permute.xlu0 %2057
        %v2061 = vadd.f32 %v2047, %v2056
        %v2062 = vadd.f32 %v2048, %v2058
        %s2063 = sld [smem:[#allocation2 + $0x3c]]
        %v2064 = vstv %s2063
        %v2065 = vmul.f32 %v2064, %v1891
        %v2066 = vmul.f32 %v2064, %v1892
        %v2067 = vadd.f32 %v2061, %v2065
        %v2068 = vadd.f32 %v2062, %v2066
        %s2069 = sld [smem:[#allocation2 + $0x3d]]
        %v2070 = vstv %s2069
        %v2071 = vmul.f32 %v2070, %v1891
        %v2072 = vmul.f32 %v2070, %v1892
        %2075 = vrot.lane.b32.xlu0 %v2071, 127
        %v2076 = vpop.permute.xlu0 %2075
        %2077 = vrot.lane.b32.xlu0 %v2072, 127
        %v2078 = vpop.permute.xlu0 %2077
        %v2081 = vadd.f32 %v2067, %v2076
        %v2082 = vadd.f32 %v2068, %v2078
        %s2083 = sld [smem:[#allocation2 + $0x3e]]
        %v2084 = vstv %s2083
        %v2085 = vmul.f32 %v2084, %v1891
        %v2086 = vmul.f32 %v2084, %v1892
        %2089 = vrot.lane.b32.xlu0 %v2085, 126
        %v2090 = vpop.permute.xlu0 %2089
        %2091 = vrot.lane.b32.xlu0 %v2086, 126
        %v2092 = vpop.permute.xlu0 %2091
        %v2095 = vadd.f32 %v2081, %v2090
        %v2096 = vadd.f32 %v2082, %v2092
        %s2097 = sld [smem:[#allocation2 + $0x5a]]
        %v2098 = vstv %s2097
        %v2099 = vmul.f32 %v2098, %v1887
        %v2100 = vmul.f32 %v2098, %v1888
        %v2101 = vadd.f32 %v1374, %v2099
        %v2102 = vadd.f32 %v1375, %v2100
        %s2103 = sld [smem:[#allocation2 + $0x5b]]
        %v2104 = vstv %s2103
        %v2105 = vmul.f32 %v2104, %v1887
        %v2106 = vmul.f32 %v2104, %v1888
        %2109 = vrot.lane.b32.xlu0 %v2105, 127
        %v2110 = vpop.permute.xlu0 %2109
        %2111 = vrot.lane.b32.xlu0 %v2106, 127
        %v2112 = vpop.permute.xlu0 %2111
        %v2115 = vadd.f32 %v2101, %v2110
        %v2116 = vadd.f32 %v2102, %v2112
        %s2117 = sld [smem:[#allocation2 + $0x5c]]
        %v2118 = vstv %s2117
        %v2119 = vmul.f32 %v2118, %v1887
        %v2120 = vmul.f32 %v2118, %v1888
        %2123 = vrot.lane.b32.xlu0 %v2119, 126
        %v2124 = vpop.permute.xlu0 %2123
        %2125 = vrot.lane.b32.xlu0 %v2120, 126
        %v2126 = vpop.permute.xlu0 %2125
        %v2129 = vadd.f32 %v2115, %v2124
        %v2130 = vadd.f32 %v2116, %v2126
        %s2131 = sld [smem:[#allocation2 + $0x5d]]
        %v2132 = vstv %s2131
        %v2133 = vmul.f32 %v2132, %v1889
        %v2134 = vmul.f32 %v2132, %v1890
        %v2135 = vadd.f32 %v2129, %v2133
        %v2136 = vadd.f32 %v2130, %v2134
        %s2137 = sld [smem:[#allocation2 + $0x5e]]
        %v2138 = vstv %s2137
        %v2139 = vmul.f32 %v2138, %v1889
        %v2140 = vmul.f32 %v2138, %v1890
        %2143 = vrot.lane.b32.xlu0 %v2139, 127
        %v2144 = vpop.permute.xlu0 %2143
        %2145 = vrot.lane.b32.xlu0 %v2140, 127
        %v2146 = vpop.permute.xlu0 %2145
        %v2149 = vadd.f32 %v2135, %v2144
        %v2150 = vadd.f32 %v2136, %v2146
        %s2151 = sld [smem:[#allocation2 + $0x5f]]
        %v2152 = vstv %s2151
        %v2153 = vmul.f32 %v2152, %v1889
        %v2154 = vmul.f32 %v2152, %v1890
        %2157 = vrot.lane.b32.xlu0 %v2153, 126
        %v2158 = vpop.permute.xlu0 %2157
        %2159 = vrot.lane.b32.xlu0 %v2154, 126
        %v2160 = vpop.permute.xlu0 %2159
        %v2163 = vadd.f32 %v2149, %v2158
        %v2164 = vadd.f32 %v2150, %v2160
        %s2165 = sld [smem:[#allocation2 + $0x60]]
        %v2166 = vstv %s2165
        %v2167 = vmul.f32 %v2166, %v1891
        %v2168 = vmul.f32 %v2166, %v1892
        %v2169 = vadd.f32 %v2163, %v2167
        %v2170 = vadd.f32 %v2164, %v2168
        %s2171 = sld [smem:[#allocation2 + $0x61]]
        %v2172 = vstv %s2171
        %v2173 = vmul.f32 %v2172, %v1891
        %v2174 = vmul.f32 %v2172, %v1892
        %2177 = vrot.lane.b32.xlu0 %v2173, 127
        %v2178 = vpop.permute.xlu0 %2177
        %2179 = vrot.lane.b32.xlu0 %v2174, 127
        %v2180 = vpop.permute.xlu0 %2179
        %v2183 = vadd.f32 %v2169, %v2178
        %v2184 = vadd.f32 %v2170, %v2180
        %s2185 = sld [smem:[#allocation2 + $0x62]]
        %v2186 = vstv %s2185
        %v2187 = vmul.f32 %v2186, %v1891
        %v2188 = vmul.f32 %v2186, %v1892
        %2191 = vrot.lane.b32.xlu0 %v2187, 126
        %v2192 = vpop.permute.xlu0 %2191
        %2193 = vrot.lane.b32.xlu0 %v2188, 126
        %v2194 = vpop.permute.xlu0 %2193
        %v2197 = vadd.f32 %v2183, %v2192
        %v2198 = vadd.f32 %v2184, %v2194
        %s2199 = sld [smem:[#allocation2 + $0x7e]]
        %v2200 = vstv %s2199
        %v2201 = vmul.f32 %v2200, %v1887
        %v2202 = vmul.f32 %v2200, %v1888
        %v2203 = vadd.f32 %v1476, %v2201
        %v2204 = vadd.f32 %v1477, %v2202
        %s2205 = sld [smem:[#allocation2 + $0x7f]]
        %v2206 = vstv %s2205
        %v2207 = vmul.f32 %v2206, %v1887
        %v2208 = vmul.f32 %v2206, %v1888
        %2211 = vrot.lane.b32.xlu0 %v2207, 127
        %v2212 = vpop.permute.xlu0 %2211
        %2213 = vrot.lane.b32.xlu0 %v2208, 127
        %v2214 = vpop.permute.xlu0 %2213
        %v2217 = vadd.f32 %v2203, %v2212
        %v2218 = vadd.f32 %v2204, %v2214
        %s2219 = sld [smem:[#allocation2 + $0x80]]
        %v2220 = vstv %s2219
        %v2221 = vmul.f32 %v2220, %v1887
        %v2222 = vmul.f32 %v2220, %v1888
        %2225 = vrot.lane.b32.xlu0 %v2221, 126
        %v2226 = vpop.permute.xlu0 %2225
        %2227 = vrot.lane.b32.xlu0 %v2222, 126
        %v2228 = vpop.permute.xlu0 %2227
        %v2231 = vadd.f32 %v2217, %v2226
        %v2232 = vadd.f32 %v2218, %v2228
        %s2233 = sld [smem:[#allocation2 + $0x81]]
        %v2234 = vstv %s2233
        %v2235 = vmul.f32 %v2234, %v1889
        %v2236 = vmul.f32 %v2234, %v1890
        %v2237 = vadd.f32 %v2231, %v2235
        %v2238 = vadd.f32 %v2232, %v2236
        %s2239 = sld [smem:[#allocation2 + $0x82]]
        %v2240 = vstv %s2239
        %v2241 = vmul.f32 %v2240, %v1889
        %v2242 = vmul.f32 %v2240, %v1890
        %2245 = vrot.lane.b32.xlu0 %v2241, 127
        %v2246 = vpop.permute.xlu0 %2245
        %2247 = vrot.lane.b32.xlu0 %v2242, 127
        %v2248 = vpop.permute.xlu0 %2247
        %v2251 = vadd.f32 %v2237, %v2246
        %v2252 = vadd.f32 %v2238, %v2248
        %s2253 = sld [smem:[#allocation2 + $0x83]]
        %v2254 = vstv %s2253
        %v2255 = vmul.f32 %v2254, %v1889
        %v2256 = vmul.f32 %v2254, %v1890
        %2259 = vrot.lane.b32.xlu0 %v2255, 126
        %v2260 = vpop.permute.xlu0 %2259
        %2261 = vrot.lane.b32.xlu0 %v2256, 126
        %v2262 = vpop.permute.xlu0 %2261
        %v2265 = vadd.f32 %v2251, %v2260
        %v2266 = vadd.f32 %v2252, %v2262
        %s2267 = sld [smem:[#allocation2 + $0x84]]
        %v2268 = vstv %s2267
        %v2269 = vmul.f32 %v2268, %v1891
        %v2270 = vmul.f32 %v2268, %v1892
        %v2271 = vadd.f32 %v2265, %v2269
        %v2272 = vadd.f32 %v2266, %v2270
        %s2273 = sld [smem:[#allocation2 + $0x85]]
        %v2274 = vstv %s2273
        %v2275 = vmul.f32 %v2274, %v1891
        %v2276 = vmul.f32 %v2274, %v1892
        %2279 = vrot.lane.b32.xlu0 %v2275, 127
        %v2280 = vpop.permute.xlu0 %2279
        %2281 = vrot.lane.b32.xlu0 %v2276, 127
        %v2282 = vpop.permute.xlu0 %2281
        %v2285 = vadd.f32 %v2271, %v2280
        %v2286 = vadd.f32 %v2272, %v2282
        %s2287 = sld [smem:[#allocation2 + $0x86]]
        %v2288 = vstv %s2287
        %v2289 = vmul.f32 %v2288, %v1891
        %v2290 = vmul.f32 %v2288, %v1892
        %2293 = vrot.lane.b32.xlu0 %v2289, 126
        %v2294 = vpop.permute.xlu0 %2293
        %2295 = vrot.lane.b32.xlu0 %v2290, 126
        %v2296 = vpop.permute.xlu0 %2295
        %v2299 = vadd.f32 %v2285, %v2294
        %v2300 = vadd.f32 %v2286, %v2296
        %s2301 = sld [smem:[#allocation2 + $0xa2]]
        %v2302 = vstv %s2301
        %v2303 = vmul.f32 %v2302, %v1887
        %v2304 = vmul.f32 %v2302, %v1888
        %v2305 = vadd.f32 %v1578, %v2303
        %v2306 = vadd.f32 %v1579, %v2304
        %s2307 = sld [smem:[#allocation2 + $0xa3]]
        %v2308 = vstv %s2307
        %v2309 = vmul.f32 %v2308, %v1887
        %v2310 = vmul.f32 %v2308, %v1888
        %2313 = vrot.lane.b32.xlu0 %v2309, 127
        %v2314 = vpop.permute.xlu0 %2313
        %2315 = vrot.lane.b32.xlu0 %v2310, 127
        %v2316 = vpop.permute.xlu0 %2315
        %v2319 = vadd.f32 %v2305, %v2314
        %v2320 = vadd.f32 %v2306, %v2316
        %s2321 = sld [smem:[#allocation2 + $0xa4]]
        %v2322 = vstv %s2321
        %v2323 = vmul.f32 %v2322, %v1887
        %v2324 = vmul.f32 %v2322, %v1888
        %2327 = vrot.lane.b32.xlu0 %v2323, 126
        %v2328 = vpop.permute.xlu0 %2327
        %2329 = vrot.lane.b32.xlu0 %v2324, 126
        %v2330 = vpop.permute.xlu0 %2329
        %v2333 = vadd.f32 %v2319, %v2328
        %v2334 = vadd.f32 %v2320, %v2330
        %s2335 = sld [smem:[#allocation2 + $0xa5]]
        %v2336 = vstv %s2335
        %v2337 = vmul.f32 %v2336, %v1889
        %v2338 = vmul.f32 %v2336, %v1890
        %v2339 = vadd.f32 %v2333, %v2337
        %v2340 = vadd.f32 %v2334, %v2338
        %s2341 = sld [smem:[#allocation2 + $0xa6]]
        %v2342 = vstv %s2341
        %v2343 = vmul.f32 %v2342, %v1889
        %v2344 = vmul.f32 %v2342, %v1890
        %2347 = vrot.lane.b32.xlu0 %v2343, 127
        %v2348 = vpop.permute.xlu0 %2347
        %2349 = vrot.lane.b32.xlu0 %v2344, 127
        %v2350 = vpop.permute.xlu0 %2349
        %v2353 = vadd.f32 %v2339, %v2348
        %v2354 = vadd.f32 %v2340, %v2350
        %s2355 = sld [smem:[#allocation2 + $0xa7]]
        %v2356 = vstv %s2355
        %v2357 = vmul.f32 %v2356, %v1889
        %v2358 = vmul.f32 %v2356, %v1890
        %2361 = vrot.lane.b32.xlu0 %v2357, 126
        %v2362 = vpop.permute.xlu0 %2361
        %2363 = vrot.lane.b32.xlu0 %v2358, 126
        %v2364 = vpop.permute.xlu0 %2363
        %v2367 = vadd.f32 %v2353, %v2362
        %v2368 = vadd.f32 %v2354, %v2364
        %s2369 = sld [smem:[#allocation2 + $0xa8]]
        %v2370 = vstv %s2369
        %v2371 = vmul.f32 %v2370, %v1891
        %v2372 = vmul.f32 %v2370, %v1892
        %v2373 = vadd.f32 %v2367, %v2371
        %v2374 = vadd.f32 %v2368, %v2372
        %s2375 = sld [smem:[#allocation2 + $0xa9]]
        %v2376 = vstv %s2375
        %v2377 = vmul.f32 %v2376, %v1891
        %v2378 = vmul.f32 %v2376, %v1892
        %2381 = vrot.lane.b32.xlu0 %v2377, 127
        %v2382 = vpop.permute.xlu0 %2381
        %2383 = vrot.lane.b32.xlu0 %v2378, 127
        %v2384 = vpop.permute.xlu0 %2383
        %v2387 = vadd.f32 %v2373, %v2382
        %v2388 = vadd.f32 %v2374, %v2384
        %s2389 = sld [smem:[#allocation2 + $0xaa]]
        %v2390 = vstv %s2389
        %v2391 = vmul.f32 %v2390, %v1891
        %v2392 = vmul.f32 %v2390, %v1892
        %2395 = vrot.lane.b32.xlu0 %v2391, 126
        %v2396 = vpop.permute.xlu0 %2395
        %2397 = vrot.lane.b32.xlu0 %v2392, 126
        %v2398 = vpop.permute.xlu0 %2397
        %v2401 = vadd.f32 %v2387, %v2396
        %v2402 = vadd.f32 %v2388, %v2398
        %s2403 = sld [smem:[#allocation2 + $0xc6]]
        %v2404 = vstv %s2403
        %v2405 = vmul.f32 %v2404, %v1887
        %v2406 = vmul.f32 %v2404, %v1888
        %v2407 = vadd.f32 %v1680, %v2405
        %v2408 = vadd.f32 %v1681, %v2406
        %s2409 = sld [smem:[#allocation2 + $0xc7]]
        %v2410 = vstv %s2409
        %v2411 = vmul.f32 %v2410, %v1887
        %v2412 = vmul.f32 %v2410, %v1888
        %2415 = vrot.lane.b32.xlu0 %v2411, 127
        %v2416 = vpop.permute.xlu0 %2415
        %2417 = vrot.lane.b32.xlu0 %v2412, 127
        %v2418 = vpop.permute.xlu0 %2417
        %v2421 = vadd.f32 %v2407, %v2416
        %v2422 = vadd.f32 %v2408, %v2418
        %s2423 = sld [smem:[#allocation2 + $0xc8]]
        %v2424 = vstv %s2423
        %v2425 = vmul.f32 %v2424, %v1887
        %v2426 = vmul.f32 %v2424, %v1888
        %2429 = vrot.lane.b32.xlu0 %v2425, 126
        %v2430 = vpop.permute.xlu0 %2429
        %2431 = vrot.lane.b32.xlu0 %v2426, 126
        %v2432 = vpop.permute.xlu0 %2431
        %v2435 = vadd.f32 %v2421, %v2430
        %v2436 = vadd.f32 %v2422, %v2432
        %s2437 = sld [smem:[#allocation2 + $0xc9]]
        %v2438 = vstv %s2437
        %v2439 = vmul.f32 %v2438, %v1889
        %v2440 = vmul.f32 %v2438, %v1890
        %v2441 = vadd.f32 %v2435, %v2439
        %v2442 = vadd.f32 %v2436, %v2440
        %s2443 = sld [smem:[#allocation2 + $0xca]]
        %v2444 = vstv %s2443
        %v2445 = vmul.f32 %v2444, %v1889
        %v2446 = vmul.f32 %v2444, %v1890
        %2449 = vrot.lane.b32.xlu0 %v2445, 127
        %v2450 = vpop.permute.xlu0 %2449
        %2451 = vrot.lane.b32.xlu0 %v2446, 127
        %v2452 = vpop.permute.xlu0 %2451
        %v2455 = vadd.f32 %v2441, %v2450
        %v2456 = vadd.f32 %v2442, %v2452
        %s2457 = sld [smem:[#allocation2 + $0xcb]]
        %v2458 = vstv %s2457
        %v2459 = vmul.f32 %v2458, %v1889
        %v2460 = vmul.f32 %v2458, %v1890
        %2463 = vrot.lane.b32.xlu0 %v2459, 126
        %v2464 = vpop.permute.xlu0 %2463
        %2465 = vrot.lane.b32.xlu0 %v2460, 126
        %v2466 = vpop.permute.xlu0 %2465
        %v2469 = vadd.f32 %v2455, %v2464
        %v2470 = vadd.f32 %v2456, %v2466
        %s2471 = sld [smem:[#allocation2 + $0xcc]]
        %v2472 = vstv %s2471
        %v2473 = vmul.f32 %v2472, %v1891
        %v2474 = vmul.f32 %v2472, %v1892
        %v2475 = vadd.f32 %v2469, %v2473
        %v2476 = vadd.f32 %v2470, %v2474
        %s2477 = sld [smem:[#allocation2 + $0xcd]]
        %v2478 = vstv %s2477
        %v2479 = vmul.f32 %v2478, %v1891
        %v2480 = vmul.f32 %v2478, %v1892
        %2483 = vrot.lane.b32.xlu0 %v2479, 127
        %v2484 = vpop.permute.xlu0 %2483
        %2485 = vrot.lane.b32.xlu0 %v2480, 127
        %v2486 = vpop.permute.xlu0 %2485
        %v2489 = vadd.f32 %v2475, %v2484
        %v2490 = vadd.f32 %v2476, %v2486
        %s2491 = sld [smem:[#allocation2 + $0xce]]
        %v2492 = vstv %s2491
        %v2493 = vmul.f32 %v2492, %v1891
        %v2494 = vmul.f32 %v2492, %v1892
        %2497 = vrot.lane.b32.xlu0 %v2493, 126
        %v2498 = vpop.permute.xlu0 %2497
        %2499 = vrot.lane.b32.xlu0 %v2494, 126
        %v2500 = vpop.permute.xlu0 %2499
        %v2503 = vadd.f32 %v2489, %v2498
        %v2504 = vadd.f32 %v2490, %v2500
        %s2505 = sld [smem:[#allocation2 + $0xea]]
        %v2506 = vstv %s2505
        %v2507 = vmul.f32 %v2506, %v1887
        %v2508 = vmul.f32 %v2506, %v1888
        %v2509 = vadd.f32 %v1782, %v2507
        %v2510 = vadd.f32 %v1783, %v2508
        %s2511 = sld [smem:[#allocation2 + $0xeb]]
        %v2512 = vstv %s2511
        %v2513 = vmul.f32 %v2512, %v1887
        %v2514 = vmul.f32 %v2512, %v1888
        %2517 = vrot.lane.b32.xlu0 %v2513, 127
        %v2518 = vpop.permute.xlu0 %2517
        %2519 = vrot.lane.b32.xlu0 %v2514, 127
        %v2520 = vpop.permute.xlu0 %2519
        %v2523 = vadd.f32 %v2509, %v2518
        %v2524 = vadd.f32 %v2510, %v2520
        %s2525 = sld [smem:[#allocation2 + $0xec]]
        %v2526 = vstv %s2525
        %v2527 = vmul.f32 %v2526, %v1887
        %v2528 = vmul.f32 %v2526, %v1888
        %2531 = vrot.lane.b32.xlu0 %v2527, 126
        %v2532 = vpop.permute.xlu0 %2531
        %2533 = vrot.lane.b32.xlu0 %v2528, 126
        %v2534 = vpop.permute.xlu0 %2533
        %v2537 = vadd.f32 %v2523, %v2532
        %v2538 = vadd.f32 %v2524, %v2534
        %s2539 = sld [smem:[#allocation2 + $0xed]]
        %v2540 = vstv %s2539
        %v2541 = vmul.f32 %v2540, %v1889
        %v2542 = vmul.f32 %v2540, %v1890
        %v2543 = vadd.f32 %v2537, %v2541
        %v2544 = vadd.f32 %v2538, %v2542
        %s2545 = sld [smem:[#allocation2 + $0xee]]
        %v2546 = vstv %s2545
        %v2547 = vmul.f32 %v2546, %v1889
        %v2548 = vmul.f32 %v2546, %v1890
        %2551 = vrot.lane.b32.xlu0 %v2547, 127
        %v2552 = vpop.permute.xlu0 %2551
        %2553 = vrot.lane.b32.xlu0 %v2548, 127
        %v2554 = vpop.permute.xlu0 %2553
        %v2557 = vadd.f32 %v2543, %v2552
        %v2558 = vadd.f32 %v2544, %v2554
        %s2559 = sld [smem:[#allocation2 + $0xef]]
        %v2560 = vstv %s2559
        %v2561 = vmul.f32 %v2560, %v1889
        %v2562 = vmul.f32 %v2560, %v1890
        %2565 = vrot.lane.b32.xlu0 %v2561, 126
        %v2566 = vpop.permute.xlu0 %2565
        %2567 = vrot.lane.b32.xlu0 %v2562, 126
        %v2568 = vpop.permute.xlu0 %2567
        %v2571 = vadd.f32 %v2557, %v2566
        %v2572 = vadd.f32 %v2558, %v2568
        %s2573 = sld [smem:[#allocation2 + $0xf0]]
        %v2574 = vstv %s2573
        %v2575 = vmul.f32 %v2574, %v1891
        %v2576 = vmul.f32 %v2574, %v1892
        %v2577 = vadd.f32 %v2571, %v2575
        %v2578 = vadd.f32 %v2572, %v2576
        %s2579 = sld [smem:[#allocation2 + $0xf1]]
        %v2580 = vstv %s2579
        %v2581 = vmul.f32 %v2580, %v1891
        %v2582 = vmul.f32 %v2580, %v1892
        %2585 = vrot.lane.b32.xlu0 %v2581, 127
        %v2586 = vpop.permute.xlu0 %2585
        %2587 = vrot.lane.b32.xlu0 %v2582, 127
        %v2588 = vpop.permute.xlu0 %2587
        %v2591 = vadd.f32 %v2577, %v2586
        %v2592 = vadd.f32 %v2578, %v2588
        %s2593 = sld [smem:[#allocation2 + $0xf2]]
        %v2594 = vstv %s2593
        %v2595 = vmul.f32 %v2594, %v1891
        %v2596 = vmul.f32 %v2594, %v1892
        %2599 = vrot.lane.b32.xlu0 %v2595, 126
        %v2600 = vpop.permute.xlu0 %2599
        %2601 = vrot.lane.b32.xlu0 %v2596, 126
        %v2602 = vpop.permute.xlu0 %2601
        %v2605 = vadd.f32 %v2591, %v2600
        %v2606 = vadd.f32 %v2592, %v2602
        %s2607 = sld [smem:[#allocation2 + $0x10e]]
        %v2608 = vstv %s2607
        %v2609 = vmul.f32 %v2608, %v1887
        %v2610 = vmul.f32 %v2608, %v1888
        %v2611 = vadd.f32 %v1884, %v2609
        %v2612 = vadd.f32 %v1885, %v2610
        %s2613 = sld [smem:[#allocation2 + $0x10f]]
        %v2614 = vstv %s2613
        %v2615 = vmul.f32 %v2614, %v1887
        %v2616 = vmul.f32 %v2614, %v1888
        %2619 = vrot.lane.b32.xlu0 %v2615, 127
        %v2620 = vpop.permute.xlu0 %2619
        %2621 = vrot.lane.b32.xlu0 %v2616, 127
        %v2622 = vpop.permute.xlu0 %2621
        %v2625 = vadd.f32 %v2611, %v2620
        %v2626 = vadd.f32 %v2612, %v2622
        %s2627 = sld [smem:[#allocation2 + $0x110]]
        %v2628 = vstv %s2627
        %v2629 = vmul.f32 %v2628, %v1887
        %v2630 = vmul.f32 %v2628, %v1888
        %2633 = vrot.lane.b32.xlu0 %v2629, 126
        %v2634 = vpop.permute.xlu0 %2633
        %2635 = vrot.lane.b32.xlu0 %v2630, 126
        %v2636 = vpop.permute.xlu0 %2635
        %v2639 = vadd.f32 %v2625, %v2634
        %v2640 = vadd.f32 %v2626, %v2636
        %s2641 = sld [smem:[#allocation2 + $0x111]]
        %v2642 = vstv %s2641
        %v2643 = vmul.f32 %v2642, %v1889
        %v2644 = vmul.f32 %v2642, %v1890
        %v2645 = vadd.f32 %v2639, %v2643
        %v2646 = vadd.f32 %v2640, %v2644
        %s2647 = sld [smem:[#allocation2 + $0x112]]
        %v2648 = vstv %s2647
        %v2649 = vmul.f32 %v2648, %v1889
        %v2650 = vmul.f32 %v2648, %v1890
        %2653 = vrot.lane.b32.xlu0 %v2649, 127
        %v2654 = vpop.permute.xlu0 %2653
        %2655 = vrot.lane.b32.xlu0 %v2650, 127
        %v2656 = vpop.permute.xlu0 %2655
        %v2659 = vadd.f32 %v2645, %v2654
        %v2660 = vadd.f32 %v2646, %v2656
        %s2661 = sld [smem:[#allocation2 + $0x113]]
        %v2662 = vstv %s2661
        %v2663 = vmul.f32 %v2662, %v1889
        %v2664 = vmul.f32 %v2662, %v1890
        %2667 = vrot.lane.b32.xlu0 %v2663, 126
        %v2668 = vpop.permute.xlu0 %2667
        %2669 = vrot.lane.b32.xlu0 %v2664, 126
        %v2670 = vpop.permute.xlu0 %2669
        %v2673 = vadd.f32 %v2659, %v2668
        %v2674 = vadd.f32 %v2660, %v2670
        %s2675 = sld [smem:[#allocation2 + $0x114]]
        %v2676 = vstv %s2675
        %v2677 = vmul.f32 %v2676, %v1891
        %v2678 = vmul.f32 %v2676, %v1892
        %v2679 = vadd.f32 %v2673, %v2677
        %v2680 = vadd.f32 %v2674, %v2678
        %s2681 = sld [smem:[#allocation2 + $0x115]]
        %v2682 = vstv %s2681
        %v2683 = vmul.f32 %v2682, %v1891
        %v2684 = vmul.f32 %v2682, %v1892
        %2687 = vrot.lane.b32.xlu0 %v2683, 127
        %v2688 = vpop.permute.xlu0 %2687
        %2689 = vrot.lane.b32.xlu0 %v2684, 127
        %v2690 = vpop.permute.xlu0 %2689
        %v2693 = vadd.f32 %v2679, %v2688
        %v2694 = vadd.f32 %v2680, %v2690
        %s2695 = sld [smem:[#allocation2 + $0x116]]
        %v2696 = vstv %s2695
        %v2697 = vmul.f32 %v2696, %v1891
        %v2698 = vmul.f32 %v2696, %v1892
        %2701 = vrot.lane.b32.xlu0 %v2697, 126
        %v2702 = vpop.permute.xlu0 %2701
        %2703 = vrot.lane.b32.xlu0 %v2698, 126
        %v2704 = vpop.permute.xlu0 %2703
        %v2707 = vadd.f32 %v2693, %v2702
        %v2708 = vadd.f32 %v2694, %v2704
        %s2709 = scalar_lea.vmem %s221, 72
        %v2710 = vld [vmem:[%s2709] sm:$0xff]
        %v2711 = vld [vmem:[%s2709 + $0x8] sm:$0xff]
        %v2712 = vld [vmem:[%s2709 + $0x1] sm:$0xff]
        %v2713 = vld [vmem:[%s2709 + $0x9] sm:$0xff]
        %v2714 = vld [vmem:[%s2709 + $0x2] sm:$0xff]
        %v2715 = vld [vmem:[%s2709 + $0xa] sm:$0xff]
        %s2716 = sld [smem:[#allocation2 + $0x1b]]
        %v2717 = vstv %s2716
        %v2718 = vmul.f32 %v2717, %v2710
        %v2719 = vmul.f32 %v2717, %v2711
        %v2720 = vadd.f32 %v1993, %v2718
        %v2721 = vadd.f32 %v1994, %v2719
        %s2722 = sld [smem:[#allocation2 + $0x1c]]
        %v2723 = vstv %s2722
        %v2724 = vmul.f32 %v2723, %v2710
        %v2725 = vmul.f32 %v2723, %v2711
        %2728 = vrot.lane.b32.xlu0 %v2724, 127
        %v2729 = vpop.permute.xlu0 %2728
        %2730 = vrot.lane.b32.xlu0 %v2725, 127
        %v2731 = vpop.permute.xlu0 %2730
        %v2734 = vadd.f32 %v2720, %v2729
        %v2735 = vadd.f32 %v2721, %v2731
        %s2736 = sld [smem:[#allocation2 + $0x1d]]
        %v2737 = vstv %s2736
        %v2738 = vmul.f32 %v2737, %v2710
        %v2739 = vmul.f32 %v2737, %v2711
        %2742 = vrot.lane.b32.xlu0 %v2738, 126
        %v2743 = vpop.permute.xlu0 %2742
        %2744 = vrot.lane.b32.xlu0 %v2739, 126
        %v2745 = vpop.permute.xlu0 %2744
        %v2748 = vadd.f32 %v2734, %v2743
        %v2749 = vadd.f32 %v2735, %v2745
        %s2750 = sld [smem:[#allocation2 + $0x1e]]
        %v2751 = vstv %s2750
        %v2752 = vmul.f32 %v2751, %v2712
        %v2753 = vmul.f32 %v2751, %v2713
        %v2754 = vadd.f32 %v2748, %v2752
        %v2755 = vadd.f32 %v2749, %v2753
        %s2756 = sld [smem:[#allocation2 + $0x1f]]
        %v2757 = vstv %s2756
        %v2758 = vmul.f32 %v2757, %v2712
        %v2759 = vmul.f32 %v2757, %v2713
        %2762 = vrot.lane.b32.xlu0 %v2758, 127
        %v2763 = vpop.permute.xlu0 %2762
        %2764 = vrot.lane.b32.xlu0 %v2759, 127
        %v2765 = vpop.permute.xlu0 %2764
        %v2768 = vadd.f32 %v2754, %v2763
        %v2769 = vadd.f32 %v2755, %v2765
        %s2770 = sld [smem:[#allocation2 + $0x20]]
        %v2771 = vstv %s2770
        %v2772 = vmul.f32 %v2771, %v2712
        %v2773 = vmul.f32 %v2771, %v2713
        %2776 = vrot.lane.b32.xlu0 %v2772, 126
        %v2777 = vpop.permute.xlu0 %2776
        %2778 = vrot.lane.b32.xlu0 %v2773, 126
        %v2779 = vpop.permute.xlu0 %2778
        %v2782 = vadd.f32 %v2768, %v2777
        %v2783 = vadd.f32 %v2769, %v2779
        %s2784 = sld [smem:[#allocation2 + $0x21]]
        %v2785 = vstv %s2784
        %v2786 = vmul.f32 %v2785, %v2714
        %v2787 = vmul.f32 %v2785, %v2715
        %v2788 = vadd.f32 %v2782, %v2786
        %v2789 = vadd.f32 %v2783, %v2787
        %s2790 = sld [smem:[#allocation2 + $0x22]]
        %v2791 = vstv %s2790
        %v2792 = vmul.f32 %v2791, %v2714
        %v2793 = vmul.f32 %v2791, %v2715
        %2796 = vrot.lane.b32.xlu0 %v2792, 127
        %v2797 = vpop.permute.xlu0 %2796
        %2798 = vrot.lane.b32.xlu0 %v2793, 127
        %v2799 = vpop.permute.xlu0 %2798
        %v2802 = vadd.f32 %v2788, %v2797
        %v2803 = vadd.f32 %v2789, %v2799
        %s2804 = sld [smem:[#allocation2 + $0x23]]
        %v2805 = vstv %s2804
        %v2806 = vmul.f32 %v2805, %v2714
        %v2807 = vmul.f32 %v2805, %v2715
        %2810 = vrot.lane.b32.xlu0 %v2806, 126
        %v2811 = vpop.permute.xlu0 %2810
        %2812 = vrot.lane.b32.xlu0 %v2807, 126
        %v2813 = vpop.permute.xlu0 %2812
        %v2816 = vadd.f32 %v2802, %v2811
        %v2817 = vadd.f32 %v2803, %v2813
        %s2818 = sld [smem:[#allocation2 + $0x3f]]
        %v2819 = vstv %s2818
        %v2820 = vmul.f32 %v2819, %v2710
        %v2821 = vmul.f32 %v2819, %v2711
        %v2822 = vadd.f32 %v2095, %v2820
        %v2823 = vadd.f32 %v2096, %v2821
        %s2824 = sld [smem:[#allocation2 + $0x40]]
        %v2825 = vstv %s2824
        %v2826 = vmul.f32 %v2825, %v2710
        %v2827 = vmul.f32 %v2825, %v2711
        %2830 = vrot.lane.b32.xlu0 %v2826, 127
        %v2831 = vpop.permute.xlu0 %2830
        %2832 = vrot.lane.b32.xlu0 %v2827, 127
        %v2833 = vpop.permute.xlu0 %2832
        %v2836 = vadd.f32 %v2822, %v2831
        %v2837 = vadd.f32 %v2823, %v2833
        %s2838 = sld [smem:[#allocation2 + $0x41]]
        %v2839 = vstv %s2838
        %v2840 = vmul.f32 %v2839, %v2710
        %v2841 = vmul.f32 %v2839, %v2711
        %2844 = vrot.lane.b32.xlu0 %v2840, 126
        %v2845 = vpop.permute.xlu0 %2844
        %2846 = vrot.lane.b32.xlu0 %v2841, 126
        %v2847 = vpop.permute.xlu0 %2846
        %v2850 = vadd.f32 %v2836, %v2845
        %v2851 = vadd.f32 %v2837, %v2847
        %s2852 = sld [smem:[#allocation2 + $0x42]]
        %v2853 = vstv %s2852
        %v2854 = vmul.f32 %v2853, %v2712
        %v2855 = vmul.f32 %v2853, %v2713
        %v2856 = vadd.f32 %v2850, %v2854
        %v2857 = vadd.f32 %v2851, %v2855
        %s2858 = sld [smem:[#allocation2 + $0x43]]
        %v2859 = vstv %s2858
        %v2860 = vmul.f32 %v2859, %v2712
        %v2861 = vmul.f32 %v2859, %v2713
        %2864 = vrot.lane.b32.xlu0 %v2860, 127
        %v2865 = vpop.permute.xlu0 %2864
        %2866 = vrot.lane.b32.xlu0 %v2861, 127
        %v2867 = vpop.permute.xlu0 %2866
        %v2870 = vadd.f32 %v2856, %v2865
        %v2871 = vadd.f32 %v2857, %v2867
        %s2872 = sld [smem:[#allocation2 + $0x44]]
        %v2873 = vstv %s2872
        %v2874 = vmul.f32 %v2873, %v2712
        %v2875 = vmul.f32 %v2873, %v2713
        %2878 = vrot.lane.b32.xlu0 %v2874, 126
        %v2879 = vpop.permute.xlu0 %2878
        %2880 = vrot.lane.b32.xlu0 %v2875, 126
        %v2881 = vpop.permute.xlu0 %2880
        %v2884 = vadd.f32 %v2870, %v2879
        %v2885 = vadd.f32 %v2871, %v2881
        %s2886 = sld [smem:[#allocation2 + $0x45]]
        %v2887 = vstv %s2886
        %v2888 = vmul.f32 %v2887, %v2714
        %v2889 = vmul.f32 %v2887, %v2715
        %v2890 = vadd.f32 %v2884, %v2888
        %v2891 = vadd.f32 %v2885, %v2889
        %s2892 = sld [smem:[#allocation2 + $0x46]]
        %v2893 = vstv %s2892
        %v2894 = vmul.f32 %v2893, %v2714
        %v2895 = vmul.f32 %v2893, %v2715
        %2898 = vrot.lane.b32.xlu0 %v2894, 127
        %v2899 = vpop.permute.xlu0 %2898
        %2900 = vrot.lane.b32.xlu0 %v2895, 127
        %v2901 = vpop.permute.xlu0 %2900
        %v2904 = vadd.f32 %v2890, %v2899
        %v2905 = vadd.f32 %v2891, %v2901
        %s2906 = sld [smem:[#allocation2 + $0x47]]
        %v2907 = vstv %s2906
        %v2908 = vmul.f32 %v2907, %v2714
        %v2909 = vmul.f32 %v2907, %v2715
        %2912 = vrot.lane.b32.xlu0 %v2908, 126
        %v2913 = vpop.permute.xlu0 %2912
        %2914 = vrot.lane.b32.xlu0 %v2909, 126
        %v2915 = vpop.permute.xlu0 %2914
        %v2918 = vadd.f32 %v2904, %v2913
        %v2919 = vadd.f32 %v2905, %v2915
        %s2920 = sld [smem:[#allocation2 + $0x63]]
        %v2921 = vstv %s2920
        %v2922 = vmul.f32 %v2921, %v2710
        %v2923 = vmul.f32 %v2921, %v2711
        %v2924 = vadd.f32 %v2197, %v2922
        %v2925 = vadd.f32 %v2198, %v2923
        %s2926 = sld [smem:[#allocation2 + $0x64]]
        %v2927 = vstv %s2926
        %v2928 = vmul.f32 %v2927, %v2710
        %v2929 = vmul.f32 %v2927, %v2711
        %2932 = vrot.lane.b32.xlu0 %v2928, 127
        %v2933 = vpop.permute.xlu0 %2932
        %2934 = vrot.lane.b32.xlu0 %v2929, 127
        %v2935 = vpop.permute.xlu0 %2934
        %v2938 = vadd.f32 %v2924, %v2933
        %v2939 = vadd.f32 %v2925, %v2935
        %s2940 = sld [smem:[#allocation2 + $0x65]]
        %v2941 = vstv %s2940
        %v2942 = vmul.f32 %v2941, %v2710
        %v2943 = vmul.f32 %v2941, %v2711
        %2946 = vrot.lane.b32.xlu0 %v2942, 126
        %v2947 = vpop.permute.xlu0 %2946
        %2948 = vrot.lane.b32.xlu0 %v2943, 126
        %v2949 = vpop.permute.xlu0 %2948
        %v2952 = vadd.f32 %v2938, %v2947
        %v2953 = vadd.f32 %v2939, %v2949
        %s2954 = sld [smem:[#allocation2 + $0x66]]
        %v2955 = vstv %s2954
        %v2956 = vmul.f32 %v2955, %v2712
        %v2957 = vmul.f32 %v2955, %v2713
        %v2958 = vadd.f32 %v2952, %v2956
        %v2959 = vadd.f32 %v2953, %v2957
        %s2960 = sld [smem:[#allocation2 + $0x67]]
        %v2961 = vstv %s2960
        %v2962 = vmul.f32 %v2961, %v2712
        %v2963 = vmul.f32 %v2961, %v2713
        %2966 = vrot.lane.b32.xlu0 %v2962, 127
        %v2967 = vpop.permute.xlu0 %2966
        %2968 = vrot.lane.b32.xlu0 %v2963, 127
        %v2969 = vpop.permute.xlu0 %2968
        %v2972 = vadd.f32 %v2958, %v2967
        %v2973 = vadd.f32 %v2959, %v2969
        %s2974 = sld [smem:[#allocation2 + $0x68]]
        %v2975 = vstv %s2974
        %v2976 = vmul.f32 %v2975, %v2712
        %v2977 = vmul.f32 %v2975, %v2713
        %2980 = vrot.lane.b32.xlu0 %v2976, 126
        %v2981 = vpop.permute.xlu0 %2980
        %2982 = vrot.lane.b32.xlu0 %v2977, 126
        %v2983 = vpop.permute.xlu0 %2982
        %v2986 = vadd.f32 %v2972, %v2981
        %v2987 = vadd.f32 %v2973, %v2983
        %s2988 = sld [smem:[#allocation2 + $0x69]]
        %v2989 = vstv %s2988
        %v2990 = vmul.f32 %v2989, %v2714
        %v2991 = vmul.f32 %v2989, %v2715
        %v2992 = vadd.f32 %v2986, %v2990
        %v2993 = vadd.f32 %v2987, %v2991
        %s2994 = sld [smem:[#allocation2 + $0x6a]]
        %v2995 = vstv %s2994
        %v2996 = vmul.f32 %v2995, %v2714
        %v2997 = vmul.f32 %v2995, %v2715
        %3000 = vrot.lane.b32.xlu0 %v2996, 127
        %v3001 = vpop.permute.xlu0 %3000
        %3002 = vrot.lane.b32.xlu0 %v2997, 127
        %v3003 = vpop.permute.xlu0 %3002
        %v3006 = vadd.f32 %v2992, %v3001
        %v3007 = vadd.f32 %v2993, %v3003
        %s3008 = sld [smem:[#allocation2 + $0x6b]]
        %v3009 = vstv %s3008
        %v3010 = vmul.f32 %v3009, %v2714
        %v3011 = vmul.f32 %v3009, %v2715
        %3014 = vrot.lane.b32.xlu0 %v3010, 126
        %v3015 = vpop.permute.xlu0 %3014
        %3016 = vrot.lane.b32.xlu0 %v3011, 126
        %v3017 = vpop.permute.xlu0 %3016
        %v3020 = vadd.f32 %v3006, %v3015
        %v3021 = vadd.f32 %v3007, %v3017
        %s3022 = sld [smem:[#allocation2 + $0x87]]
        %v3023 = vstv %s3022
        %v3024 = vmul.f32 %v3023, %v2710
        %v3025 = vmul.f32 %v3023, %v2711
        %v3026 = vadd.f32 %v2299, %v3024
        %v3027 = vadd.f32 %v2300, %v3025
        %s3028 = sld [smem:[#allocation2 + $0x88]]
        %v3029 = vstv %s3028
        %v3030 = vmul.f32 %v3029, %v2710
        %v3031 = vmul.f32 %v3029, %v2711
        %3034 = vrot.lane.b32.xlu0 %v3030, 127
        %v3035 = vpop.permute.xlu0 %3034
        %3036 = vrot.lane.b32.xlu0 %v3031, 127
        %v3037 = vpop.permute.xlu0 %3036
        %v3040 = vadd.f32 %v3026, %v3035
        %v3041 = vadd.f32 %v3027, %v3037
        %s3042 = sld [smem:[#allocation2 + $0x89]]
        %v3043 = vstv %s3042
        %v3044 = vmul.f32 %v3043, %v2710
        %v3045 = vmul.f32 %v3043, %v2711
        %3048 = vrot.lane.b32.xlu0 %v3044, 126
        %v3049 = vpop.permute.xlu0 %3048
        %3050 = vrot.lane.b32.xlu0 %v3045, 126
        %v3051 = vpop.permute.xlu0 %3050
        %v3054 = vadd.f32 %v3040, %v3049
        %v3055 = vadd.f32 %v3041, %v3051
        %s3056 = sld [smem:[#allocation2 + $0x8a]]
        %v3057 = vstv %s3056
        %v3058 = vmul.f32 %v3057, %v2712
        %v3059 = vmul.f32 %v3057, %v2713
        %v3060 = vadd.f32 %v3054, %v3058
        %v3061 = vadd.f32 %v3055, %v3059
        %s3062 = sld [smem:[#allocation2 + $0x8b]]
        %v3063 = vstv %s3062
        %v3064 = vmul.f32 %v3063, %v2712
        %v3065 = vmul.f32 %v3063, %v2713
        %3068 = vrot.lane.b32.xlu0 %v3064, 127
        %v3069 = vpop.permute.xlu0 %3068
        %3070 = vrot.lane.b32.xlu0 %v3065, 127
        %v3071 = vpop.permute.xlu0 %3070
        %v3074 = vadd.f32 %v3060, %v3069
        %v3075 = vadd.f32 %v3061, %v3071
        %s3076 = sld [smem:[#allocation2 + $0x8c]]
        %v3077 = vstv %s3076
        %v3078 = vmul.f32 %v3077, %v2712
        %v3079 = vmul.f32 %v3077, %v2713
        %3082 = vrot.lane.b32.xlu0 %v3078, 126
        %v3083 = vpop.permute.xlu0 %3082
        %3084 = vrot.lane.b32.xlu0 %v3079, 126
        %v3085 = vpop.permute.xlu0 %3084
        %v3088 = vadd.f32 %v3074, %v3083
        %v3089 = vadd.f32 %v3075, %v3085
        %s3090 = sld [smem:[#allocation2 + $0x8d]]
        %v3091 = vstv %s3090
        %v3092 = vmul.f32 %v3091, %v2714
        %v3093 = vmul.f32 %v3091, %v2715
        %v3094 = vadd.f32 %v3088, %v3092
        %v3095 = vadd.f32 %v3089, %v3093
        %s3096 = sld [smem:[#allocation2 + $0x8e]]
        %v3097 = vstv %s3096
        %v3098 = vmul.f32 %v3097, %v2714
        %v3099 = vmul.f32 %v3097, %v2715
        %3102 = vrot.lane.b32.xlu0 %v3098, 127
        %v3103 = vpop.permute.xlu0 %3102
        %3104 = vrot.lane.b32.xlu0 %v3099, 127
        %v3105 = vpop.permute.xlu0 %3104
        %v3108 = vadd.f32 %v3094, %v3103
        %v3109 = vadd.f32 %v3095, %v3105
        %s3110 = sld [smem:[#allocation2 + $0x8f]]
        %v3111 = vstv %s3110
        %v3112 = vmul.f32 %v3111, %v2714
        %v3113 = vmul.f32 %v3111, %v2715
        %3116 = vrot.lane.b32.xlu0 %v3112, 126
        %v3117 = vpop.permute.xlu0 %3116
        %3118 = vrot.lane.b32.xlu0 %v3113, 126
        %v3119 = vpop.permute.xlu0 %3118
        %v3122 = vadd.f32 %v3108, %v3117
        %v3123 = vadd.f32 %v3109, %v3119
        %s3124 = sld [smem:[#allocation2 + $0xab]]
        %v3125 = vstv %s3124
        %v3126 = vmul.f32 %v3125, %v2710
        %v3127 = vmul.f32 %v3125, %v2711
        %v3128 = vadd.f32 %v2401, %v3126
        %v3129 = vadd.f32 %v2402, %v3127
        %s3130 = sld [smem:[#allocation2 + $0xac]]
        %v3131 = vstv %s3130
        %v3132 = vmul.f32 %v3131, %v2710
        %v3133 = vmul.f32 %v3131, %v2711
        %3136 = vrot.lane.b32.xlu0 %v3132, 127
        %v3137 = vpop.permute.xlu0 %3136
        %3138 = vrot.lane.b32.xlu0 %v3133, 127
        %v3139 = vpop.permute.xlu0 %3138
        %v3142 = vadd.f32 %v3128, %v3137
        %v3143 = vadd.f32 %v3129, %v3139
        %s3144 = sld [smem:[#allocation2 + $0xad]]
        %v3145 = vstv %s3144
        %v3146 = vmul.f32 %v3145, %v2710
        %v3147 = vmul.f32 %v3145, %v2711
        %3150 = vrot.lane.b32.xlu0 %v3146, 126
        %v3151 = vpop.permute.xlu0 %3150
        %3152 = vrot.lane.b32.xlu0 %v3147, 126
        %v3153 = vpop.permute.xlu0 %3152
        %v3156 = vadd.f32 %v3142, %v3151
        %v3157 = vadd.f32 %v3143, %v3153
        %s3158 = sld [smem:[#allocation2 + $0xae]]
        %v3159 = vstv %s3158
        %v3160 = vmul.f32 %v3159, %v2712
        %v3161 = vmul.f32 %v3159, %v2713
        %v3162 = vadd.f32 %v3156, %v3160
        %v3163 = vadd.f32 %v3157, %v3161
        %s3164 = sld [smem:[#allocation2 + $0xaf]]
        %v3165 = vstv %s3164
        %v3166 = vmul.f32 %v3165, %v2712
        %v3167 = vmul.f32 %v3165, %v2713
        %3170 = vrot.lane.b32.xlu0 %v3166, 127
        %v3171 = vpop.permute.xlu0 %3170
        %3172 = vrot.lane.b32.xlu0 %v3167, 127
        %v3173 = vpop.permute.xlu0 %3172
        %v3176 = vadd.f32 %v3162, %v3171
        %v3177 = vadd.f32 %v3163, %v3173
        %s3178 = sld [smem:[#allocation2 + $0xb0]]
        %v3179 = vstv %s3178
        %v3180 = vmul.f32 %v3179, %v2712
        %v3181 = vmul.f32 %v3179, %v2713
        %3184 = vrot.lane.b32.xlu0 %v3180, 126
        %v3185 = vpop.permute.xlu0 %3184
        %3186 = vrot.lane.b32.xlu0 %v3181, 126
        %v3187 = vpop.permute.xlu0 %3186
        %v3190 = vadd.f32 %v3176, %v3185
        %v3191 = vadd.f32 %v3177, %v3187
        %s3192 = sld [smem:[#allocation2 + $0xb1]]
        %v3193 = vstv %s3192
        %v3194 = vmul.f32 %v3193, %v2714
        %v3195 = vmul.f32 %v3193, %v2715
        %v3196 = vadd.f32 %v3190, %v3194
        %v3197 = vadd.f32 %v3191, %v3195
        %s3198 = sld [smem:[#allocation2 + $0xb2]]
        %v3199 = vstv %s3198
        %v3200 = vmul.f32 %v3199, %v2714
        %v3201 = vmul.f32 %v3199, %v2715
        %3204 = vrot.lane.b32.xlu0 %v3200, 127
        %v3205 = vpop.permute.xlu0 %3204
        %3206 = vrot.lane.b32.xlu0 %v3201, 127
        %v3207 = vpop.permute.xlu0 %3206
        %v3210 = vadd.f32 %v3196, %v3205
        %v3211 = vadd.f32 %v3197, %v3207
        %s3212 = sld [smem:[#allocation2 + $0xb3]]
        %v3213 = vstv %s3212
        %v3214 = vmul.f32 %v3213, %v2714
        %v3215 = vmul.f32 %v3213, %v2715
        %3218 = vrot.lane.b32.xlu0 %v3214, 126
        %v3219 = vpop.permute.xlu0 %3218
        %3220 = vrot.lane.b32.xlu0 %v3215, 126
        %v3221 = vpop.permute.xlu0 %3220
        %v3224 = vadd.f32 %v3210, %v3219
        %v3225 = vadd.f32 %v3211, %v3221
        %s3226 = sld [smem:[#allocation2 + $0xcf]]
        %v3227 = vstv %s3226
        %v3228 = vmul.f32 %v3227, %v2710
        %v3229 = vmul.f32 %v3227, %v2711
        %v3230 = vadd.f32 %v2503, %v3228
        %v3231 = vadd.f32 %v2504, %v3229
        %s3232 = sld [smem:[#allocation2 + $0xd0]]
        %v3233 = vstv %s3232
        %v3234 = vmul.f32 %v3233, %v2710
        %v3235 = vmul.f32 %v3233, %v2711
        %3238 = vrot.lane.b32.xlu0 %v3234, 127
        %v3239 = vpop.permute.xlu0 %3238
        %3240 = vrot.lane.b32.xlu0 %v3235, 127
        %v3241 = vpop.permute.xlu0 %3240
        %v3244 = vadd.f32 %v3230, %v3239
        %v3245 = vadd.f32 %v3231, %v3241
        %s3246 = sld [smem:[#allocation2 + $0xd1]]
        %v3247 = vstv %s3246
        %v3248 = vmul.f32 %v3247, %v2710
        %v3249 = vmul.f32 %v3247, %v2711
        %3252 = vrot.lane.b32.xlu0 %v3248, 126
        %v3253 = vpop.permute.xlu0 %3252
        %3254 = vrot.lane.b32.xlu0 %v3249, 126
        %v3255 = vpop.permute.xlu0 %3254
        %v3258 = vadd.f32 %v3244, %v3253
        %v3259 = vadd.f32 %v3245, %v3255
        %s3260 = sld [smem:[#allocation2 + $0xd2]]
        %v3261 = vstv %s3260
        %v3262 = vmul.f32 %v3261, %v2712
        %v3263 = vmul.f32 %v3261, %v2713
        %v3264 = vadd.f32 %v3258, %v3262
        %v3265 = vadd.f32 %v3259, %v3263
        %s3266 = sld [smem:[#allocation2 + $0xd3]]
        %v3267 = vstv %s3266
        %v3268 = vmul.f32 %v3267, %v2712
        %v3269 = vmul.f32 %v3267, %v2713
        %3272 = vrot.lane.b32.xlu0 %v3268, 127
        %v3273 = vpop.permute.xlu0 %3272
        %3274 = vrot.lane.b32.xlu0 %v3269, 127
        %v3275 = vpop.permute.xlu0 %3274
        %v3278 = vadd.f32 %v3264, %v3273
        %v3279 = vadd.f32 %v3265, %v3275
        %s3280 = sld [smem:[#allocation2 + $0xd4]]
        %v3281 = vstv %s3280
        %v3282 = vmul.f32 %v3281, %v2712
        %v3283 = vmul.f32 %v3281, %v2713
        %3286 = vrot.lane.b32.xlu0 %v3282, 126
        %v3287 = vpop.permute.xlu0 %3286
        %3288 = vrot.lane.b32.xlu0 %v3283, 126
        %v3289 = vpop.permute.xlu0 %3288
        %v3292 = vadd.f32 %v3278, %v3287
        %v3293 = vadd.f32 %v3279, %v3289
        %s3294 = sld [smem:[#allocation2 + $0xd5]]
        %v3295 = vstv %s3294
        %v3296 = vmul.f32 %v3295, %v2714
        %v3297 = vmul.f32 %v3295, %v2715
        %v3298 = vadd.f32 %v3292, %v3296
        %v3299 = vadd.f32 %v3293, %v3297
        %s3300 = sld [smem:[#allocation2 + $0xd6]]
        %v3301 = vstv %s3300
        %v3302 = vmul.f32 %v3301, %v2714
        %v3303 = vmul.f32 %v3301, %v2715
        %3306 = vrot.lane.b32.xlu0 %v3302, 127
        %v3307 = vpop.permute.xlu0 %3306
        %3308 = vrot.lane.b32.xlu0 %v3303, 127
        %v3309 = vpop.permute.xlu0 %3308
        %v3312 = vadd.f32 %v3298, %v3307
        %v3313 = vadd.f32 %v3299, %v3309
        %s3314 = sld [smem:[#allocation2 + $0xd7]]
        %v3315 = vstv %s3314
        %v3316 = vmul.f32 %v3315, %v2714
        %v3317 = vmul.f32 %v3315, %v2715
        %3320 = vrot.lane.b32.xlu0 %v3316, 126
        %v3321 = vpop.permute.xlu0 %3320
        %3322 = vrot.lane.b32.xlu0 %v3317, 126
        %v3323 = vpop.permute.xlu0 %3322
        %v3326 = vadd.f32 %v3312, %v3321
        %v3327 = vadd.f32 %v3313, %v3323
        %s3328 = sld [smem:[#allocation2 + $0xf3]]
        %v3329 = vstv %s3328
        %v3330 = vmul.f32 %v3329, %v2710
        %v3331 = vmul.f32 %v3329, %v2711
        %v3332 = vadd.f32 %v2605, %v3330
        %v3333 = vadd.f32 %v2606, %v3331
        %s3334 = sld [smem:[#allocation2 + $0xf4]]
        %v3335 = vstv %s3334
        %v3336 = vmul.f32 %v3335, %v2710
        %v3337 = vmul.f32 %v3335, %v2711
        %3340 = vrot.lane.b32.xlu0 %v3336, 127
        %v3341 = vpop.permute.xlu0 %3340
        %3342 = vrot.lane.b32.xlu0 %v3337, 127
        %v3343 = vpop.permute.xlu0 %3342
        %v3346 = vadd.f32 %v3332, %v3341
        %v3347 = vadd.f32 %v3333, %v3343
        %s3348 = sld [smem:[#allocation2 + $0xf5]]
        %v3349 = vstv %s3348
        %v3350 = vmul.f32 %v3349, %v2710
        %v3351 = vmul.f32 %v3349, %v2711
        %3354 = vrot.lane.b32.xlu0 %v3350, 126
        %v3355 = vpop.permute.xlu0 %3354
        %3356 = vrot.lane.b32.xlu0 %v3351, 126
        %v3357 = vpop.permute.xlu0 %3356
        %v3360 = vadd.f32 %v3346, %v3355
        %v3361 = vadd.f32 %v3347, %v3357
        %s3362 = sld [smem:[#allocation2 + $0xf6]]
        %v3363 = vstv %s3362
        %v3364 = vmul.f32 %v3363, %v2712
        %v3365 = vmul.f32 %v3363, %v2713
        %v3366 = vadd.f32 %v3360, %v3364
        %v3367 = vadd.f32 %v3361, %v3365
        %s3368 = sld [smem:[#allocation2 + $0xf7]]
        %v3369 = vstv %s3368
        %v3370 = vmul.f32 %v3369, %v2712
        %v3371 = vmul.f32 %v3369, %v2713
        %3374 = vrot.lane.b32.xlu0 %v3370, 127
        %v3375 = vpop.permute.xlu0 %3374
        %3376 = vrot.lane.b32.xlu0 %v3371, 127
        %v3377 = vpop.permute.xlu0 %3376
        %v3380 = vadd.f32 %v3366, %v3375
        %v3381 = vadd.f32 %v3367, %v3377
        %s3382 = sld [smem:[#allocation2 + $0xf8]]
        %v3383 = vstv %s3382
        %v3384 = vmul.f32 %v3383, %v2712
        %v3385 = vmul.f32 %v3383, %v2713
        %3388 = vrot.lane.b32.xlu0 %v3384, 126
        %v3389 = vpop.permute.xlu0 %3388
        %3390 = vrot.lane.b32.xlu0 %v3385, 126
        %v3391 = vpop.permute.xlu0 %3390
        %v3394 = vadd.f32 %v3380, %v3389
        %v3395 = vadd.f32 %v3381, %v3391
        %s3396 = sld [smem:[#allocation2 + $0xf9]]
        %v3397 = vstv %s3396
        %v3398 = vmul.f32 %v3397, %v2714
        %v3399 = vmul.f32 %v3397, %v2715
        %v3400 = vadd.f32 %v3394, %v3398
        %v3401 = vadd.f32 %v3395, %v3399
        %s3402 = sld [smem:[#allocation2 + $0xfa]]
        %v3403 = vstv %s3402
        %v3404 = vmul.f32 %v3403, %v2714
        %v3405 = vmul.f32 %v3403, %v2715
        %3408 = vrot.lane.b32.xlu0 %v3404, 127
        %v3409 = vpop.permute.xlu0 %3408
        %3410 = vrot.lane.b32.xlu0 %v3405, 127
        %v3411 = vpop.permute.xlu0 %3410
        %v3414 = vadd.f32 %v3400, %v3409
        %v3415 = vadd.f32 %v3401, %v3411
        %s3416 = sld [smem:[#allocation2 + $0xfb]]
        %v3417 = vstv %s3416
        %v3418 = vmul.f32 %v3417, %v2714
        %v3419 = vmul.f32 %v3417, %v2715
        %3422 = vrot.lane.b32.xlu0 %v3418, 126
        %v3423 = vpop.permute.xlu0 %3422
        %3424 = vrot.lane.b32.xlu0 %v3419, 126
        %v3425 = vpop.permute.xlu0 %3424
        %v3428 = vadd.f32 %v3414, %v3423
        %v3429 = vadd.f32 %v3415, %v3425
        %s3430 = sld [smem:[#allocation2 + $0x117]]
        %v3431 = vstv %s3430
        %v3432 = vmul.f32 %v3431, %v2710
        %v3433 = vmul.f32 %v3431, %v2711
        %v3434 = vadd.f32 %v2707, %v3432
        %v3435 = vadd.f32 %v2708, %v3433
        %s3436 = sld [smem:[#allocation2 + $0x118]]
        %v3437 = vstv %s3436
        %v3438 = vmul.f32 %v3437, %v2710
        %v3439 = vmul.f32 %v3437, %v2711
        %3442 = vrot.lane.b32.xlu0 %v3438, 127
        %v3443 = vpop.permute.xlu0 %3442
        %3444 = vrot.lane.b32.xlu0 %v3439, 127
        %v3445 = vpop.permute.xlu0 %3444
        %v3448 = vadd.f32 %v3434, %v3443
        %v3449 = vadd.f32 %v3435, %v3445
        %s3450 = sld [smem:[#allocation2 + $0x119]]
        %v3451 = vstv %s3450
        %v3452 = vmul.f32 %v3451, %v2710
        %v3453 = vmul.f32 %v3451, %v2711
        %3456 = vrot.lane.b32.xlu0 %v3452, 126
        %v3457 = vpop.permute.xlu0 %3456
        %3458 = vrot.lane.b32.xlu0 %v3453, 126
        %v3459 = vpop.permute.xlu0 %3458
        %v3462 = vadd.f32 %v3448, %v3457
        %v3463 = vadd.f32 %v3449, %v3459
        %s3464 = sld [smem:[#allocation2 + $0x11a]]
        %v3465 = vstv %s3464
        %v3466 = vmul.f32 %v3465, %v2712
        %v3467 = vmul.f32 %v3465, %v2713
        %v3468 = vadd.f32 %v3462, %v3466
        %v3469 = vadd.f32 %v3463, %v3467
        %s3470 = sld [smem:[#allocation2 + $0x11b]]
        %v3471 = vstv %s3470
        %v3472 = vmul.f32 %v3471, %v2712
        %v3473 = vmul.f32 %v3471, %v2713
        %3476 = vrot.lane.b32.xlu0 %v3472, 127
        %v3477 = vpop.permute.xlu0 %3476
        %3478 = vrot.lane.b32.xlu0 %v3473, 127
        %v3479 = vpop.permute.xlu0 %3478
        %v3482 = vadd.f32 %v3468, %v3477
        %v3483 = vadd.f32 %v3469, %v3479
        %s3484 = sld [smem:[#allocation2 + $0x11c]]
        %v3485 = vstv %s3484
        %v3486 = vmul.f32 %v3485, %v2712
        %v3487 = vmul.f32 %v3485, %v2713
        %3490 = vrot.lane.b32.xlu0 %v3486, 126
        %v3491 = vpop.permute.xlu0 %3490
        %3492 = vrot.lane.b32.xlu0 %v3487, 126
        %v3493 = vpop.permute.xlu0 %3492
        %v3496 = vadd.f32 %v3482, %v3491
        %v3497 = vadd.f32 %v3483, %v3493
        %s3498 = sld [smem:[#allocation2 + $0x11d]]
        %v3499 = vstv %s3498
        %v3500 = vmul.f32 %v3499, %v2714
        %v3501 = vmul.f32 %v3499, %v2715
        %v3502 = vadd.f32 %v3496, %v3500
        %v3503 = vadd.f32 %v3497, %v3501
        %s3504 = sld [smem:[#allocation2 + $0x11e]]
        %v3505 = vstv %s3504
        %v3506 = vmul.f32 %v3505, %v2714
        %v3507 = vmul.f32 %v3505, %v2715
        %3510 = vrot.lane.b32.xlu0 %v3506, 127
        %v3511 = vpop.permute.xlu0 %3510
        %3512 = vrot.lane.b32.xlu0 %v3507, 127
        %v3513 = vpop.permute.xlu0 %3512
        %v3516 = vadd.f32 %v3502, %v3511
        %v3517 = vadd.f32 %v3503, %v3513
        %s3518 = sld [smem:[#allocation2 + $0x11f]]
        %v3519 = vstv %s3518
        %v3520 = vmul.f32 %v3519, %v2714
        %v3521 = vmul.f32 %v3519, %v2715
        %3524 = vrot.lane.b32.xlu0 %v3520, 126
        %v3525 = vpop.permute.xlu0 %3524
        %3526 = vrot.lane.b32.xlu0 %v3521, 126
        %v3527 = vpop.permute.xlu0 %3526
        %v3530 = vadd.f32 %v3516, %v3525
        %v3531 = vadd.f32 %v3517, %v3527
        %vm3532 = vcmask 261120
        %3533 = vst.msk [vmem:[%s214] sm:$0xff] %vm3532, %v2816
        %3534 = vst.msk [vmem:[%s214 + $0x8] sm:$0xff] %vm3532, %v2817
        %s3535 = scalar_lea.vmem %s214, 16 [#allocation7]
        %3536 = vst.msk [vmem:[%s3535] sm:$0xff] %vm3532, %v2918
        %3537 = vst.msk [vmem:[%s3535 + $0x8] sm:$0xff] %vm3532, %v2919
        %s3538 = scalar_lea.vmem %s214, 32 [#allocation7]
        %3539 = vst.msk [vmem:[%s3538] sm:$0xff] %vm3532, %v3020
        %3540 = vst.msk [vmem:[%s3538 + $0x8] sm:$0xff] %vm3532, %v3021
        %s3541 = scalar_lea.vmem %s214, 48 [#allocation7]
        %3542 = vst.msk [vmem:[%s3541] sm:$0xff] %vm3532, %v3122
        %3543 = vst.msk [vmem:[%s3541 + $0x8] sm:$0xff] %vm3532, %v3123
        %s3544 = scalar_lea.vmem %s214, 64 [#allocation7]
        %3545 = vst.msk [vmem:[%s3544] sm:$0xff] %vm3532, %v3224
        %3546 = vst.msk [vmem:[%s3544 + $0x8] sm:$0xff] %vm3532, %v3225
        %s3547 = scalar_lea.vmem %s214, 80 [#allocation7]
        %3548 = vst.msk [vmem:[%s3547] sm:$0xff] %vm3532, %v3326
        %3549 = vst.msk [vmem:[%s3547 + $0x8] sm:$0xff] %vm3532, %v3327
        %s3550 = scalar_lea.vmem %s214, 96 [#allocation7]
        %3551 = vst.msk [vmem:[%s3550] sm:$0xff] %vm3532, %v3428
        %3552 = vst.msk [vmem:[%s3550 + $0x8] sm:$0xff] %vm3532, %v3429
        %s3553 = scalar_lea.vmem %s214, 112 [#allocation7]
        %3554 = vst.msk [vmem:[%s3553] sm:$0xff] %vm3532, %v3530
        %3555 = vst.msk [vmem:[%s3553 + $0x8] sm:$0xff] %vm3532, %v3531
        %s3556 = sand.u32 %s113, 1
        %s3557 = scalar_lea.sflag [#allocation3], %s3556
        %s3558 = sand.u32 %s113, 1
        %s3559 = smul.addr %s3558, 128
        %s3560 = scalar_lea.vmem [#allocation7], %s3559
        // Predicated region
        $region41: #{deconvolutional_block_forward.1} parent=31 // pred_check
          %p3561 = pneg %p123
        $region42: #{deconvolutional_block_forward.1} parent=31 // pred_check_branch
          %3563 = sbr.rel (%p3561) target = $region44
        $region43: #{deconvolutional_block_forward.1} parent=31 // pred_region
          #allocation9 [shape = 'u32[6]{0}', space=smem, size = 0x18, scoped, tag = 'DMA stride descriptor']
          %s3564 = smul.u32 2, %s24
          %s3566 = ssub.s32 2048, 2048
          %3567 = vsyncadd %s3557, %s3566
          %s3568 = smul.addr %s23, 32
          %s3569 = sadd.s32 %s3564, %s3568
          %s3570 = smul.addr %s3569, 128
          %s3571 = scalar_lea.hbm %s3, %s3570
          %s3573 = sshll.u32 1, 14
          %s3574 = sxor.u32 4294967295, %s3573
          %s3577 = sshll.u32 7, 18
          %s3578 = sxor.u32 4294967295, %s3577
          %s3579 = sand.u32 0, %s3578
          %s3581 = sor.u32 %s3579, 0
          %s3582 = sshll.u32 %s3560, 4
          %s3583 = int_to_ptr.vmem [resolvable:$true] %s3582
          %3589 = sst [smem:[#allocation9]] 256
          %s3590 = scalar_lea.smem [#allocation9], 1
          %3591 = sst [smem:[%s3590]] 512
          %s3592 = scalar_lea.smem [#allocation9], 2
          %3593 = sst [smem:[%s3592]] 2
          %s3594 = scalar_lea.smem [#allocation9], 3
          %3595 = sst [smem:[%s3594]] 128
          %s3596 = scalar_lea.smem [#allocation9], 4
          %3597 = sst [smem:[%s3596]] 128
          %s3598 = scalar_lea.smem [#allocation9], 5
          %3599 = sst [smem:[%s3598]] 8
          %3601 = dma.general %s3583, 2048, %s3571, %s3557, 131072, [#allocation9], %s3581, 0
        $region44: #{deconvolutional_block_forward.1} parent=31 // pred_fallthru
          _
      $region32: #{deconvolutional_block_forward.1} parent=5 // pred_fallthru
        _
      %p3602 = scmp.le.s32.totalorder 2, %s14
      // Predicated region
      $region45: #{deconvolutional_block_forward.1} parent=5 // pred_check
        %p3603 = pneg %p3602
      $region46: #{deconvolutional_block_forward.1} parent=5 // pred_check_branch
        %3605 = sbr.rel (%p3603) target = $region48
      $region47: #{deconvolutional_block_forward.1} parent=5 // pred_region
        %s3606 = ssub.s32 %s14, 2
        // Predicated region
        $region49: #{deconvolutional_block_forward.1} parent=47 // pred_check
          %p3607 = pneg %p129
        $region50: #{deconvolutional_block_forward.1} parent=47 // pred_check_branch
          %3609 = sbr.rel (%p3607) target = $region52
        $region51: #{deconvolutional_block_forward.1} parent=47 // pred_region
          %s3610 = sand.u32 %s114, 1
          %s3611 = scalar_lea.sflag [#allocation3], %s3610
          %s3612 = sand.u32 %s114, 1
          %s3613 = smul.addr %s3612, 128
          %s3614 = scalar_lea.vmem [#allocation7], %s3613
          %3615 = dma.done %s3611, 2048
        $region52: #{deconvolutional_block_forward.1} parent=47 // pred_fallthru
          _
      $region48: #{deconvolutional_block_forward.1} parent=5 // pred_fallthru
        _
    $region6: #{deconvolutional_block_forward.1} parent=1 // loop_footer
      %s18 = sadd.s32 1, %s14
    $region7: #{deconvolutional_block_forward.1} parent=1 // loop_footer_branch
      %13 = sbr.rel target = $region3
    $region8: #{deconvolutional_block_forward.1} parent=1 // loop_exit
      _
    %3616 = vsyncpa [#allocation3], 1
    %s3617 = scalar_lea.sflag [#allocation3], 1
    %3618 = vsyncpa %s3617, 1
    %3619 = vsyncpa [#allocation4], 1
    %s3620 = scalar_lea.sflag [#allocation4], 1
    %3621 = vsyncpa %s3620, 1
    %3622 = vsyncpa [#allocation6], 1

</llo_original>
